<compile_context>
chip_gen: v7x
topology: tpu7x:2x2x1
jax: 0.10.0
libtpu: 0.0.40
codegen_flags: <defaults>
</compile_context>

<pallas_src>
import functools

import jax
import jax.numpy as jnp
from jax.experimental import pallas as pl
from jax.experimental.pallas import tpu as pltpu

LANE = 128   # lane width
SUB = 8      # sublane width


def _rup(n, m):
    return ((n + m - 1) // m) * m


def _vmem_capacity_bytes():
    """Best-effort VMEM capacity query (64 MiB on v7x, 128 MiB on v5e/v6e)."""
    get_info = getattr(pltpu, "get_tpu_info", None)
    if get_info is not None:
        try:
            info = get_info()
            for name in ("vmem_capacity_bytes", "vmem_bytes", "vmem_size_bytes"):
                v = getattr(info, name, None)
                if v:
                    return int(v)
        except Exception:
            pass
    return 128 * 1024 * 1024


# ----------------------------- Pallas kernels -------------------------------

def _sa_mlp_pool_kernel(x_ref, m_ref, w1_ref, b1_ref, w2_ref, b2_ref,
                        w3_ref, b3_ref, o_ref, *, k):
    """Fused 3x (1x1-conv + folded-BN + ReLU) + masked max-pool over k samples.

    x_ref : [tg*k, cin_p] bf16   m_ref : [tg, k] f32   o_ref : [tg, c3_p] f32
    """
    x = x_ref[...]
    h = jnp.maximum(
        jnp.dot(x, w1_ref[...], preferred_element_type=jnp.float32)
        + b1_ref[...], 0.0)
    h = jnp.maximum(
        jnp.dot(h.astype(jnp.bfloat16), w2_ref[...],
                preferred_element_type=jnp.float32) + b2_ref[...], 0.0)
    h = jnp.maximum(
        jnp.dot(h.astype(jnp.bfloat16), w3_ref[...],
                preferred_element_type=jnp.float32) + b3_ref[...], 0.0)
    rows, c3p = h.shape
    tg = rows // k
    h3 = h.reshape(tg, k, c3p)                      # k multiple of 8 -> cheap view
    m = m_ref[...]                                  # [tg, k] f32 (mask in {0,1})
    # h >= 0 post-ReLU, so a single select against a modest negative constant
    # reproduces masked_max_pooling() for any non-empty mask.
    hm = jnp.where(m[:, :, None] > 0.0, h3, jnp.float32(-1e30))
    o_ref[...] = jnp.max(hm, axis=1)


def _dense_mlp2_kernel(x_ref, w1_ref, b1_ref, w2_ref, b2_ref, o_ref, *, relu_last):
    h = jnp.maximum(
        jnp.dot(x_ref[...], w1_ref[...], preferred_element_type=jnp.float32)
        + b1_ref[...], 0.0)
    y = (jnp.dot(h.astype(jnp.bfloat16), w2_ref[...],
                 preferred_element_type=jnp.float32) + b2_ref[...])
    if relu_last:
        y = jnp.maximum(y, 0.0)
    o_ref[...] = y


def _linear_kernel(x_ref, w_ref, b_ref, o_ref):
    o_ref[...] = (jnp.dot(x_ref[...], w_ref[...],
                          preferred_element_type=jnp.float32) + b_ref[...])


# ----------------------------- Pallas wrappers -------------------------------

def sa_mlp_pool(new_points, grouped_mask, lp):
    """new_points: [B, S, K, C] f32, grouped_mask: [B, S, K] -> [B*S, cout] f32."""
    B, S, K, C = new_points.shape
    cin_p = lp["cin_p"]
    c1p, c2p, c3p = lp["widths_p"]
    cout = lp["cout"]
    G = B * S
    K_p = _rup(K, SUB)

    # Tile the group axis: ~1024 rows per block (512 on 64 MiB-VMEM parts).
    vmem_cap = _vmem_capacity_bytes()
    rows_target = 512 if vmem_cap <= 64 * 1024 * 1024 else 1024
    tg = max(SUB, (rows_target // K_p) // SUB * SUB)
    tg = min(tg, _rup(G, SUB))
    G_p = _rup(G, tg)

    # Pad channels to lane multiples, K to sublane multiples, groups to tile
    # multiples; flatten to 2-D in the wrapper (no in-kernel x reshape).
    x = jnp.pad(new_points.reshape(G, K, C).astype(jnp.float32),
                ((0, G_p - G), (0, K_p - K), (0, cin_p - C)))
    x2d = x.reshape(G_p * K_p, cin_p).astype(jnp.bfloat16)
    m = jnp.pad(grouped_mask.reshape(G, K).astype(jnp.float32),
                ((0, G_p - G), (0, K_p - K)))

    w1, w2, w3 = lp["w"]
    b1, b2, b3 = lp["b"]

    rows = tg * K_p
    est = (2 * (rows * cin_p * 2 + tg * K_p * 4)                 # x + mask, 2-buffered
           + 2 * tg * c3p * 4                                    # output, 2-buffered
           + 2 * ((cin_p * c1p + c1p * c2p + c2p * c3p) * 2
                  + (c1p + c2p + c3p) * 4)                       # resident weights
           + rows * max(c1p, c2p, c3p) * 4 * 2)                  # f32 intermediates
    vmem_limit = int(min(max(2 * est, 32 * 1024 * 1024), 48 * 1024 * 1024))

    const2 = lambda i: (0, 0)   # constant index_map -> weights stay resident
    out = pl.pallas_call(
        functools.partial(_sa_mlp_pool_kernel, k=K_p),
        out_shape=jax.ShapeDtypeStruct((G_p, c3p), jnp.float32),
        grid=(G_p // tg,),
        in_specs=[
            pl.BlockSpec((tg * K_p, cin_p), lambda i: (i, 0)),
            pl.BlockSpec((tg, K_p), lambda i: (i, 0)),
            pl.BlockSpec((cin_p, c1p), const2), pl.BlockSpec((1, c1p), const2),
            pl.BlockSpec((c1p, c2p), const2), pl.BlockSpec((1, c2p), const2),
            pl.BlockSpec((c2p, c3p), const2), pl.BlockSpec((1, c3p), const2),
        ],
        out_specs=pl.BlockSpec((tg, c3p), lambda i: (i, 0)),
        compiler_params=pltpu.CompilerParams(
            dimension_semantics=("parallel",),
            vmem_limit_bytes=vmem_limit),
    )(x2d, m, w1, b1, w2, b2, w3, b3)
    return out[:G, :cout]


def dense_mlp2(x, lp, *, relu_last):
    """Two fused linear layers: relu(x@w1+b1) @ w2 + b2 (optional final relu)."""
    B, C = x.shape
    cin_p = lp["cin_p"]
    c1p, c2p = lp["widths_p"]
    cout = lp["cout"]
    B_p = _rup(B, SUB)
    xp = jnp.pad(x.astype(jnp.float32),
                 ((0, B_p - B), (0, cin_p - C))).astype(jnp.bfloat16)
    (w1, w2), (b1, b2) = lp["w"], lp["b"]
    const2 = lambda i: (0, 0)
    out = pl.pallas_call(
        functools.partial(_dense_mlp2_kernel, relu_last=relu_last),
        out_shape=jax.ShapeDtypeStruct((B_p, c2p), jnp.float32),
        grid=(1,),
        in_specs=[pl.BlockSpec((B_p, cin_p), const2),
                  pl.BlockSpec((cin_p, c1p), const2), pl.BlockSpec((1, c1p), const2),
                  pl.BlockSpec((c1p, c2p), const2), pl.BlockSpec((1, c2p), const2)],
        out_specs=pl.BlockSpec((B_p, c2p), const2),
    )(xp, w1, b1, w2, b2)
    return out[:B, :cout]


def dense_linear(x, lp):
    """Single linear layer, column-tiled over the output (large 3*num_points)."""
    B, C = x.shape
    cin_p = lp["cin_p"]
    cout_p = lp["widths_p"][0]
    cout = lp["cout"]
    B_p = _rup(B, SUB)
    xp = jnp.pad(x.astype(jnp.float32),
                 ((0, B_p - B), (0, cin_p - C))).astype(jnp.bfloat16)
    w, b = lp["w"][0], lp["b"][0]
    tn = next(t for t in (512, 256, 128) if cout_p % t == 0)
    out = pl.pallas_call(
        _linear_kernel,
        out_shape=jax.ShapeDtypeStruct((B_p, cout_p), jnp.float32),
        grid=(cout_p // tn,),
        in_specs=[pl.BlockSpec((B_p, cin_p), lambda j: (0, 0)),
                  pl.BlockSpec((cin_p, tn), lambda j: (0, j)),
                  pl.BlockSpec((1, tn), lambda j: (0, j))],
        out_specs=pl.BlockSpec((B_p, tn), lambda j: (0, j)),
        compiler_params=pltpu.CompilerParams(dimension_semantics=("parallel",)),
    )(xp, w, b)
    return out[:B, :cout]


# -------------------------- JAX glue (sampling/grouping) ---------------------

def farthest_point_sample(xyz, npoint):
    """xyz: [B, N, 3] -> [B, npoint] int32 indices."""
    B, N, _ = xyz.shape

    def body(i, state):
        distance, farthest, centroids = state
        centroids = centroids.at[:, i].set(farthest)
        centroid = jnp.take_along_axis(xyz, farthest[:, None, None], axis=1)  # [B,1,3]
        dist = jnp.sum((xyz - centroid) ** 2, axis=-1)                        # [B,N]
        distance = jnp.minimum(distance, dist)
        farthest = jnp.argmax(distance, axis=-1).astype(jnp.int32)
        return distance, farthest, centroids

    state = (jnp.full((B, N), 1e10, xyz.dtype),
             jnp.zeros((B,), jnp.int32),
             jnp.zeros((B, npoint), jnp.int32))
    _, _, centroids = jax.lax.fori_loop(0, npoint, body, state)
    return centroids


def query_ball_point(radius, nsample, xyz, new_xyz):
    """xyz: [B,N,3], new_xyz: [B,S,3] -> [B,S,nsample] int32 indices.

    Same semantics as the reference (smallest nsample in-radius indices, padded
    with the first), but via top_k instead of a full O(N log N) sort.
    """
    B, N, _ = xyz.shape
    S = new_xyz.shape[1]
    sqrdists = jnp.sum((new_xyz[:, :, None, :] - xyz[:, None, :, :]) ** 2, axis=-1)
    idx = jnp.broadcast_to(jnp.arange(N, dtype=jnp.int32), (B, S, N))
    masked_idx = jnp.where(sqrdists > radius ** 2, jnp.int32(N), idx)
    neg_top, _ = jax.lax.top_k(-masked_idx, nsample)        # k smallest indices
    group_idx = -neg_top                                     # ascending
    group_first = jnp.broadcast_to(group_idx[:, :, :1], group_idx.shape)
    group_idx = jnp.where(group_idx == N, group_first, group_idx)
    return group_idx.astype(jnp.int32)


def index_points(points, idx):
    """points: [B, N, D], idx: [B, ...] -> [B, ..., D]."""
    B = points.shape[0]
    flat = idx.reshape(B, -1)
    g = jnp.take_along_axis(points, flat[..., None], axis=1)
    return g.reshape(*idx.shape, points.shape[-1])


def sa_layer(xyz_cf, points_cf, mask, lp, *, npoint, radius, nsample, group_all):
    """PointNetSetAbstraction.  xyz_cf: [B,3,N], points_cf: [B,D,N] or None."""
    B = xyz_cf.shape[0]
    xyz = jnp.transpose(xyz_cf, (0, 2, 1))                       # [B, N, 3]
    points = None if points_cf is None else jnp.transpose(points_cf, (0, 2, 1))
    if group_all:
        new_xyz = jnp.mean(xyz, axis=1, keepdims=True)           # [B, 1, 3]
        grouped_xyz = xyz[:, None, :, :] - new_xyz[:, :, None, :]
        new_points = grouped_xyz if points is None else jnp.concatenate(
            [grouped_xyz, points[:, None, :, :]], axis=-1)       # [B, 1, N, 3+D]
        S, K = 1, xyz.shape[1]
        grouped_mask = jnp.ones((B, S, K), jnp.float32)
    else:
        fps_idx = farthest_point_sample(xyz, npoint)             # [B, S]
        new_xyz = index_points(xyz, fps_idx)                     # [B, S, 3]
        idx = query_ball_point(radius, nsample, xyz, new_xyz)    # [B, S, K]
        grouped_xyz_norm = index_points(xyz, idx) - new_xyz[:, :, None, :]
        new_points = grouped_xyz_norm if points is None else jnp.concatenate(
            [grouped_xyz_norm, index_points(points, idx)], axis=-1)
        S, K = npoint, nsample
        if mask is None:
            grouped_mask = jnp.ones((B, S, K), jnp.float32)
        else:
            grouped_mask = jnp.take_along_axis(
                mask, idx.reshape(B, -1), axis=1).reshape(B, S, K).astype(jnp.float32)

    pooled = sa_mlp_pool(new_points, grouped_mask, lp)           # [B*S, Cout]
    pooled = jnp.transpose(pooled.reshape(B, S, -1), (0, 2, 1))  # [B, Cout, S]
    return jnp.transpose(new_xyz, (0, 2, 1)), pooled             # [B,3,S], [B,Cout,S]


# ------------------------------- parameters ----------------------------------

def _init_linear(key, cin, cout, scale=0.05):
    kw, kb = jax.random.split(key)
    w = jax.random.normal(kw, (cin, cout), jnp.float32) * scale
    b = jax.random.normal(kb, (cout,), jnp.float32) * scale
    return w, b


def _fold_bn(w, b, eps=1e-5):
    # eval-mode BN (gamma=1, beta=0, running stats 0/1) folded into (w, b)
    scale = 1.0 / jnp.sqrt(1.0 + eps)
    return w * scale, b * scale


def _make_chain(key, cin, widths, bn_flags):
    """Create a chain of linear(+folded BN) layers, zero-padded to lane multiples.

    Weights are stored bf16 [cin_p, cout_p]; biases f32 [1, cout_p]."""
    keys = jax.random.split(key, len(widths))
    cin_p = _rup(cin, LANE)
    widths_p = tuple(_rup(c, LANE) for c in widths)
    ws, bs = [], []
    last, last_p = cin, cin_p
    for i, (cout, cout_p) in enumerate(zip(widths, widths_p)):
        w, b = _init_linear(keys[i], last, cout)
        if bn_flags[i]:
            w, b = _fold_bn(w, b)
        wp = jnp.zeros((last_p, cout_p), jnp.float32).at[:last, :cout].set(w)
        bp = jnp.zeros((1, cout_p), jnp.float32).at[0, :cout].set(b)
        ws.append(wp.astype(jnp.bfloat16))
        bs.append(bp)
        last, last_p = cout, cout_p
    return {"w": tuple(ws), "b": tuple(bs),
            "cin": cin, "cin_p": cin_p,
            "widths": tuple(widths), "widths_p": widths_p,
            "cout": widths[-1]}


def init_params(key, cfg):
    k1, k2, k3, k4, k5, k6 = jax.random.split(key, 6)
    params = {}
    params["sa1"] = _make_chain(k1, 3 + cfg["input_channels"], cfg["sa1_mlp"],
                                bn_flags=(True, True, True))
    params["sa2"] = _make_chain(k2, cfg["sa1_mlp"][-1] + 3, cfg["sa2_mlp"],
                                bn_flags=(True, True, True))
    params["sa3"] = _make_chain(k3, cfg["sa2_mlp"][-1] + 3, cfg["sa3_mlp"],
                                bn_flags=(True, True, True))
    params["enc_fc"] = _make_chain(k4, cfg["sa3_mlp"][-1],
                                   (cfg["enc_hidden"], cfg["feature_dim"]),
                                   bn_flags=(True, False))
    params["dec_fc12"] = _make_chain(k5, cfg["feature_dim"],
                                     (cfg["dec_hidden1"], cfg["dec_hidden2"]),
                                     bn_flags=(True, True))
    params["dec_fc3"] = _make_chain(k6, cfg["dec_hidden2"],
                                    (3 * cfg["num_points"],),
                                    bn_flags=(False,))
    return params


# --------------------------------- model --------------------------------------

def pointnet2_autoencoder(x, mask, params, cfg):
    """x: [B, N, input_channels], mask: [B, N] -> (recon [B,3,num_points], feat [B,F])."""
    B = x.shape[0]
    xyz = jnp.transpose(x, (0, 2, 1))                           # x.transpose(1, 2)
    # ---- encoder ----
    l1_xyz, l1_points = sa_layer(xyz[:, :3, :], xyz, mask, params["sa1"],
                                 npoint=cfg["sa1_npoint"], radius=0.2,
                                 nsample=cfg["sa1_nsample"], group_all=False)
    l2_xyz, l2_points = sa_layer(l1_xyz, l1_points, None, params["sa2"],
                                 npoint=cfg["sa2_npoint"], radius=0.4,
                                 nsample=cfg["sa2_nsample"], group_all=False)
    l3_xyz, l3_points = sa_layer(l2_xyz, l2_points, None, params["sa3"],
                                 npoint=None, radius=None, nsample=None,
                                 group_all=True)
    feat_in = l3_points.reshape(B, -1)                          # [B, bottleneck]
    features = dense_mlp2(feat_in, params["enc_fc"], relu_last=False)   # [B, F]
    # ---- decoder ----
    h = dense_mlp2(features, params["dec_fc12"], relu_last=True)        # [B, hidden2]
    dec = dense_linear(h, params["dec_fc3"])                            # [B, 3*num_points]
    reconstructed = dec.reshape(B, 3, cfg["num_points"])        # x.view(-1, 3, num_points)
    return reconstructed, features


# ---------------------------------- main ---------------------------------------

if __name__ == "__main__":
    # scaled-down config that mirrors the module structure
    cfg = dict(
        input_channels=6, feature_dim=32, num_points=64,
        sa1_npoint=16, sa1_nsample=8, sa1_mlp=(16, 16, 32),
        sa2_npoint=8, sa2_nsample=8, sa2_mlp=(32, 32, 64),
        sa3_mlp=(64, 128, 256),
        enc_hidden=128, dec_hidden1=128, dec_hidden2=256,
    )
    params = init_params(jax.random.PRNGKey(42), cfg)

    B, N = 2, 64
    kx, _ = jax.random.split(jax.random.PRNGKey(0))
    x = jax.random.normal(kx, (B, N, cfg["input_channels"]), jnp.float32)
    mask = jnp.ones((B, N), jnp.float32)   # all points valid

    fwd = jax.jit(lambda xx, mm: pointnet2_autoencoder(xx, mm, params, cfg))
    recon, feats = fwd(x, mask)
    jax.block_until_ready((recon, feats))

    assert recon.shape == (B, 3, cfg["num_points"]), recon.shape
    assert feats.shape == (B, cfg["feature_dim"]), feats.shape
    assert bool(jnp.all(jnp.isfinite(recon))) and bool(jnp.all(jnp.isfinite(feats)))
    print("KERNEL_OK")
</pallas_src>

<mosaic_0001>
module attributes {stable_mosaic.version = 11 : i64} {
  func.func @_sa_mlp_pool_kernel(%arg0: i32, %arg1: memref<256x128xbf16, #tpu.memory_space<vmem>>, %arg2: memref<32x8xf32, #tpu.memory_space<vmem>>, %arg3: memref<128x128xbf16, #tpu.memory_space<vmem>>, %arg4: memref<1x128xf32, #tpu.memory_space<vmem>>, %arg5: memref<128x128xbf16, #tpu.memory_space<vmem>>, %arg6: memref<1x128xf32, #tpu.memory_space<vmem>>, %arg7: memref<128x128xbf16, #tpu.memory_space<vmem>>, %arg8: memref<1x128xf32, #tpu.memory_space<vmem>>, %arg9: memref<32x128xf32, #tpu.memory_space<vmem>>) attributes {dimension_semantics = [#tpu.dimension_semantics<parallel>], iteration_bounds = array<i64: 1>, scalar_prefetch = 0 : i64, scratch_operands = 0 : i64, tpu.core_type = #tpu.core_type<tc>, window_params = [{transform_indices = @transform_0, window_bounds = array<i64: 256, 128>}, {transform_indices = @transform_1, window_bounds = array<i64: 32, 8>}, {pipeline_mode = #tpu.pipeline_mode<synchronous>, transform_indices = @transform_2, window_bounds = array<i64: 128, 128>}, {pipeline_mode = #tpu.pipeline_mode<synchronous>, transform_indices = @transform_3, window_bounds = array<i64: 1, 128>}, {pipeline_mode = #tpu.pipeline_mode<synchronous>, transform_indices = @transform_4, window_bounds = array<i64: 128, 128>}, {pipeline_mode = #tpu.pipeline_mode<synchronous>, transform_indices = @transform_5, window_bounds = array<i64: 1, 128>}, {pipeline_mode = #tpu.pipeline_mode<synchronous>, transform_indices = @transform_6, window_bounds = array<i64: 128, 128>}, {pipeline_mode = #tpu.pipeline_mode<synchronous>, transform_indices = @transform_7, window_bounds = array<i64: 1, 128>}, {transform_indices = @transform_8, window_bounds = array<i64: 32, 128>}]} {
    %c0 = arith.constant 0 : index
    %c0_0 = arith.constant 0 : index
    %0 = vector.load %arg1[%c0, %c0_0] : memref<256x128xbf16, #tpu.memory_space<vmem>>, vector<256x128xbf16>
    %c0_1 = arith.constant 0 : index
    %c0_2 = arith.constant 0 : index
    %1 = vector.load %arg3[%c0_1, %c0_2] : memref<128x128xbf16, #tpu.memory_space<vmem>>, vector<128x128xbf16>
    %cst = arith.constant dense<0.000000e+00> : vector<256x128xf32>
    %2 = tpu.matmul %0, %1, %cst {dimension_numbers = #tpu.dot_dimension_numbers<[1], [0], [0], [1], [0, 0, 1, 1], [], []>} : vector<256x128xbf16>, vector<128x128xbf16>, vector<256x128xf32> -> vector<256x128xf32>
    %c0_3 = arith.constant 0 : index
    %c0_4 = arith.constant 0 : index
    %3 = vector.load %arg4[%c0_3, %c0_4] : memref<1x128xf32, #tpu.memory_space<vmem>>, vector<1x128xf32>
    %4 = vector.broadcast %3 : vector<1x128xf32> to vector<256x128xf32>
    %5 = arith.addf %2, %4 : vector<256x128xf32>
    %cst_5 = arith.constant 0.000000e+00 : f32
    %6 = vector.broadcast %cst_5 : f32 to vector<256x128xf32>
    %7 = arith.maximumf %5, %6 : vector<256x128xf32>
    %8 = arith.truncf %7 : vector<256x128xf32> to vector<256x128xbf16>
    %c0_6 = arith.constant 0 : index
    %c0_7 = arith.constant 0 : index
    %9 = vector.load %arg5[%c0_6, %c0_7] : memref<128x128xbf16, #tpu.memory_space<vmem>>, vector<128x128xbf16>
    %cst_8 = arith.constant dense<0.000000e+00> : vector<256x128xf32>
    %10 = tpu.matmul %8, %9, %cst_8 {dimension_numbers = #tpu.dot_dimension_numbers<[1], [0], [0], [1], [0, 0, 1, 1], [], []>} : vector<256x128xbf16>, vector<128x128xbf16>, vector<256x128xf32> -> vector<256x128xf32>
    %c0_9 = arith.constant 0 : index
    %c0_10 = arith.constant 0 : index
    %11 = vector.load %arg6[%c0_9, %c0_10] : memref<1x128xf32, #tpu.memory_space<vmem>>, vector<1x128xf32>
    %12 = vector.broadcast %11 : vector<1x128xf32> to vector<256x128xf32>
    %13 = arith.addf %10, %12 : vector<256x128xf32>
    %cst_11 = arith.constant 0.000000e+00 : f32
    %14 = vector.broadcast %cst_11 : f32 to vector<256x128xf32>
    %15 = arith.maximumf %13, %14 : vector<256x128xf32>
    %16 = arith.truncf %15 : vector<256x128xf32> to vector<256x128xbf16>
    %c0_12 = arith.constant 0 : index
    %c0_13 = arith.constant 0 : index
    %17 = vector.load %arg7[%c0_12, %c0_13] : memref<128x128xbf16, #tpu.memory_space<vmem>>, vector<128x128xbf16>
    %cst_14 = arith.constant dense<0.000000e+00> : vector<256x128xf32>
    %18 = tpu.matmul %16, %17, %cst_14 {dimension_numbers = #tpu.dot_dimension_numbers<[1], [0], [0], [1], [0, 0, 1, 1], [], []>} : vector<256x128xbf16>, vector<128x128xbf16>, vector<256x128xf32> -> vector<256x128xf32>
    %c0_15 = arith.constant 0 : index
    %c0_16 = arith.constant 0 : index
    %19 = vector.load %arg8[%c0_15, %c0_16] : memref<1x128xf32, #tpu.memory_space<vmem>>, vector<1x128xf32>
    %20 = vector.broadcast %19 : vector<1x128xf32> to vector<256x128xf32>
    %21 = arith.addf %18, %20 : vector<256x128xf32>
    %cst_17 = arith.constant 0.000000e+00 : f32
    %22 = vector.broadcast %cst_17 : f32 to vector<256x128xf32>
    %23 = arith.maximumf %21, %22 : vector<256x128xf32>
    %24 = vector.shape_cast %23 : vector<256x128xf32> to vector<32x8x128xf32>
    %c0_18 = arith.constant 0 : index
    %c0_19 = arith.constant 0 : index
    %25 = vector.load %arg2[%c0_18, %c0_19] : memref<32x8xf32, #tpu.memory_space<vmem>>, vector<32x8xf32>
    %26 = vector.shape_cast %25 : vector<32x8xf32> to vector<32x8x1xf32>
    %cst_20 = arith.constant 0.000000e+00 : f32
    %27 = vector.broadcast %cst_20 : f32 to vector<32x8x1xf32>
    %28 = arith.cmpf ogt, %26, %27 : vector<32x8x1xf32>
    %cst_21 = arith.constant -1.000000e+30 : f32
    %29 = vector.shape_cast %28 : vector<32x8x1xi1> to vector<32x8x1xi1>
    %30 = vector.broadcast %29 : vector<32x8x1xi1> to vector<32x8x128xi1>
    %31 = vector.broadcast %cst_21 : f32 to vector<32x8x128xf32>
    %32 = arith.select %30, %24, %31 : vector<32x8x128xi1>, vector<32x8x128xf32>
    %cst_22 = arith.constant dense<0xFF800000> : vector<32x128xf32>
    %33 = vector.multi_reduction <maximumf>, %32, %cst_22 [1] : vector<32x8x128xf32> to vector<32x128xf32>
    %c0_23 = arith.constant 0 : index
    %c0_24 = arith.constant 0 : index
    %34 = vector.load %arg9[%c0_23, %c0_24] : memref<32x128xf32, #tpu.memory_space<vmem>>, vector<32x128xf32>
    tpu.vector_store %arg9[%c0_23, %c0_24], %33 {strides = array<i32>} : memref<32x128xf32, #tpu.memory_space<vmem>>, vector<32x128xf32>,
    return
  }
  func.func @transform_0(%arg0: i32) -> (i32, i32) {
    %c0_i32 = arith.constant 0 : i32
    %c0_i32_0 = arith.constant 0 : i32
    return %arg0, %c0_i32 : i32, i32
  }
  func.func @transform_1(%arg0: i32) -> (i32, i32) {
    %c0_i32 = arith.constant 0 : i32
    %c0_i32_0 = arith.constant 0 : i32
    return %arg0, %c0_i32 : i32, i32
  }
  func.func @transform_2(%arg0: i32) -> (i32, i32) {
    %c0_i32 = arith.constant 0 : i32
    %c0_i32_0 = arith.constant 0 : i32
    %c0_i32_1 = arith.constant 0 : i32
    return %c0_i32, %c0_i32_0 : i32, i32
  }
  func.func @transform_3(%arg0: i32) -> (i32, i32) {
    %c0_i32 = arith.constant 0 : i32
    %c0_i32_0 = arith.constant 0 : i32
    %c0_i32_1 = arith.constant 0 : i32
    return %c0_i32, %c0_i32_0 : i32, i32
  }
  func.func @transform_4(%arg0: i32) -> (i32, i32) {
    %c0_i32 = arith.constant 0 : i32
    %c0_i32_0 = arith.constant 0 : i32
    %c0_i32_1 = arith.constant 0 : i32
    return %c0_i32, %c0_i32_0 : i32, i32
  }
  func.func @transform_5(%arg0: i32) -> (i32, i32) {
    %c0_i32 = arith.constant 0 : i32
    %c0_i32_0 = arith.constant 0 : i32
    %c0_i32_1 = arith.constant 0 : i32
    return %c0_i32, %c0_i32_0 : i32, i32
  }
  func.func @transform_6(%arg0: i32) -> (i32, i32) {
    %c0_i32 = arith.constant 0 : i32
    %c0_i32_0 = arith.constant 0 : i32
    %c0_i32_1 = arith.constant 0 : i32
    return %c0_i32, %c0_i32_0 : i32, i32
  }
  func.func @transform_7(%arg0: i32) -> (i32, i32) {
    %c0_i32 = arith.constant 0 : i32
    %c0_i32_0 = arith.constant 0 : i32
    %c0_i32_1 = arith.constant 0 : i32
    return %c0_i32, %c0_i32_0 : i32, i32
  }
  func.func @transform_8(%arg0: i32) -> (i32, i32) {
    %c0_i32 = arith.constant 0 : i32
    %c0_i32_0 = arith.constant 0 : i32
    return %arg0, %c0_i32 : i32, i32
  }
}

module attributes {stable_mosaic.version = 11 : i64} {
  func.func @_sa_mlp_pool_kernel(%arg0: i32, %arg1: memref<128x128xbf16, #tpu.memory_space<vmem>>, %arg2: memref<16x8xf32, #tpu.memory_space<vmem>>, %arg3: memref<128x128xbf16, #tpu.memory_space<vmem>>, %arg4: memref<1x128xf32, #tpu.memory_space<vmem>>, %arg5: memref<128x128xbf16, #tpu.memory_space<vmem>>, %arg6: memref<1x128xf32, #tpu.memory_space<vmem>>, %arg7: memref<128x128xbf16, #tpu.memory_space<vmem>>, %arg8: memref<1x128xf32, #tpu.memory_space<vmem>>, %arg9: memref<16x128xf32, #tpu.memory_space<vmem>>) attributes {dimension_semantics = [#tpu.dimension_semantics<parallel>], iteration_bounds = array<i64: 1>, scalar_prefetch = 0 : i64, scratch_operands = 0 : i64, tpu.core_type = #tpu.core_type<tc>, window_params = [{transform_indices = @transform_0, window_bounds = array<i64: 128, 128>}, {transform_indices = @transform_1, window_bounds = array<i64: 16, 8>}, {pipeline_mode = #tpu.pipeline_mode<synchronous>, transform_indices = @transform_2, window_bounds = array<i64: 128, 128>}, {pipeline_mode = #tpu.pipeline_mode<synchronous>, transform_indices = @transform_3, window_bounds = array<i64: 1, 128>}, {pipeline_mode = #tpu.pipeline_mode<synchronous>, transform_indices = @transform_4, window_bounds = array<i64: 128, 128>}, {pipeline_mode = #tpu.pipeline_mode<synchronous>, transform_indices = @transform_5, window_bounds = array<i64: 1, 128>}, {pipeline_mode = #tpu.pipeline_mode<synchronous>, transform_indices = @transform_6, window_bounds = array<i64: 128, 128>}, {pipeline_mode = #tpu.pipeline_mode<synchronous>, transform_indices = @transform_7, window_bounds = array<i64: 1, 128>}, {transform_indices = @transform_8, window_bounds = array<i64: 16, 128>}]} {
    %c0 = arith.constant 0 : index
    %c0_0 = arith.constant 0 : index
    %0 = vector.load %arg1[%c0, %c0_0] : memref<128x128xbf16, #tpu.memory_space<vmem>>, vector<128x128xbf16>
    %c0_1 = arith.constant 0 : index
    %c0_2 = arith.constant 0 : index
    %1 = vector.load %arg3[%c0_1, %c0_2] : memref<128x128xbf16, #tpu.memory_space<vmem>>, vector<128x128xbf16>
    %cst = arith.constant dense<0.000000e+00> : vector<128x128xf32>
    %2 = tpu.matmul %0, %1, %cst {dimension_numbers = #tpu.dot_dimension_numbers<[1], [0], [0], [1], [0, 0, 1, 1], [], []>} : vector<128x128xbf16>, vector<128x128xbf16>, vector<128x128xf32> -> vector<128x128xf32>
    %c0_3 = arith.constant 0 : index
    %c0_4 = arith.constant 0 : index
    %3 = vector.load %arg4[%c0_3, %c0_4] : memref<1x128xf32, #tpu.memory_space<vmem>>, vector<1x128xf32>
    %4 = vector.broadcast %3 : vector<1x128xf32> to vector<128x128xf32>
    %5 = arith.addf %2, %4 : vector<128x128xf32>
    %cst_5 = arith.constant 0.000000e+00 : f32
    %6 = vector.broadcast %cst_5 : f32 to vector<128x128xf32>
    %7 = arith.maximumf %5, %6 : vector<128x128xf32>
    %8 = arith.truncf %7 : vector<128x128xf32> to vector<128x128xbf16>
    %c0_6 = arith.constant 0 : index
    %c0_7 = arith.constant 0 : index
    %9 = vector.load %arg5[%c0_6, %c0_7] : memref<128x128xbf16, #tpu.memory_space<vmem>>, vector<128x128xbf16>
    %cst_8 = arith.constant dense<0.000000e+00> : vector<128x128xf32>
    %10 = tpu.matmul %8, %9, %cst_8 {dimension_numbers = #tpu.dot_dimension_numbers<[1], [0], [0], [1], [0, 0, 1, 1], [], []>} : vector<128x128xbf16>, vector<128x128xbf16>, vector<128x128xf32> -> vector<128x128xf32>
    %c0_9 = arith.constant 0 : index
    %c0_10 = arith.constant 0 : index
    %11 = vector.load %arg6[%c0_9, %c0_10] : memref<1x128xf32, #tpu.memory_space<vmem>>, vector<1x128xf32>
    %12 = vector.broadcast %11 : vector<1x128xf32> to vector<128x128xf32>
    %13 = arith.addf %10, %12 : vector<128x128xf32>
    %cst_11 = arith.constant 0.000000e+00 : f32
    %14 = vector.broadcast %cst_11 : f32 to vector<128x128xf32>
    %15 = arith.maximumf %13, %14 : vector<128x128xf32>
    %16 = arith.truncf %15 : vector<128x128xf32> to vector<128x128xbf16>
    %c0_12 = arith.constant 0 : index
    %c0_13 = arith.constant 0 : index
    %17 = vector.load %arg7[%c0_12, %c0_13] : memref<128x128xbf16, #tpu.memory_space<vmem>>, vector<128x128xbf16>
    %cst_14 = arith.constant dense<0.000000e+00> : vector<128x128xf32>
    %18 = tpu.matmul %16, %17, %cst_14 {dimension_numbers = #tpu.dot_dimension_numbers<[1], [0], [0], [1], [0, 0, 1, 1], [], []>} : vector<128x128xbf16>, vector<128x128xbf16>, vector<128x128xf32> -> vector<128x128xf32>
    %c0_15 = arith.constant 0 : index
    %c0_16 = arith.constant 0 : index
    %19 = vector.load %arg8[%c0_15, %c0_16] : memref<1x128xf32, #tpu.memory_space<vmem>>, vector<1x128xf32>
    %20 = vector.broadcast %19 : vector<1x128xf32> to vector<128x128xf32>
    %21 = arith.addf %18, %20 : vector<128x128xf32>
    %cst_17 = arith.constant 0.000000e+00 : f32
    %22 = vector.broadcast %cst_17 : f32 to vector<128x128xf32>
    %23 = arith.maximumf %21, %22 : vector<128x128xf32>
    %24 = vector.shape_cast %23 : vector<128x128xf32> to vector<16x8x128xf32>
    %c0_18 = arith.constant 0 : index
    %c0_19 = arith.constant 0 : index
    %25 = vector.load %arg2[%c0_18, %c0_19] : memref<16x8xf32, #tpu.memory_space<vmem>>, vector<16x8xf32>
    %26 = vector.shape_cast %25 : vector<16x8xf32> to vector<16x8x1xf32>
    %cst_20 = arith.constant 0.000000e+00 : f32
    %27 = vector.broadcast %cst_20 : f32 to vector<16x8x1xf32>
    %28 = arith.cmpf ogt, %26, %27 : vector<16x8x1xf32>
    %cst_21 = arith.constant -1.000000e+30 : f32
    %29 = vector.shape_cast %28 : vector<16x8x1xi1> to vector<16x8x1xi1>
    %30 = vector.broadcast %29 : vector<16x8x1xi1> to vector<16x8x128xi1>
    %31 = vector.broadcast %cst_21 : f32 to vector<16x8x128xf32>
    %32 = arith.select %30, %24, %31 : vector<16x8x128xi1>, vector<16x8x128xf32>
    %cst_22 = arith.constant dense<0xFF800000> : vector<16x128xf32>
    %33 = vector.multi_reduction <maximumf>, %32, %cst_22 [1] : vector<16x8x128xf32> to vector<16x128xf32>
    %c0_23 = arith.constant 0 : index
    %c0_24 = arith.constant 0 : index
    %34 = vector.load %arg9[%c0_23, %c0_24] : memref<16x128xf32, #tpu.memory_space<vmem>>, vector<16x128xf32>
    tpu.vector_store %arg9[%c0_23, %c0_24], %33 {strides = array<i32>} : memref<16x128xf32, #tpu.memory_space<vmem>>, vector<16x128xf32>,
    return
  }
  func.func @transform_0(%arg0: i32) -> (i32, i32) {
    %c0_i32 = arith.constant 0 : i32
    %c0_i32_0 = arith.constant 0 : i32
    return %arg0, %c0_i32 : i32, i32
  }
  func.func @transform_1(%arg0: i32) -> (i32, i32) {
    %c0_i32 = arith.constant 0 : i32
    %c0_i32_0 = arith.constant 0 : i32
    return %arg0, %c0_i32 : i32, i32
  }
  func.func @transform_2(%arg0: i32) -> (i32, i32) {
    %c0_i32 = arith.constant 0 : i32
    %c0_i32_0 = arith.constant 0 : i32
    %c0_i32_1 = arith.constant 0 : i32
    return %c0_i32, %c0_i32_0 : i32, i32
  }
  func.func @transform_3(%arg0: i32) -> (i32, i32) {
    %c0_i32 = arith.constant 0 : i32
    %c0_i32_0 = arith.constant 0 : i32
    %c0_i32_1 = arith.constant 0 : i32
    return %c0_i32, %c0_i32_0 : i32, i32
  }
  func.func @transform_4(%arg0: i32) -> (i32, i32) {
    %c0_i32 = arith.constant 0 : i32
    %c0_i32_0 = arith.constant 0 : i32
    %c0_i32_1 = arith.constant 0 : i32
    return %c0_i32, %c0_i32_0 : i32, i32
  }
  func.func @transform_5(%arg0: i32) -> (i32, i32) {
    %c0_i32 = arith.constant 0 : i32
    %c0_i32_0 = arith.constant 0 : i32
    %c0_i32_1 = arith.constant 0 : i32
    return %c0_i32, %c0_i32_0 : i32, i32
  }
  func.func @transform_6(%arg0: i32) -> (i32, i32) {
    %c0_i32 = arith.constant 0 : i32
    %c0_i32_0 = arith.constant 0 : i32
    %c0_i32_1 = arith.constant 0 : i32
    return %c0_i32, %c0_i32_0 : i32, i32
  }
  func.func @transform_7(%arg0: i32) -> (i32, i32) {
    %c0_i32 = arith.constant 0 : i32
    %c0_i32_0 = arith.constant 0 : i32
    %c0_i32_1 = arith.constant 0 : i32
    return %c0_i32, %c0_i32_0 : i32, i32
  }
  func.func @transform_8(%arg0: i32) -> (i32, i32) {
    %c0_i32 = arith.constant 0 : i32
    %c0_i32_0 = arith.constant 0 : i32
    return %arg0, %c0_i32 : i32, i32
  }
}

module attributes {stable_mosaic.version = 11 : i64} {
  func.func @_sa_mlp_pool_kernel(%arg0: i32, %arg1: memref<64x128xbf16, #tpu.memory_space<vmem>>, %arg2: memref<8x8xf32, #tpu.memory_space<vmem>>, %arg3: memref<128x128xbf16, #tpu.memory_space<vmem>>, %arg4: memref<1x128xf32, #tpu.memory_space<vmem>>, %arg5: memref<128x128xbf16, #tpu.memory_space<vmem>>, %arg6: memref<1x128xf32, #tpu.memory_space<vmem>>, %arg7: memref<128x256xbf16, #tpu.memory_space<vmem>>, %arg8: memref<1x256xf32, #tpu.memory_space<vmem>>, %arg9: memref<8x256xf32, #tpu.memory_space<vmem>>) attributes {dimension_semantics = [#tpu.dimension_semantics<parallel>], iteration_bounds = array<i64: 1>, scalar_prefetch = 0 : i64, scratch_operands = 0 : i64, tpu.core_type = #tpu.core_type<tc>, window_params = [{transform_indices = @transform_0, window_bounds = array<i64: 64, 128>}, {transform_indices = @transform_1, window_bounds = array<i64: 8, 8>}, {pipeline_mode = #tpu.pipeline_mode<synchronous>, transform_indices = @transform_2, window_bounds = array<i64: 128, 128>}, {pipeline_mode = #tpu.pipeline_mode<synchronous>, transform_indices = @transform_3, window_bounds = array<i64: 1, 128>}, {pipeline_mode = #tpu.pipeline_mode<synchronous>, transform_indices = @transform_4, window_bounds = array<i64: 128, 128>}, {pipeline_mode = #tpu.pipeline_mode<synchronous>, transform_indices = @transform_5, window_bounds = array<i64: 1, 128>}, {pipeline_mode = #tpu.pipeline_mode<synchronous>, transform_indices = @transform_6, window_bounds = array<i64: 128, 256>}, {pipeline_mode = #tpu.pipeline_mode<synchronous>, transform_indices = @transform_7, window_bounds = array<i64: 1, 256>}, {transform_indices = @transform_8, window_bounds = array<i64: 8, 256>}]} {
    %c0 = arith.constant 0 : index
    %c0_0 = arith.constant 0 : index
    %0 = vector.load %arg1[%c0, %c0_0] : memref<64x128xbf16, #tpu.memory_space<vmem>>, vector<64x128xbf16>
    %c0_1 = arith.constant 0 : index
    %c0_2 = arith.constant 0 : index
    %1 = vector.load %arg3[%c0_1, %c0_2] : memref<128x128xbf16, #tpu.memory_space<vmem>>, vector<128x128xbf16>
    %cst = arith.constant dense<0.000000e+00> : vector<64x128xf32>
    %2 = tpu.matmul %0, %1, %cst {dimension_numbers = #tpu.dot_dimension_numbers<[1], [0], [0], [1], [0, 0, 1, 1], [], []>} : vector<64x128xbf16>, vector<128x128xbf16>, vector<64x128xf32> -> vector<64x128xf32>
    %c0_3 = arith.constant 0 : index
    %c0_4 = arith.constant 0 : index
    %3 = vector.load %arg4[%c0_3, %c0_4] : memref<1x128xf32, #tpu.memory_space<vmem>>, vector<1x128xf32>
    %4 = vector.broadcast %3 : vector<1x128xf32> to vector<64x128xf32>
    %5 = arith.addf %2, %4 : vector<64x128xf32>
    %cst_5 = arith.constant 0.000000e+00 : f32
    %6 = vector.broadcast %cst_5 : f32 to vector<64x128xf32>
    %7 = arith.maximumf %5, %6 : vector<64x128xf32>
    %8 = arith.truncf %7 : vector<64x128xf32> to vector<64x128xbf16>
    %c0_6 = arith.constant 0 : index
    %c0_7 = arith.constant 0 : index
    %9 = vector.load %arg5[%c0_6, %c0_7] : memref<128x128xbf16, #tpu.memory_space<vmem>>, vector<128x128xbf16>
    %cst_8 = arith.constant dense<0.000000e+00> : vector<64x128xf32>
    %10 = tpu.matmul %8, %9, %cst_8 {dimension_numbers = #tpu.dot_dimension_numbers<[1], [0], [0], [1], [0, 0, 1, 1], [], []>} : vector<64x128xbf16>, vector<128x128xbf16>, vector<64x128xf32> -> vector<64x128xf32>
    %c0_9 = arith.constant 0 : index
    %c0_10 = arith.constant 0 : index
    %11 = vector.load %arg6[%c0_9, %c0_10] : memref<1x128xf32, #tpu.memory_space<vmem>>, vector<1x128xf32>
    %12 = vector.broadcast %11 : vector<1x128xf32> to vector<64x128xf32>
    %13 = arith.addf %10, %12 : vector<64x128xf32>
    %cst_11 = arith.constant 0.000000e+00 : f32
    %14 = vector.broadcast %cst_11 : f32 to vector<64x128xf32>
    %15 = arith.maximumf %13, %14 : vector<64x128xf32>
    %16 = arith.truncf %15 : vector<64x128xf32> to vector<64x128xbf16>
    %c0_12 = arith.constant 0 : index
    %c0_13 = arith.constant 0 : index
    %17 = vector.load %arg7[%c0_12, %c0_13] : memref<128x256xbf16, #tpu.memory_space<vmem>>, vector<128x256xbf16>
    %cst_14 = arith.constant dense<0.000000e+00> : vector<64x256xf32>
    %18 = tpu.matmul %16, %17, %cst_14 {dimension_numbers = #tpu.dot_dimension_numbers<[1], [0], [0], [1], [0, 0, 1, 1], [], []>} : vector<64x128xbf16>, vector<128x256xbf16>, vector<64x256xf32> -> vector<64x256xf32>
    %c0_15 = arith.constant 0 : index
    %c0_16 = arith.constant 0 : index
    %19 = vector.load %arg8[%c0_15, %c0_16] : memref<1x256xf32, #tpu.memory_space<vmem>>, vector<1x256xf32>
    %20 = vector.broadcast %19 : vector<1x256xf32> to vector<64x256xf32>
    %21 = arith.addf %18, %20 : vector<64x256xf32>
    %cst_17 = arith.constant 0.000000e+00 : f32
    %22 = vector.broadcast %cst_17 : f32 to vector<64x256xf32>
    %23 = arith.maximumf %21, %22 : vector<64x256xf32>
    %24 = vector.shape_cast %23 : vector<64x256xf32> to vector<8x8x256xf32>
    %c0_18 = arith.constant 0 : index
    %c0_19 = arith.constant 0 : index
    %25 = vector.load %arg2[%c0_18, %c0_19] : memref<8x8xf32, #tpu.memory_space<vmem>>, vector<8x8xf32>
    %26 = vector.shape_cast %25 : vector<8x8xf32> to vector<8x8x1xf32>
    %cst_20 = arith.constant 0.000000e+00 : f32
    %27 = vector.broadcast %cst_20 : f32 to vector<8x8x1xf32>
    %28 = arith.cmpf ogt, %26, %27 : vector<8x8x1xf32>
    %cst_21 = arith.constant -1.000000e+30 : f32
    %29 = vector.shape_cast %28 : vector<8x8x1xi1> to vector<8x8x1xi1>
    %30 = vector.broadcast %29 : vector<8x8x1xi1> to vector<8x8x256xi1>
    %31 = vector.broadcast %cst_21 : f32 to vector<8x8x256xf32>
    %32 = arith.select %30, %24, %31 : vector<8x8x256xi1>, vector<8x8x256xf32>
    %cst_22 = arith.constant dense<0xFF800000> : vector<8x256xf32>
    %33 = vector.multi_reduction <maximumf>, %32, %cst_22 [1] : vector<8x8x256xf32> to vector<8x256xf32>
    %c0_23 = arith.constant 0 : index
    %c0_24 = arith.constant 0 : index
    %34 = vector.load %arg9[%c0_23, %c0_24] : memref<8x256xf32, #tpu.memory_space<vmem>>, vector<8x256xf32>
    tpu.vector_store %arg9[%c0_23, %c0_24], %33 {strides = array<i32>} : memref<8x256xf32, #tpu.memory_space<vmem>>, vector<8x256xf32>,
    return
  }
  func.func @transform_0(%arg0: i32) -> (i32, i32) {
    %c0_i32 = arith.constant 0 : i32
    %c0_i32_0 = arith.constant 0 : i32
    return %arg0, %c0_i32 : i32, i32
  }
  func.func @transform_1(%arg0: i32) -> (i32, i32) {
    %c0_i32 = arith.constant 0 : i32
    %c0_i32_0 = arith.constant 0 : i32
    return %arg0, %c0_i32 : i32, i32
  }
  func.func @transform_2(%arg0: i32) -> (i32, i32) {
    %c0_i32 = arith.constant 0 : i32
    %c0_i32_0 = arith.constant 0 : i32
    %c0_i32_1 = arith.constant 0 : i32
    return %c0_i32, %c0_i32_0 : i32, i32
  }
  func.func @transform_3(%arg0: i32) -> (i32, i32) {
    %c0_i32 = arith.constant 0 : i32
    %c0_i32_0 = arith.constant 0 : i32
    %c0_i32_1 = arith.constant 0 : i32
    return %c0_i32, %c0_i32_0 : i32, i32
  }
  func.func @transform_4(%arg0: i32) -> (i32, i32) {
    %c0_i32 = arith.constant 0 : i32
    %c0_i32_0 = arith.constant 0 : i32
    %c0_i32_1 = arith.constant 0 : i32
    return %c0_i32, %c0_i32_0 : i32, i32
  }
  func.func @transform_5(%arg0: i32) -> (i32, i32) {
    %c0_i32 = arith.constant 0 : i32
    %c0_i32_0 = arith.constant 0 : i32
    %c0_i32_1 = arith.constant 0 : i32
    return %c0_i32, %c0_i32_0 : i32, i32
  }
  func.func @transform_6(%arg0: i32) -> (i32, i32) {
    %c0_i32 = arith.constant 0 : i32
    %c0_i32_0 = arith.constant 0 : i32
    %c0_i32_1 = arith.constant 0 : i32
    return %c0_i32, %c0_i32_0 : i32, i32
  }
  func.func @transform_7(%arg0: i32) -> (i32, i32) {
    %c0_i32 = arith.constant 0 : i32
    %c0_i32_0 = arith.constant 0 : i32
    %c0_i32_1 = arith.constant 0 : i32
    return %c0_i32, %c0_i32_0 : i32, i32
  }
  func.func @transform_8(%arg0: i32) -> (i32, i32) {
    %c0_i32 = arith.constant 0 : i32
    %c0_i32_0 = arith.constant 0 : i32
    return %arg0, %c0_i32 : i32, i32
  }
}

module attributes {stable_mosaic.version = 11 : i64} {
  func.func @_dense_mlp2_kernel(%arg0: i32, %arg1: memref<8x128xbf16, #tpu.memory_space<vmem>>, %arg2: memref<128x128xbf16, #tpu.memory_space<vmem>>, %arg3: memref<1x128xf32, #tpu.memory_space<vmem>>, %arg4: memref<128x256xbf16, #tpu.memory_space<vmem>>, %arg5: memref<1x256xf32, #tpu.memory_space<vmem>>, %arg6: memref<8x256xf32, #tpu.memory_space<vmem>>) attributes {dimension_semantics = [#tpu.dimension_semantics<arbitrary>], iteration_bounds = array<i64: 1>, scalar_prefetch = 0 : i64, scratch_operands = 0 : i64, tpu.core_type = #tpu.core_type<tc>, window_params = [{pipeline_mode = #tpu.pipeline_mode<synchronous>, transform_indices = @transform_0, window_bounds = array<i64: 8, 128>}, {pipeline_mode = #tpu.pipeline_mode<synchronous>, transform_indices = @transform_1, window_bounds = array<i64: 128, 128>}, {pipeline_mode = #tpu.pipeline_mode<synchronous>, transform_indices = @transform_2, window_bounds = array<i64: 1, 128>}, {pipeline_mode = #tpu.pipeline_mode<synchronous>, transform_indices = @transform_3, window_bounds = array<i64: 128, 256>}, {pipeline_mode = #tpu.pipeline_mode<synchronous>, transform_indices = @transform_4, window_bounds = array<i64: 1, 256>}, {pipeline_mode = #tpu.pipeline_mode<synchronous>, transform_indices = @transform_5, window_bounds = array<i64: 8, 256>}]} {
    %c0 = arith.constant 0 : index
    %c0_0 = arith.constant 0 : index
    %0 = vector.load %arg1[%c0, %c0_0] : memref<8x128xbf16, #tpu.memory_space<vmem>>, vector<8x128xbf16>
    %c0_1 = arith.constant 0 : index
    %c0_2 = arith.constant 0 : index
    %1 = vector.load %arg2[%c0_1, %c0_2] : memref<128x128xbf16, #tpu.memory_space<vmem>>, vector<128x128xbf16>
    %cst = arith.constant dense<0.000000e+00> : vector<8x128xf32>
    %2 = tpu.matmul %0, %1, %cst {dimension_numbers = #tpu.dot_dimension_numbers<[1], [0], [0], [1], [0, 0, 1, 1], [], []>} : vector<8x128xbf16>, vector<128x128xbf16>, vector<8x128xf32> -> vector<8x128xf32>
    %c0_3 = arith.constant 0 : index
    %c0_4 = arith.constant 0 : index
    %3 = vector.load %arg3[%c0_3, %c0_4] : memref<1x128xf32, #tpu.memory_space<vmem>>, vector<1x128xf32>
    %4 = vector.broadcast %3 : vector<1x128xf32> to vector<8x128xf32>
    %5 = arith.addf %2, %4 : vector<8x128xf32>
    %cst_5 = arith.constant 0.000000e+00 : f32
    %6 = vector.broadcast %cst_5 : f32 to vector<8x128xf32>
    %7 = arith.maximumf %5, %6 : vector<8x128xf32>
    %8 = arith.truncf %7 : vector<8x128xf32> to vector<8x128xbf16>
    %c0_6 = arith.constant 0 : index
    %c0_7 = arith.constant 0 : index
    %9 = vector.load %arg4[%c0_6, %c0_7] : memref<128x256xbf16, #tpu.memory_space<vmem>>, vector<128x256xbf16>
    %cst_8 = arith.constant dense<0.000000e+00> : vector<8x256xf32>
    %10 = tpu.matmul %8, %9, %cst_8 {dimension_numbers = #tpu.dot_dimension_numbers<[1], [0], [0], [1], [0, 0, 1, 1], [], []>} : vector<8x128xbf16>, vector<128x256xbf16>, vector<8x256xf32> -> vector<8x256xf32>
    %c0_9 = arith.constant 0 : index
    %c0_10 = arith.constant 0 : index
    %11 = vector.load %arg5[%c0_9, %c0_10] : memref<1x256xf32, #tpu.memory_space<vmem>>, vector<1x256xf32>
    %12 = vector.broadcast %11 : vector<1x256xf32> to vector<8x256xf32>
    %13 = arith.addf %10, %12 : vector<8x256xf32>
    %cst_11 = arith.constant 0.000000e+00 : f32
    %14 = vector.broadcast %cst_11 : f32 to vector<8x256xf32>
    %15 = arith.maximumf %13, %14 : vector<8x256xf32>
    %c0_12 = arith.constant 0 : index
    %c0_13 = arith.constant 0 : index
    %16 = vector.load %arg6[%c0_12, %c0_13] : memref<8x256xf32, #tpu.memory_space<vmem>>, vector<8x256xf32>
    tpu.vector_store %arg6[%c0_12, %c0_13], %15 {strides = array<i32>} : memref<8x256xf32, #tpu.memory_space<vmem>>, vector<8x256xf32>,
    return
  }
  func.func @transform_0(%arg0: i32) -> (i32, i32) {
    %c0_i32 = arith.constant 0 : i32
    %c0_i32_0 = arith.constant 0 : i32
    %c0_i32_1 = arith.constant 0 : i32
    return %c0_i32, %c0_i32_0 : i32, i32
  }
  func.func @transform_1(%arg0: i32) -> (i32, i32) {
    %c0_i32 = arith.constant 0 : i32
    %c0_i32_0 = arith.constant 0 : i32
    %c0_i32_1 = arith.constant 0 : i32
    return %c0_i32, %c0_i32_0 : i32, i32
  }
  func.func @transform_2(%arg0: i32) -> (i32, i32) {
    %c0_i32 = arith.constant 0 : i32
    %c0_i32_0 = arith.constant 0 : i32
    %c0_i32_1 = arith.constant 0 : i32
    return %c0_i32, %c0_i32_0 : i32, i32
  }
  func.func @transform_3(%arg0: i32) -> (i32, i32) {
    %c0_i32 = arith.constant 0 : i32
    %c0_i32_0 = arith.constant 0 : i32
    %c0_i32_1 = arith.constant 0 : i32
    return %c0_i32, %c0_i32_0 : i32, i32
  }
  func.func @transform_4(%arg0: i32) -> (i32, i32) {
    %c0_i32 = arith.constant 0 : i32
    %c0_i32_0 = arith.constant 0 : i32
    %c0_i32_1 = arith.constant 0 : i32
    return %c0_i32, %c0_i32_0 : i32, i32
  }
  func.func @transform_5(%arg0: i32) -> (i32, i32) {
    %c0_i32 = arith.constant 0 : i32
    %c0_i32_0 = arith.constant 0 : i32
    %c0_i32_1 = arith.constant 0 : i32
    return %c0_i32, %c0_i32_0 : i32, i32
  }
}

module attributes {stable_mosaic.version = 11 : i64} {
  func.func @_dense_mlp2_kernel(%arg0: i32, %arg1: memref<8x256xbf16, #tpu.memory_space<vmem>>, %arg2: memref<256x128xbf16, #tpu.memory_space<vmem>>, %arg3: memref<1x128xf32, #tpu.memory_space<vmem>>, %arg4: memref<128x128xbf16, #tpu.memory_space<vmem>>, %arg5: memref<1x128xf32, #tpu.memory_space<vmem>>, %arg6: memref<8x128xf32, #tpu.memory_space<vmem>>) attributes {dimension_semantics = [#tpu.dimension_semantics<arbitrary>], iteration_bounds = array<i64: 1>, scalar_prefetch = 0 : i64, scratch_operands = 0 : i64, tpu.core_type = #tpu.core_type<tc>, window_params = [{pipeline_mode = #tpu.pipeline_mode<synchronous>, transform_indices = @transform_0, window_bounds = array<i64: 8, 256>}, {pipeline_mode = #tpu.pipeline_mode<synchronous>, transform_indices = @transform_1, window_bounds = array<i64: 256, 128>}, {pipeline_mode = #tpu.pipeline_mode<synchronous>, transform_indices = @transform_2, window_bounds = array<i64: 1, 128>}, {pipeline_mode = #tpu.pipeline_mode<synchronous>, transform_indices = @transform_3, window_bounds = array<i64: 128, 128>}, {pipeline_mode = #tpu.pipeline_mode<synchronous>, transform_indices = @transform_4, window_bounds = array<i64: 1, 128>}, {pipeline_mode = #tpu.pipeline_mode<synchronous>, transform_indices = @transform_5, window_bounds = array<i64: 8, 128>}]} {
    %c0 = arith.constant 0 : index
    %c0_0 = arith.constant 0 : index
    %0 = vector.load %arg1[%c0, %c0_0] : memref<8x256xbf16, #tpu.memory_space<vmem>>, vector<8x256xbf16>
    %c0_1 = arith.constant 0 : index
    %c0_2 = arith.constant 0 : index
    %1 = vector.load %arg2[%c0_1, %c0_2] : memref<256x128xbf16, #tpu.memory_space<vmem>>, vector<256x128xbf16>
    %cst = arith.constant dense<0.000000e+00> : vector<8x128xf32>
    %2 = tpu.matmul %0, %1, %cst {dimension_numbers = #tpu.dot_dimension_numbers<[1], [0], [0], [1], [0, 0, 1, 1], [], []>} : vector<8x256xbf16>, vector<256x128xbf16>, vector<8x128xf32> -> vector<8x128xf32>
    %c0_3 = arith.constant 0 : index
    %c0_4 = arith.constant 0 : index
    %3 = vector.load %arg3[%c0_3, %c0_4] : memref<1x128xf32, #tpu.memory_space<vmem>>, vector<1x128xf32>
    %4 = vector.broadcast %3 : vector<1x128xf32> to vector<8x128xf32>
    %5 = arith.addf %2, %4 : vector<8x128xf32>
    %cst_5 = arith.constant 0.000000e+00 : f32
    %6 = vector.broadcast %cst_5 : f32 to vector<8x128xf32>
    %7 = arith.maximumf %5, %6 : vector<8x128xf32>
    %8 = arith.truncf %7 : vector<8x128xf32> to vector<8x128xbf16>
    %c0_6 = arith.constant 0 : index
    %c0_7 = arith.constant 0 : index
    %9 = vector.load %arg4[%c0_6, %c0_7] : memref<128x128xbf16, #tpu.memory_space<vmem>>, vector<128x128xbf16>
    %cst_8 = arith.constant dense<0.000000e+00> : vector<8x128xf32>
    %10 = tpu.matmul %8, %9, %cst_8 {dimension_numbers = #tpu.dot_dimension_numbers<[1], [0], [0], [1], [0, 0, 1, 1], [], []>} : vector<8x128xbf16>, vector<128x128xbf16>, vector<8x128xf32> -> vector<8x128xf32>
    %c0_9 = arith.constant 0 : index
    %c0_10 = arith.constant 0 : index
    %11 = vector.load %arg5[%c0_9, %c0_10] : memref<1x128xf32, #tpu.memory_space<vmem>>, vector<1x128xf32>
    %12 = vector.broadcast %11 : vector<1x128xf32> to vector<8x128xf32>
    %13 = arith.addf %10, %12 : vector<8x128xf32>
    %c0_11 = arith.constant 0 : index
    %c0_12 = arith.constant 0 : index
    %14 = vector.load %arg6[%c0_11, %c0_12] : memref<8x128xf32, #tpu.memory_space<vmem>>, vector<8x128xf32>
    tpu.vector_store %arg6[%c0_11, %c0_12], %13 {strides = array<i32>} : memref<8x128xf32, #tpu.memory_space<vmem>>, vector<8x128xf32>,
    return
  }
  func.func @transform_0(%arg0: i32) -> (i32, i32) {
    %c0_i32 = arith.constant 0 : i32
    %c0_i32_0 = arith.constant 0 : i32
    %c0_i32_1 = arith.constant 0 : i32
    return %c0_i32, %c0_i32_0 : i32, i32
  }
  func.func @transform_1(%arg0: i32) -> (i32, i32) {
    %c0_i32 = arith.constant 0 : i32
    %c0_i32_0 = arith.constant 0 : i32
    %c0_i32_1 = arith.constant 0 : i32
    return %c0_i32, %c0_i32_0 : i32, i32
  }
  func.func @transform_2(%arg0: i32) -> (i32, i32) {
    %c0_i32 = arith.constant 0 : i32
    %c0_i32_0 = arith.constant 0 : i32
    %c0_i32_1 = arith.constant 0 : i32
    return %c0_i32, %c0_i32_0 : i32, i32
  }
  func.func @transform_3(%arg0: i32) -> (i32, i32) {
    %c0_i32 = arith.constant 0 : i32
    %c0_i32_0 = arith.constant 0 : i32
    %c0_i32_1 = arith.constant 0 : i32
    return %c0_i32, %c0_i32_0 : i32, i32
  }
  func.func @transform_4(%arg0: i32) -> (i32, i32) {
    %c0_i32 = arith.constant 0 : i32
    %c0_i32_0 = arith.constant 0 : i32
    %c0_i32_1 = arith.constant 0 : i32
    return %c0_i32, %c0_i32_0 : i32, i32
  }
  func.func @transform_5(%arg0: i32) -> (i32, i32) {
    %c0_i32 = arith.constant 0 : i32
    %c0_i32_0 = arith.constant 0 : i32
    %c0_i32_1 = arith.constant 0 : i32
    return %c0_i32, %c0_i32_0 : i32, i32
  }
}

module attributes {stable_mosaic.version = 11 : i64} {
  func.func @_linear_kernel(%arg0: i32, %arg1: memref<8x256xbf16, #tpu.memory_space<vmem>>, %arg2: memref<256x256xbf16, #tpu.memory_space<vmem>>, %arg3: memref<1x256xf32, #tpu.memory_space<vmem>>, %arg4: memref<8x256xf32, #tpu.memory_space<vmem>>) attributes {dimension_semantics = [#tpu.dimension_semantics<parallel>], iteration_bounds = array<i64: 1>, scalar_prefetch = 0 : i64, scratch_operands = 0 : i64, tpu.core_type = #tpu.core_type<tc>, window_params = [{pipeline_mode = #tpu.pipeline_mode<synchronous>, transform_indices = @transform_0, window_bounds = array<i64: 8, 256>}, {transform_indices = @transform_1, window_bounds = array<i64: 256, 256>}, {transform_indices = @transform_2, window_bounds = array<i64: 1, 256>}, {transform_indices = @transform_3, window_bounds = array<i64: 8, 256>}]} {
    %c0 = arith.constant 0 : index
    %c0_0 = arith.constant 0 : index
    %0 = vector.load %arg1[%c0, %c0_0] : memref<8x256xbf16, #tpu.memory_space<vmem>>, vector<8x256xbf16>
    %c0_1 = arith.constant 0 : index
    %c0_2 = arith.constant 0 : index
    %1 = vector.load %arg2[%c0_1, %c0_2] : memref<256x256xbf16, #tpu.memory_space<vmem>>, vector<256x256xbf16>
    %cst = arith.constant dense<0.000000e+00> : vector<8x256xf32>
    %2 = tpu.matmul %0, %1, %cst {dimension_numbers = #tpu.dot_dimension_numbers<[1], [0], [0], [1], [0, 0, 1, 1], [], []>} : vector<8x256xbf16>, vector<256x256xbf16>, vector<8x256xf32> -> vector<8x256xf32>
    %c0_3 = arith.constant 0 : index
    %c0_4 = arith.constant 0 : index
    %3 = vector.load %arg3[%c0_3, %c0_4] : memref<1x256xf32, #tpu.memory_space<vmem>>, vector<1x256xf32>
    %4 = vector.broadcast %3 : vector<1x256xf32> to vector<8x256xf32>
    %5 = arith.addf %2, %4 : vector<8x256xf32>
    %c0_5 = arith.constant 0 : index
    %c0_6 = arith.constant 0 : index
    %6 = vector.load %arg4[%c0_5, %c0_6] : memref<8x256xf32, #tpu.memory_space<vmem>>, vector<8x256xf32>
    tpu.vector_store %arg4[%c0_5, %c0_6], %5 {strides = array<i32>} : memref<8x256xf32, #tpu.memory_space<vmem>>, vector<8x256xf32>,
    return
  }
  func.func @transform_0(%arg0: i32) -> (i32, i32) {
    %c0_i32 = arith.constant 0 : i32
    %c0_i32_0 = arith.constant 0 : i32
    %c0_i32_1 = arith.constant 0 : i32
    return %c0_i32, %c0_i32_0 : i32, i32
  }
  func.func @transform_1(%arg0: i32) -> (i32, i32) {
    %c0_i32 = arith.constant 0 : i32
    %c0_i32_0 = arith.constant 0 : i32
    return %c0_i32, %arg0 : i32, i32
  }
  func.func @transform_2(%arg0: i32) -> (i32, i32) {
    %c0_i32 = arith.constant 0 : i32
    %c0_i32_0 = arith.constant 0 : i32
    return %c0_i32, %arg0 : i32, i32
  }
  func.func @transform_3(%arg0: i32) -> (i32, i32) {
    %c0_i32 = arith.constant 0 : i32
    %c0_i32_0 = arith.constant 0 : i32
    return %c0_i32, %arg0 : i32, i32
  }
}

</mosaic_0001>

<llo_original>
// kernel: custom-call.18
$region0: #{custom-call.18}
  %s0 = inlined_call_operand.vmem [shape: f32[2,64], index: 0, kind: output, shape index: {}]

// kernel: custom-call.19
$region0: #{custom-call.19}
  %s0 = inlined_call_operand.vmem [shape: f32[2,16], index: 0, kind: output, shape index: {}]

// kernel: _lambda_.6
$region0: #{_lambda_.6}
  #allocation0 [shape = 'u32[]', space=smem, size = 0x4, offset = 0x4, fixed_abs, tag = 'smem constant byte address 0x4 - core index']
  #allocation1 [shape = 'u32[144,128]{1,0:T(1,128)}', space=vmem, size = 0x12000, scoped, tag = 'internal scratch']
  %s0 = inlined_call_operand.vmem [shape: bf16[256,128], index: 0, kind: input, shape index: {}]
  %s1 = inlined_call_operand.vmem [shape: f32[32,8], index: 1, kind: input, shape index: {}]
  %s2 = inlined_call_operand.vmem [shape: bf16[128,128], index: 2, kind: input, shape index: {}]
  %s3 = inlined_call_operand.vmem [shape: f32[1,128], index: 3, kind: input, shape index: {}]
  %s4 = inlined_call_operand.vmem [shape: bf16[128,128], index: 4, kind: input, shape index: {}]
  %s5 = inlined_call_operand.vmem [shape: f32[1,128], index: 5, kind: input, shape index: {}]
  %s6 = inlined_call_operand.vmem [shape: bf16[128,128], index: 6, kind: input, shape index: {}]
  %s7 = inlined_call_operand.vmem [shape: f32[1,128], index: 7, kind: input, shape index: {}]
  %s8 = inlined_call_operand.vmem [shape: f32[32,128], index: 8, kind: output, shape index: {}]
  %s9 = sld [smem:[#allocation0]]
  $region42: #{_lambda_.6} parent=0
    _
  %s11 = ssub.s32 1, %s9
  %s12 = scalar_select 0, %s11, %s9
  // Predicated region
  $region2: #{_lambda_.6} parent=0 // pred_check
    _
  $region3: #{_lambda_.6} parent=0 // pred_check_branch
    %14 = sbr.rel (0) target = $region5
  $region4: #{_lambda_.6} parent=0 // pred_region
    _
  $region5: #{_lambda_.6} parent=0 // pred_fallthru
    _
  // Predicated region
  $region6: #{_lambda_.6} parent=0 // pred_check
    _
  $region7: #{_lambda_.6} parent=0 // pred_check_branch
    %16 = sbr.rel (0) target = $region9
  $region8: #{_lambda_.6} parent=0 // pred_region
    _
  $region9: #{_lambda_.6} parent=0 // pred_fallthru
    _
  // Predicated region
  $region10: #{_lambda_.6} parent=0 // pred_check
    _
  $region11: #{_lambda_.6} parent=0 // pred_check_branch
    %18 = sbr.rel (0) target = $region13
  $region12: #{_lambda_.6} parent=0 // pred_region
    _
  $region13: #{_lambda_.6} parent=0 // pred_fallthru
    _
  // Predicated region
  $region14: #{_lambda_.6} parent=0 // pred_check
    _
  $region15: #{_lambda_.6} parent=0 // pred_check_branch
    %20 = sbr.rel (0) target = $region17
  $region16: #{_lambda_.6} parent=0 // pred_region
    _
  $region17: #{_lambda_.6} parent=0 // pred_fallthru
    _
  // Predicated region
  $region18: #{_lambda_.6} parent=0 // pred_check
    _
  $region19: #{_lambda_.6} parent=0 // pred_check_branch
    %22 = sbr.rel (0) target = $region21
  $region20: #{_lambda_.6} parent=0 // pred_region
    _
  $region21: #{_lambda_.6} parent=0 // pred_fallthru
    _
  // Predicated region
  $region22: #{_lambda_.6} parent=0 // pred_check
    _
  $region23: #{_lambda_.6} parent=0 // pred_check_branch
    %24 = sbr.rel (0) target = $region25
  $region24: #{_lambda_.6} parent=0 // pred_region
    _
  $region25: #{_lambda_.6} parent=0 // pred_fallthru
    _
  // Predicated region
  $region26: #{_lambda_.6} parent=0 // pred_check
    _
  $region27: #{_lambda_.6} parent=0 // pred_check_branch
    %26 = sbr.rel (0) target = $region29
  $region28: #{_lambda_.6} parent=0 // pred_region
    _
  $region29: #{_lambda_.6} parent=0 // pred_fallthru
    _
  // Predicated region
  $region30: #{_lambda_.6} parent=0 // pred_check
    _
  $region31: #{_lambda_.6} parent=0 // pred_check_branch
    %28 = sbr.rel (0) target = $region33
  $region32: #{_lambda_.6} parent=0 // pred_region
    _
  $region33: #{_lambda_.6} parent=0 // pred_fallthru
    _
  %v30 = vld [vmem:[%s0] sm:$0xf]
  %v31 = vld [vmem:[%s0 + $0x4] sm:$0xf]
  %v32 = vld [vmem:[%s0 + $0x8] sm:$0xf]
  %v33 = vld [vmem:[%s0 + $0xc] sm:$0xf]
  %v34 = vld [vmem:[%s0 + $0x10] sm:$0xf]
  %v35 = vld [vmem:[%s0 + $0x14] sm:$0xf]
  %v36 = vld [vmem:[%s0 + $0x18] sm:$0xf]
  %v37 = vld [vmem:[%s0 + $0x1c] sm:$0xf]
  %v38 = vld [vmem:[%s0 + $0x20] sm:$0xf]
  %v39 = vld [vmem:[%s0 + $0x24] sm:$0xf]
  %v40 = vld [vmem:[%s0 + $0x28] sm:$0xf]
  %v41 = vld [vmem:[%s0 + $0x2c] sm:$0xf]
  %v42 = vld [vmem:[%s0 + $0x30] sm:$0xf]
  %v43 = vld [vmem:[%s0 + $0x34] sm:$0xf]
  %v44 = vld [vmem:[%s0 + $0x38] sm:$0xf]
  %v45 = vld [vmem:[%s0 + $0x3c] sm:$0xf]
  %v46 = vld [vmem:[%s0 + $0x40] sm:$0xf]
  %v47 = vld [vmem:[%s0 + $0x44] sm:$0xf]
  %v48 = vld [vmem:[%s0 + $0x48] sm:$0xf]
  %v49 = vld [vmem:[%s0 + $0x4c] sm:$0xf]
  %v50 = vld [vmem:[%s0 + $0x50] sm:$0xf]
  %v51 = vld [vmem:[%s0 + $0x54] sm:$0xf]
  %v52 = vld [vmem:[%s0 + $0x58] sm:$0xf]
  %v53 = vld [vmem:[%s0 + $0x5c] sm:$0xf]
  %v54 = vld [vmem:[%s0 + $0x60] sm:$0xf]
  %v55 = vld [vmem:[%s0 + $0x64] sm:$0xf]
  %v56 = vld [vmem:[%s0 + $0x68] sm:$0xf]
  %v57 = vld [vmem:[%s0 + $0x6c] sm:$0xf]
  %v58 = vld [vmem:[%s0 + $0x70] sm:$0xf]
  %v59 = vld [vmem:[%s0 + $0x74] sm:$0xf]
  %v60 = vld [vmem:[%s0 + $0x78] sm:$0xf]
  %v61 = vld [vmem:[%s0 + $0x7c] sm:$0xf]
  %v62 = vld [vmem:[%s2] sm:$0xf]
  %v63 = vld [vmem:[%s2 + $0x4] sm:$0xf]
  %v64 = vld [vmem:[%s2 + $0x8] sm:$0xf]
  %v65 = vld [vmem:[%s2 + $0xc] sm:$0xf]
  %v66 = vld [vmem:[%s2 + $0x10] sm:$0xf]
  %v67 = vld [vmem:[%s2 + $0x14] sm:$0xf]
  %v68 = vld [vmem:[%s2 + $0x18] sm:$0xf]
  %v69 = vld [vmem:[%s2 + $0x1c] sm:$0xf]
  %v70 = vld [vmem:[%s2 + $0x20] sm:$0xf]
  %v71 = vld [vmem:[%s2 + $0x24] sm:$0xf]
  %v72 = vld [vmem:[%s2 + $0x28] sm:$0xf]
  %v73 = vld [vmem:[%s2 + $0x2c] sm:$0xf]
  %v74 = vld [vmem:[%s2 + $0x30] sm:$0xf]
  %v75 = vld [vmem:[%s2 + $0x34] sm:$0xf]
  %v76 = vld [vmem:[%s2 + $0x38] sm:$0xf]
  %v77 = vld [vmem:[%s2 + $0x3c] sm:$0xf]
  %v78 = vld [vmem:[%s3] sm:$0x1]
  %v80 = vlaneseq
  %v81 = vshrl.u32 %v80, 7
  %v82 = vsub.s32 0, %v81
  %v83 = vrot.slane %v78, %v82
  %v117 = vunpack.c.l.b16 %v30
  %v118 = vunpack.c.l.b16 %v31
  %v119 = vunpack.c.l.b16 %v32
  %v120 = vunpack.c.l.b16 %v33
  %v121 = vunpack.c.l.b16 %v34
  %v122 = vunpack.c.l.b16 %v35
  %v123 = vunpack.c.l.b16 %v36
  %v124 = vunpack.c.l.b16 %v37
  %v125 = vunpack.c.l.b16 %v38
  %v126 = vunpack.c.l.b16 %v39
  %v127 = vunpack.c.l.b16 %v40
  %v128 = vunpack.c.l.b16 %v41
  %v129 = vunpack.c.l.b16 %v42
  %v130 = vunpack.c.l.b16 %v43
  %v131 = vunpack.c.l.b16 %v44
  %v132 = vunpack.c.l.b16 %v45
  %v133 = vunpack.c.l.b16 %v46
  %v134 = vunpack.c.l.b16 %v47
  %v135 = vunpack.c.l.b16 %v48
  %v136 = vunpack.c.l.b16 %v49
  %v137 = vunpack.c.l.b16 %v50
  %v138 = vunpack.c.l.b16 %v51
  %v139 = vunpack.c.l.b16 %v52
  %v140 = vunpack.c.l.b16 %v53
  %v141 = vunpack.c.l.b16 %v54
  %v142 = vunpack.c.l.b16 %v55
  %v143 = vunpack.c.l.b16 %v56
  %v144 = vunpack.c.l.b16 %v57
  %v145 = vunpack.c.l.b16 %v58
  %v146 = vunpack.c.l.b16 %v59
  %v147 = vunpack.c.l.b16 %v60
  %v148 = vunpack.c.l.b16 %v61
  %v149 = vpack.c.b16 %v118, %v117
  %v150 = vpack.c.b16 %v120, %v119
  %v151 = vpack.c.b16 %v122, %v121
  %v152 = vpack.c.b16 %v124, %v123
  %v153 = vpack.c.b16 %v126, %v125
  %v154 = vpack.c.b16 %v128, %v127
  %v155 = vpack.c.b16 %v130, %v129
  %v156 = vpack.c.b16 %v132, %v131
  %v157 = vpack.c.b16 %v134, %v133
  %v158 = vpack.c.b16 %v136, %v135
  %v159 = vpack.c.b16 %v138, %v137
  %v160 = vpack.c.b16 %v140, %v139
  %v161 = vpack.c.b16 %v142, %v141
  %v162 = vpack.c.b16 %v144, %v143
  %v163 = vpack.c.b16 %v146, %v145
  %v164 = vpack.c.b16 %v148, %v147
  %v197 = vunpack.c.l.b16 %v62
  %v198 = vunpack.c.l.b16 %v63
  %v199 = vunpack.c.l.b16 %v64
  %v200 = vunpack.c.l.b16 %v65
  %v201 = vunpack.c.l.b16 %v66
  %v202 = vunpack.c.l.b16 %v67
  %v203 = vunpack.c.l.b16 %v68
  %v204 = vunpack.c.l.b16 %v69
  %v205 = vunpack.c.l.b16 %v70
  %v206 = vunpack.c.l.b16 %v71
  %v207 = vunpack.c.l.b16 %v72
  %v208 = vunpack.c.l.b16 %v73
  %v209 = vunpack.c.l.b16 %v74
  %v210 = vunpack.c.l.b16 %v75
  %v211 = vunpack.c.l.b16 %v76
  %v212 = vunpack.c.l.b16 %v77
  %v213 = vpack.c.b16 %v198, %v197
  %v214 = vpack.c.b16 %v200, %v199
  %v215 = vpack.c.b16 %v202, %v201
  %v216 = vpack.c.b16 %v204, %v203
  %v217 = vpack.c.b16 %v206, %v205
  %v218 = vpack.c.b16 %v208, %v207
  %v219 = vpack.c.b16 %v210, %v209
  %v220 = vpack.c.b16 %v212, %v211
  %229 = vmatprep.subr.bf16.mxu0 0
  %230 = vmatpush1.bf16.msra.mxu0 %v213
  %231 = vmatprep.subr.bf16.mxu0 0
  %232 = vmatpush1.bf16.msra.mxu0 %v214
  %233 = vmatprep.subr.bf16.mxu0 0
  %234 = vmatpush1.bf16.msra.mxu0 %v215
  %235 = vmatprep.subr.bf16.mxu0 0
  %236 = vmatpush1.bf16.msra.mxu0 %v216
  %237 = vmatprep.subr.bf16.mxu0 0
  %238 = vmatpush1.bf16.msra.mxu0 %v217
  %239 = vmatprep.subr.bf16.mxu0 0
  %240 = vmatpush1.bf16.msra.mxu0 %v218
  %241 = vmatprep.subr.bf16.mxu0 0
  %242 = vmatpush1.bf16.msra.mxu0 %v219
  %243 = vmatprep.subr.bf16.mxu0 0
  %244 = vmatpush1.bf16.msra.mxu0 %v220
  %245 = vmatprep.subr.bf16.mxu0 0
  %246 = vmatpush1.bf16.msra.mxu0 0
  %247 = vmatprep.subr.bf16.mxu0 0
  %248 = vmatpush1.bf16.msra.mxu0 0
  %249 = vmatprep.subr.bf16.mxu0 0
  %250 = vmatpush1.bf16.msra.mxu0 0
  %251 = vmatprep.subr.bf16.mxu0 0
  %252 = vmatpush1.bf16.msra.mxu0 0
  %253 = vmatprep.subr.bf16.mxu0 0
  %254 = vmatpush1.bf16.msra.mxu0 0
  %255 = vmatprep.subr.bf16.mxu0 0
  %256 = vmatpush1.bf16.msra.mxu0 0
  %257 = vmatprep.subr.bf16.mxu0 0
  %258 = vmatpush1.bf16.msra.mxu0 0
  %259 = vmatprep.subr.bf16.mxu0 0
  %260 = vmatpush1.bf16.msra.mxu0 0
  %261 = vmatprep.mubr.bf16.mxu0 0
  %262 = vmatmul.mubr.bf16.gmra.mrb[0].mxu0 %v149
  %v263 = vpop.f32.mrb[0].mxu0
  %v264 = vadd.f32 %v83, %v263
  %v265 = vpop.f32.mrb[0].mxu0
  %v266 = vpop.f32.mrb[0].mxu0
  %v267 = vadd.f32 %v83, %v266
  %v268 = vpop.f32.mrb[0].mxu0
  %269 = vmatprep.mubr.bf16.mxu0 0
  %270 = vmatmul.mubr.bf16.gmra.mrb[0].mxu0 %v150
  %v271 = vpop.f32.mrb[0].mxu0
  %v272 = vadd.f32 %v83, %v271
  %v273 = vpop.f32.mrb[0].mxu0
  %v274 = vpop.f32.mrb[0].mxu0
  %v275 = vadd.f32 %v83, %v274
  %v276 = vpop.f32.mrb[0].mxu0
  %277 = vmatprep.mubr.bf16.mxu0 0
  %278 = vmatmul.mubr.bf16.gmra.mrb[0].mxu0 %v151
  %v279 = vpop.f32.mrb[0].mxu0
  %v280 = vadd.f32 %v83, %v279
  %v281 = vpop.f32.mrb[0].mxu0
  %v282 = vpop.f32.mrb[0].mxu0
  %v283 = vadd.f32 %v83, %v282
  %v284 = vpop.f32.mrb[0].mxu0
  %285 = vmatprep.mubr.bf16.mxu0 0
  %286 = vmatmul.mubr.bf16.gmra.mrb[0].mxu0 %v152
  %v287 = vpop.f32.mrb[0].mxu0
  %v288 = vadd.f32 %v83, %v287
  %v289 = vpop.f32.mrb[0].mxu0
  %v290 = vpop.f32.mrb[0].mxu0
  %v291 = vadd.f32 %v83, %v290
  %v292 = vpop.f32.mrb[0].mxu0
  %293 = vmatprep.mubr.bf16.mxu0 0
  %294 = vmatmul.mubr.bf16.gmra.mrb[0].mxu0 %v153
  %v295 = vpop.f32.mrb[0].mxu0
  %v296 = vadd.f32 %v83, %v295
  %v297 = vpop.f32.mrb[0].mxu0
  %v298 = vpop.f32.mrb[0].mxu0
  %v299 = vadd.f32 %v83, %v298
  %v300 = vpop.f32.mrb[0].mxu0
  %301 = vmatprep.mubr.bf16.mxu0 0
  %302 = vmatmul.mubr.bf16.gmra.mrb[0].mxu0 %v154
  %v303 = vpop.f32.mrb[0].mxu0
  %v304 = vadd.f32 %v83, %v303
  %v305 = vpop.f32.mrb[0].mxu0
  %v306 = vpop.f32.mrb[0].mxu0
  %v307 = vadd.f32 %v83, %v306
  %v308 = vpop.f32.mrb[0].mxu0
  %309 = vmatprep.mubr.bf16.mxu0 0
  %310 = vmatmul.mubr.bf16.gmra.mrb[0].mxu0 %v155
  %v311 = vpop.f32.mrb[0].mxu0
  %v312 = vadd.f32 %v83, %v311
  %v313 = vpop.f32.mrb[0].mxu0
  %v314 = vpop.f32.mrb[0].mxu0
  %v315 = vadd.f32 %v83, %v314
  %v316 = vpop.f32.mrb[0].mxu0
  %317 = vmatprep.mubr.bf16.mxu0 0
  %318 = vmatmul.mubr.bf16.gmra.mrb[0].mxu0 %v156
  %v319 = vpop.f32.mrb[0].mxu0
  %v320 = vadd.f32 %v83, %v319
  %v321 = vpop.f32.mrb[0].mxu0
  %v322 = vpop.f32.mrb[0].mxu0
  %v323 = vadd.f32 %v83, %v322
  %v324 = vpop.f32.mrb[0].mxu0
  %325 = vmatprep.mubr.bf16.mxu0 0
  %326 = vmatmul.mubr.bf16.gmra.mrb[0].mxu0 %v157
  %v327 = vpop.f32.mrb[0].mxu0
  %v328 = vadd.f32 %v83, %v327
  %v329 = vpop.f32.mrb[0].mxu0
  %v330 = vpop.f32.mrb[0].mxu0
  %v331 = vadd.f32 %v83, %v330
  %v332 = vpop.f32.mrb[0].mxu0
  %333 = vmatprep.mubr.bf16.mxu0 0
  %334 = vmatmul.mubr.bf16.gmra.mrb[0].mxu0 %v158
  %v335 = vpop.f32.mrb[0].mxu0
  %v336 = vadd.f32 %v83, %v335
  %v337 = vpop.f32.mrb[0].mxu0
  %v338 = vpop.f32.mrb[0].mxu0
  %v339 = vadd.f32 %v83, %v338
  %v340 = vpop.f32.mrb[0].mxu0
  %341 = vmatprep.mubr.bf16.mxu0 0
  %342 = vmatmul.mubr.bf16.gmra.mrb[0].mxu0 %v159
  %v343 = vpop.f32.mrb[0].mxu0
  %v344 = vadd.f32 %v83, %v343
  %v345 = vpop.f32.mrb[0].mxu0
  %v346 = vpop.f32.mrb[0].mxu0
  %v347 = vadd.f32 %v83, %v346
  %v348 = vpop.f32.mrb[0].mxu0
  %349 = vmatprep.mubr.bf16.mxu0 0
  %350 = vmatmul.mubr.bf16.gmra.mrb[0].mxu0 %v160
  %v351 = vpop.f32.mrb[0].mxu0
  %v352 = vadd.f32 %v83, %v351
  %v353 = vpop.f32.mrb[0].mxu0
  %v354 = vpop.f32.mrb[0].mxu0
  %v355 = vadd.f32 %v83, %v354
  %v356 = vpop.f32.mrb[0].mxu0
  %357 = vmatprep.mubr.bf16.mxu0 0
  %358 = vmatmul.mubr.bf16.gmra.mrb[0].mxu0 %v161
  %v359 = vpop.f32.mrb[0].mxu0
  %v360 = vadd.f32 %v83, %v359
  %v361 = vpop.f32.mrb[0].mxu0
  %v362 = vpop.f32.mrb[0].mxu0
  %v363 = vadd.f32 %v83, %v362
  %v364 = vpop.f32.mrb[0].mxu0
  %365 = vmatprep.mubr.bf16.mxu0 0
  %366 = vmatmul.mubr.bf16.gmra.mrb[0].mxu0 %v162
  %v367 = vpop.f32.mrb[0].mxu0
  %v368 = vadd.f32 %v83, %v367
  %v369 = vpop.f32.mrb[0].mxu0
  %v370 = vpop.f32.mrb[0].mxu0
  %v371 = vadd.f32 %v83, %v370
  %v372 = vpop.f32.mrb[0].mxu0
  %373 = vmatprep.mubr.bf16.mxu0 0
  %374 = vmatmul.mubr.bf16.gmra.mrb[0].mxu0 %v163
  %v375 = vpop.f32.mrb[0].mxu0
  %v376 = vadd.f32 %v83, %v375
  %v377 = vpop.f32.mrb[0].mxu0
  %v378 = vpop.f32.mrb[0].mxu0
  %v379 = vadd.f32 %v83, %v378
  %v380 = vpop.f32.mrb[0].mxu0
  %381 = vmatprep.mubr.bf16.mxu0 0
  %382 = vmatmul.mubr.bf16.gmra.mrb[0].mxu0 %v164
  %v383 = vpop.f32.mrb[0].mxu0
  %v384 = vadd.f32 %v83, %v383
  %v385 = vpop.f32.mrb[0].mxu0
  %v386 = vpop.f32.mrb[0].mxu0
  %v387 = vadd.f32 %v83, %v386
  %v388 = vpop.f32.mrb[0].mxu0
  %389 = vdwg.mxu0
  %v390 = vmax.f32 %v264, 0.0
  %v391 = vmax.f32 %v267, 0.0
  %v392 = vmax.f32 %v272, 0.0
  %v393 = vmax.f32 %v275, 0.0
  %v394 = vmax.f32 %v280, 0.0
  %v395 = vmax.f32 %v283, 0.0
  %v396 = vmax.f32 %v288, 0.0
  %v397 = vmax.f32 %v291, 0.0
  %v398 = vmax.f32 %v296, 0.0
  %v399 = vmax.f32 %v299, 0.0
  %v400 = vmax.f32 %v304, 0.0
  %v401 = vmax.f32 %v307, 0.0
  %v402 = vmax.f32 %v312, 0.0
  %v403 = vmax.f32 %v315, 0.0
  %v404 = vmax.f32 %v320, 0.0
  %v405 = vmax.f32 %v323, 0.0
  %v406 = vmax.f32 %v328, 0.0
  %v407 = vmax.f32 %v331, 0.0
  %v408 = vmax.f32 %v336, 0.0
  %v409 = vmax.f32 %v339, 0.0
  %v410 = vmax.f32 %v344, 0.0
  %v411 = vmax.f32 %v347, 0.0
  %v412 = vmax.f32 %v352, 0.0
  %v413 = vmax.f32 %v355, 0.0
  %v414 = vmax.f32 %v360, 0.0
  %v415 = vmax.f32 %v363, 0.0
  %v416 = vmax.f32 %v368, 0.0
  %v417 = vmax.f32 %v371, 0.0
  %v418 = vmax.f32 %v376, 0.0
  %v419 = vmax.f32 %v379, 0.0
  %v420 = vmax.f32 %v384, 0.0
  %v421 = vmax.f32 %v387, 0.0
  %v422 = vpack.c.bf16 %v391, %v390
  %v423 = vpack.c.bf16 %v393, %v392
  %v424 = vpack.c.bf16 %v395, %v394
  %v425 = vpack.c.bf16 %v397, %v396
  %v426 = vpack.c.bf16 %v399, %v398
  %v427 = vpack.c.bf16 %v401, %v400
  %v428 = vpack.c.bf16 %v403, %v402
  %v429 = vpack.c.bf16 %v405, %v404
  %v430 = vpack.c.bf16 %v407, %v406
  %v431 = vpack.c.bf16 %v409, %v408
  %v432 = vpack.c.bf16 %v411, %v410
  %v433 = vpack.c.bf16 %v413, %v412
  %v434 = vpack.c.bf16 %v415, %v414
  %v435 = vpack.c.bf16 %v417, %v416
  %v436 = vpack.c.bf16 %v419, %v418
  %v437 = vpack.c.bf16 %v421, %v420
  %v438 = vld [vmem:[%s4] sm:$0xf]
  %v439 = vld [vmem:[%s4 + $0x4] sm:$0xf]
  %v440 = vld [vmem:[%s4 + $0x8] sm:$0xf]
  %v441 = vld [vmem:[%s4 + $0xc] sm:$0xf]
  %v442 = vld [vmem:[%s4 + $0x10] sm:$0xf]
  %v443 = vld [vmem:[%s4 + $0x14] sm:$0xf]
  %v444 = vld [vmem:[%s4 + $0x18] sm:$0xf]
  %v445 = vld [vmem:[%s4 + $0x1c] sm:$0xf]
  %v446 = vld [vmem:[%s4 + $0x20] sm:$0xf]
  %v447 = vld [vmem:[%s4 + $0x24] sm:$0xf]
  %v448 = vld [vmem:[%s4 + $0x28] sm:$0xf]
  %v449 = vld [vmem:[%s4 + $0x2c] sm:$0xf]
  %v450 = vld [vmem:[%s4 + $0x30] sm:$0xf]
  %v451 = vld [vmem:[%s4 + $0x34] sm:$0xf]
  %v452 = vld [vmem:[%s4 + $0x38] sm:$0xf]
  %v453 = vld [vmem:[%s4 + $0x3c] sm:$0xf]
  %v454 = vld [vmem:[%s5] sm:$0x1]
  %v456 = vlaneseq
  %v457 = vshrl.u32 %v456, 7
  %v458 = vsub.s32 0, %v457
  %v459 = vrot.slane %v454, %v458
  %v477 = vunpack.c.l.b16 %v438
  %v478 = vunpack.c.l.b16 %v439
  %v479 = vunpack.c.l.b16 %v440
  %v480 = vunpack.c.l.b16 %v441
  %v481 = vunpack.c.l.b16 %v442
  %v482 = vunpack.c.l.b16 %v443
  %v483 = vunpack.c.l.b16 %v444
  %v484 = vunpack.c.l.b16 %v445
  %v485 = vunpack.c.l.b16 %v446
  %v486 = vunpack.c.l.b16 %v447
  %v487 = vunpack.c.l.b16 %v448
  %v488 = vunpack.c.l.b16 %v449
  %v489 = vunpack.c.l.b16 %v450
  %v490 = vunpack.c.l.b16 %v451
  %v491 = vunpack.c.l.b16 %v452
  %v492 = vunpack.c.l.b16 %v453
  %v493 = vpack.c.b16 %v478, %v477
  %v494 = vpack.c.b16 %v480, %v479
  %v495 = vpack.c.b16 %v482, %v481
  %v496 = vpack.c.b16 %v484, %v483
  %v497 = vpack.c.b16 %v486, %v485
  %v498 = vpack.c.b16 %v488, %v487
  %v499 = vpack.c.b16 %v490, %v489
  %v500 = vpack.c.b16 %v492, %v491
  %509 = vmatprep.subr.bf16.mxu0 0
  %510 = vmatpush1.bf16.msra.mxu0 %v493
  %511 = vmatprep.subr.bf16.mxu0 0
  %512 = vmatpush1.bf16.msra.mxu0 %v494
  %513 = vmatprep.subr.bf16.mxu0 0
  %514 = vmatpush1.bf16.msra.mxu0 %v495
  %515 = vmatprep.subr.bf16.mxu0 0
  %516 = vmatpush1.bf16.msra.mxu0 %v496
  %517 = vmatprep.subr.bf16.mxu0 0
  %518 = vmatpush1.bf16.msra.mxu0 %v497
  %519 = vmatprep.subr.bf16.mxu0 0
  %520 = vmatpush1.bf16.msra.mxu0 %v498
  %521 = vmatprep.subr.bf16.mxu0 0
  %522 = vmatpush1.bf16.msra.mxu0 %v499
  %523 = vmatprep.subr.bf16.mxu0 0
  %524 = vmatpush1.bf16.msra.mxu0 %v500
  %525 = vmatprep.subr.bf16.mxu0 0
  %526 = vmatpush1.bf16.msra.mxu0 0
  %527 = vmatprep.subr.bf16.mxu0 0
  %528 = vmatpush1.bf16.msra.mxu0 0
  %529 = vmatprep.subr.bf16.mxu0 0
  %530 = vmatpush1.bf16.msra.mxu0 0
  %531 = vmatprep.subr.bf16.mxu0 0
  %532 = vmatpush1.bf16.msra.mxu0 0
  %533 = vmatprep.subr.bf16.mxu0 0
  %534 = vmatpush1.bf16.msra.mxu0 0
  %535 = vmatprep.subr.bf16.mxu0 0
  %536 = vmatpush1.bf16.msra.mxu0 0
  %537 = vmatprep.subr.bf16.mxu0 0
  %538 = vmatpush1.bf16.msra.mxu0 0
  %539 = vmatprep.subr.bf16.mxu0 0
  %540 = vmatpush1.bf16.msra.mxu0 0
  %541 = vmatprep.mubr.bf16.mxu0 0
  %542 = vmatmul.mubr.bf16.gmra.mrb[0].mxu0 %v422
  %v543 = vpop.f32.mrb[0].mxu0
  %v544 = vadd.f32 %v459, %v543
  %v545 = vpop.f32.mrb[0].mxu0
  %v546 = vpop.f32.mrb[0].mxu0
  %v547 = vadd.f32 %v459, %v546
  %v548 = vpop.f32.mrb[0].mxu0
  %549 = vmatprep.mubr.bf16.mxu0 0
  %550 = vmatmul.mubr.bf16.gmra.mrb[0].mxu0 %v423
  %v551 = vpop.f32.mrb[0].mxu0
  %v552 = vadd.f32 %v459, %v551
  %v553 = vpop.f32.mrb[0].mxu0
  %v554 = vpop.f32.mrb[0].mxu0
  %v555 = vadd.f32 %v459, %v554
  %v556 = vpop.f32.mrb[0].mxu0
  %557 = vmatprep.mubr.bf16.mxu0 0
  %558 = vmatmul.mubr.bf16.gmra.mrb[0].mxu0 %v424
  %v559 = vpop.f32.mrb[0].mxu0
  %v560 = vadd.f32 %v459, %v559
  %v561 = vpop.f32.mrb[0].mxu0
  %v562 = vpop.f32.mrb[0].mxu0
  %v563 = vadd.f32 %v459, %v562
  %v564 = vpop.f32.mrb[0].mxu0
  %565 = vmatprep.mubr.bf16.mxu0 0
  %566 = vmatmul.mubr.bf16.gmra.mrb[0].mxu0 %v425
  %v567 = vpop.f32.mrb[0].mxu0
  %v568 = vadd.f32 %v459, %v567
  %v569 = vpop.f32.mrb[0].mxu0
  %v570 = vpop.f32.mrb[0].mxu0
  %v571 = vadd.f32 %v459, %v570
  %v572 = vpop.f32.mrb[0].mxu0
  %573 = vmatprep.mubr.bf16.mxu0 0
  %574 = vmatmul.mubr.bf16.gmra.mrb[0].mxu0 %v426
  %v575 = vpop.f32.mrb[0].mxu0
  %v576 = vadd.f32 %v459, %v575
  %v577 = vpop.f32.mrb[0].mxu0
  %v578 = vpop.f32.mrb[0].mxu0
  %v579 = vadd.f32 %v459, %v578
  %v580 = vpop.f32.mrb[0].mxu0
  %581 = vmatprep.mubr.bf16.mxu0 0
  %582 = vmatmul.mubr.bf16.gmra.mrb[0].mxu0 %v427
  %v583 = vpop.f32.mrb[0].mxu0
  %v584 = vadd.f32 %v459, %v583
  %v585 = vpop.f32.mrb[0].mxu0
  %v586 = vpop.f32.mrb[0].mxu0
  %v587 = vadd.f32 %v459, %v586
  %v588 = vpop.f32.mrb[0].mxu0
  %589 = vmatprep.mubr.bf16.mxu0 0
  %590 = vmatmul.mubr.bf16.gmra.mrb[0].mxu0 %v428
  %v591 = vpop.f32.mrb[0].mxu0
  %v592 = vadd.f32 %v459, %v591
  %v593 = vpop.f32.mrb[0].mxu0
  %v594 = vpop.f32.mrb[0].mxu0
  %v595 = vadd.f32 %v459, %v594
  %v596 = vpop.f32.mrb[0].mxu0
  %597 = vmatprep.mubr.bf16.mxu0 0
  %598 = vmatmul.mubr.bf16.gmra.mrb[0].mxu0 %v429
  %v599 = vpop.f32.mrb[0].mxu0
  %v600 = vadd.f32 %v459, %v599
  %v601 = vpop.f32.mrb[0].mxu0
  %v602 = vpop.f32.mrb[0].mxu0
  %v603 = vadd.f32 %v459, %v602
  %v604 = vpop.f32.mrb[0].mxu0
  %605 = vmatprep.mubr.bf16.mxu0 0
  %606 = vmatmul.mubr.bf16.gmra.mrb[0].mxu0 %v430
  %v607 = vpop.f32.mrb[0].mxu0
  %v608 = vadd.f32 %v459, %v607
  %v609 = vpop.f32.mrb[0].mxu0
  %v610 = vpop.f32.mrb[0].mxu0
  %v611 = vadd.f32 %v459, %v610
  %v612 = vpop.f32.mrb[0].mxu0
  %613 = vmatprep.mubr.bf16.mxu0 0
  %614 = vmatmul.mubr.bf16.gmra.mrb[0].mxu0 %v431
  %v615 = vpop.f32.mrb[0].mxu0
  %v616 = vadd.f32 %v459, %v615
  %v617 = vpop.f32.mrb[0].mxu0
  %v618 = vpop.f32.mrb[0].mxu0
  %v619 = vadd.f32 %v459, %v618
  %v620 = vpop.f32.mrb[0].mxu0
  %621 = vmatprep.mubr.bf16.mxu0 0
  %622 = vmatmul.mubr.bf16.gmra.mrb[0].mxu0 %v432
  %v623 = vpop.f32.mrb[0].mxu0
  %v624 = vadd.f32 %v459, %v623
  %v625 = vpop.f32.mrb[0].mxu0
  %v626 = vpop.f32.mrb[0].mxu0
  %v627 = vadd.f32 %v459, %v626
  %v628 = vpop.f32.mrb[0].mxu0
  %629 = vmatprep.mubr.bf16.mxu0 0
  %630 = vmatmul.mubr.bf16.gmra.mrb[0].mxu0 %v433
  %v631 = vpop.f32.mrb[0].mxu0
  %v632 = vadd.f32 %v459, %v631
  %v633 = vpop.f32.mrb[0].mxu0
  %v634 = vpop.f32.mrb[0].mxu0
  %v635 = vadd.f32 %v459, %v634
  %v636 = vpop.f32.mrb[0].mxu0
  %637 = vmatprep.mubr.bf16.mxu0 0
  %638 = vmatmul.mubr.bf16.gmra.mrb[0].mxu0 %v434
  %v639 = vpop.f32.mrb[0].mxu0
  %v640 = vadd.f32 %v459, %v639
  %v641 = vpop.f32.mrb[0].mxu0
  %v642 = vpop.f32.mrb[0].mxu0
  %v643 = vadd.f32 %v459, %v642
  %v644 = vpop.f32.mrb[0].mxu0
  %645 = vmatprep.mubr.bf16.mxu0 0
  %646 = vmatmul.mubr.bf16.gmra.mrb[0].mxu0 %v435
  %v647 = vpop.f32.mrb[0].mxu0
  %v648 = vadd.f32 %v459, %v647
  %v649 = vpop.f32.mrb[0].mxu0
  %v650 = vpop.f32.mrb[0].mxu0
  %v651 = vadd.f32 %v459, %v650
  %v652 = vpop.f32.mrb[0].mxu0
  %653 = vmatprep.mubr.bf16.mxu0 0
  %654 = vmatmul.mubr.bf16.gmra.mrb[0].mxu0 %v436
  %v655 = vpop.f32.mrb[0].mxu0
  %v656 = vadd.f32 %v459, %v655
  %v657 = vpop.f32.mrb[0].mxu0
  %v658 = vpop.f32.mrb[0].mxu0
  %v659 = vadd.f32 %v459, %v658
  %v660 = vpop.f32.mrb[0].mxu0
  %661 = vmatprep.mubr.bf16.mxu0 0
  %662 = vmatmul.mubr.bf16.gmra.mrb[0].mxu0 %v437
  %v663 = vpop.f32.mrb[0].mxu0
  %v664 = vadd.f32 %v459, %v663
  %v665 = vpop.f32.mrb[0].mxu0
  %v666 = vpop.f32.mrb[0].mxu0
  %v667 = vadd.f32 %v459, %v666
  %v668 = vpop.f32.mrb[0].mxu0
  %669 = vdwg.mxu0
  %v670 = vmax.f32 %v544, 0.0
  %v671 = vmax.f32 %v547, 0.0
  %v672 = vmax.f32 %v552, 0.0
  %v673 = vmax.f32 %v555, 0.0
  %v674 = vmax.f32 %v560, 0.0
  %v675 = vmax.f32 %v563, 0.0
  %v676 = vmax.f32 %v568, 0.0
  %v677 = vmax.f32 %v571, 0.0
  %v678 = vmax.f32 %v576, 0.0
  %v679 = vmax.f32 %v579, 0.0
  %v680 = vmax.f32 %v584, 0.0
  %v681 = vmax.f32 %v587, 0.0
  %v682 = vmax.f32 %v592, 0.0
  %v683 = vmax.f32 %v595, 0.0
  %v684 = vmax.f32 %v600, 0.0
  %v685 = vmax.f32 %v603, 0.0
  %v686 = vmax.f32 %v608, 0.0
  %v687 = vmax.f32 %v611, 0.0
  %v688 = vmax.f32 %v616, 0.0
  %v689 = vmax.f32 %v619, 0.0
  %v690 = vmax.f32 %v624, 0.0
  %v691 = vmax.f32 %v627, 0.0
  %v692 = vmax.f32 %v632, 0.0
  %v693 = vmax.f32 %v635, 0.0
  %v694 = vmax.f32 %v640, 0.0
  %v695 = vmax.f32 %v643, 0.0
  %v696 = vmax.f32 %v648, 0.0
  %v697 = vmax.f32 %v651, 0.0
  %v698 = vmax.f32 %v656, 0.0
  %v699 = vmax.f32 %v659, 0.0
  %v700 = vmax.f32 %v664, 0.0
  %v701 = vmax.f32 %v667, 0.0
  %v702 = vpack.c.bf16 %v671, %v670
  %v703 = vpack.c.bf16 %v673, %v672
  %v704 = vpack.c.bf16 %v675, %v674
  %v705 = vpack.c.bf16 %v677, %v676
  %v706 = vpack.c.bf16 %v679, %v678
  %v707 = vpack.c.bf16 %v681, %v680
  %v708 = vpack.c.bf16 %v683, %v682
  %v709 = vpack.c.bf16 %v685, %v684
  %v710 = vpack.c.bf16 %v687, %v686
  %v711 = vpack.c.bf16 %v689, %v688
  %v712 = vpack.c.bf16 %v691, %v690
  %v713 = vpack.c.bf16 %v693, %v692
  %v714 = vpack.c.bf16 %v695, %v694
  %v715 = vpack.c.bf16 %v697, %v696
  %v716 = vpack.c.bf16 %v699, %v698
  %v717 = vpack.c.bf16 %v701, %v700
  %v718 = vld [vmem:[%s6] sm:$0xf]
  %v719 = vld [vmem:[%s6 + $0x4] sm:$0xf]
  %v720 = vld [vmem:[%s6 + $0x8] sm:$0xf]
  %v721 = vld [vmem:[%s6 + $0xc] sm:$0xf]
  %v722 = vld [vmem:[%s6 + $0x10] sm:$0xf]
  %v723 = vld [vmem:[%s6 + $0x14] sm:$0xf]
  %v724 = vld [vmem:[%s6 + $0x18] sm:$0xf]
  %v725 = vld [vmem:[%s6 + $0x1c] sm:$0xf]
  %v726 = vld [vmem:[%s6 + $0x20] sm:$0xf]
  %v727 = vld [vmem:[%s6 + $0x24] sm:$0xf]
  %v728 = vld [vmem:[%s6 + $0x28] sm:$0xf]
  %v729 = vld [vmem:[%s6 + $0x2c] sm:$0xf]
  %v730 = vld [vmem:[%s6 + $0x30] sm:$0xf]
  %v731 = vld [vmem:[%s6 + $0x34] sm:$0xf]
  %v732 = vld [vmem:[%s6 + $0x38] sm:$0xf]
  %v733 = vld [vmem:[%s6 + $0x3c] sm:$0xf]
  %v734 = vld [vmem:[%s7] sm:$0x1]
  %v736 = vlaneseq
  %v737 = vshrl.u32 %v736, 7
  %v738 = vsub.s32 0, %v737
  %v739 = vrot.slane %v734, %v738
  %v757 = vunpack.c.l.b16 %v718
  %v758 = vunpack.c.l.b16 %v719
  %v759 = vunpack.c.l.b16 %v720
  %v760 = vunpack.c.l.b16 %v721
  %v761 = vunpack.c.l.b16 %v722
  %v762 = vunpack.c.l.b16 %v723
  %v763 = vunpack.c.l.b16 %v724
  %v764 = vunpack.c.l.b16 %v725
  %v765 = vunpack.c.l.b16 %v726
  %v766 = vunpack.c.l.b16 %v727
  %v767 = vunpack.c.l.b16 %v728
  %v768 = vunpack.c.l.b16 %v729
  %v769 = vunpack.c.l.b16 %v730
  %v770 = vunpack.c.l.b16 %v731
  %v771 = vunpack.c.l.b16 %v732
  %v772 = vunpack.c.l.b16 %v733
  %v773 = vpack.c.b16 %v758, %v757
  %v774 = vpack.c.b16 %v760, %v759
  %v775 = vpack.c.b16 %v762, %v761
  %v776 = vpack.c.b16 %v764, %v763
  %v777 = vpack.c.b16 %v766, %v765
  %v778 = vpack.c.b16 %v768, %v767
  %v779 = vpack.c.b16 %v770, %v769
  %v780 = vpack.c.b16 %v772, %v771
  %789 = vmatprep.subr.bf16.mxu0 0
  %790 = vmatpush1.bf16.msra.mxu0 %v773
  %791 = vmatprep.subr.bf16.mxu0 0
  %792 = vmatpush1.bf16.msra.mxu0 %v774
  %793 = vmatprep.subr.bf16.mxu0 0
  %794 = vmatpush1.bf16.msra.mxu0 %v775
  %795 = vmatprep.subr.bf16.mxu0 0
  %796 = vmatpush1.bf16.msra.mxu0 %v776
  %797 = vmatprep.subr.bf16.mxu0 0
  %798 = vmatpush1.bf16.msra.mxu0 %v777
  %799 = vmatprep.subr.bf16.mxu0 0
  %800 = vmatpush1.bf16.msra.mxu0 %v778
  %801 = vmatprep.subr.bf16.mxu0 0
  %802 = vmatpush1.bf16.msra.mxu0 %v779
  %803 = vmatprep.subr.bf16.mxu0 0
  %804 = vmatpush1.bf16.msra.mxu0 %v780
  %805 = vmatprep.subr.bf16.mxu0 0
  %806 = vmatpush1.bf16.msra.mxu0 0
  %807 = vmatprep.subr.bf16.mxu0 0
  %808 = vmatpush1.bf16.msra.mxu0 0
  %809 = vmatprep.subr.bf16.mxu0 0
  %810 = vmatpush1.bf16.msra.mxu0 0
  %811 = vmatprep.subr.bf16.mxu0 0
  %812 = vmatpush1.bf16.msra.mxu0 0
  %813 = vmatprep.subr.bf16.mxu0 0
  %814 = vmatpush1.bf16.msra.mxu0 0
  %815 = vmatprep.subr.bf16.mxu0 0
  %816 = vmatpush1.bf16.msra.mxu0 0
  %817 = vmatprep.subr.bf16.mxu0 0
  %818 = vmatpush1.bf16.msra.mxu0 0
  %819 = vmatprep.subr.bf16.mxu0 0
  %820 = vmatpush1.bf16.msra.mxu0 0
  %821 = vmatprep.mubr.bf16.mxu0 0
  %822 = vmatmul.mubr.bf16.gmra.mrb[0].mxu0 %v702
  %v823 = vpop.f32.mrb[0].mxu0
  %v824 = vadd.f32 %v739, %v823
  %v825 = vpop.f32.mrb[0].mxu0
  %v826 = vpop.f32.mrb[0].mxu0
  %v827 = vadd.f32 %v739, %v826
  %v828 = vpop.f32.mrb[0].mxu0
  %829 = vmatprep.mubr.bf16.mxu0 0
  %830 = vmatmul.mubr.bf16.gmra.mrb[0].mxu0 %v703
  %v831 = vpop.f32.mrb[0].mxu0
  %v832 = vadd.f32 %v739, %v831
  %v833 = vpop.f32.mrb[0].mxu0
  %v834 = vpop.f32.mrb[0].mxu0
  %v835 = vadd.f32 %v739, %v834
  %v836 = vpop.f32.mrb[0].mxu0
  %837 = vmatprep.mubr.bf16.mxu0 0
  %838 = vmatmul.mubr.bf16.gmra.mrb[0].mxu0 %v704
  %v839 = vpop.f32.mrb[0].mxu0
  %v840 = vadd.f32 %v739, %v839
  %v841 = vpop.f32.mrb[0].mxu0
  %v842 = vpop.f32.mrb[0].mxu0
  %v843 = vadd.f32 %v739, %v842
  %v844 = vpop.f32.mrb[0].mxu0
  %845 = vmatprep.mubr.bf16.mxu0 0
  %846 = vmatmul.mubr.bf16.gmra.mrb[0].mxu0 %v705
  %v847 = vpop.f32.mrb[0].mxu0
  %v848 = vadd.f32 %v739, %v847
  %v849 = vpop.f32.mrb[0].mxu0
  %v850 = vpop.f32.mrb[0].mxu0
  %v851 = vadd.f32 %v739, %v850
  %v852 = vpop.f32.mrb[0].mxu0
  %853 = vmatprep.mubr.bf16.mxu0 0
  %854 = vmatmul.mubr.bf16.gmra.mrb[0].mxu0 %v706
  %v855 = vpop.f32.mrb[0].mxu0
  %v856 = vadd.f32 %v739, %v855
  %v857 = vpop.f32.mrb[0].mxu0
  %v858 = vpop.f32.mrb[0].mxu0
  %v859 = vadd.f32 %v739, %v858
  %v860 = vpop.f32.mrb[0].mxu0
  %861 = vmatprep.mubr.bf16.mxu0 0
  %862 = vmatmul.mubr.bf16.gmra.mrb[0].mxu0 %v707
  %v863 = vpop.f32.mrb[0].mxu0
  %v864 = vadd.f32 %v739, %v863
  %v865 = vpop.f32.mrb[0].mxu0
  %v866 = vpop.f32.mrb[0].mxu0
  %v867 = vadd.f32 %v739, %v866
  %v868 = vpop.f32.mrb[0].mxu0
  %869 = vmatprep.mubr.bf16.mxu0 0
  %870 = vmatmul.mubr.bf16.gmra.mrb[0].mxu0 %v708
  %v871 = vpop.f32.mrb[0].mxu0
  %v872 = vadd.f32 %v739, %v871
  %v873 = vpop.f32.mrb[0].mxu0
  %v874 = vpop.f32.mrb[0].mxu0
  %v875 = vadd.f32 %v739, %v874
  %v876 = vpop.f32.mrb[0].mxu0
  %877 = vmatprep.mubr.bf16.mxu0 0
  %878 = vmatmul.mubr.bf16.gmra.mrb[0].mxu0 %v709
  %v879 = vpop.f32.mrb[0].mxu0
  %v880 = vadd.f32 %v739, %v879
  %v881 = vpop.f32.mrb[0].mxu0
  %v882 = vpop.f32.mrb[0].mxu0
  %v883 = vadd.f32 %v739, %v882
  %v884 = vpop.f32.mrb[0].mxu0
  %885 = vmatprep.mubr.bf16.mxu0 0
  %886 = vmatmul.mubr.bf16.gmra.mrb[0].mxu0 %v710
  %v887 = vpop.f32.mrb[0].mxu0
  %v888 = vadd.f32 %v739, %v887
  %v889 = vpop.f32.mrb[0].mxu0
  %v890 = vpop.f32.mrb[0].mxu0
  %v891 = vadd.f32 %v739, %v890
  %v892 = vpop.f32.mrb[0].mxu0
  %893 = vmatprep.mubr.bf16.mxu0 0
  %894 = vmatmul.mubr.bf16.gmra.mrb[0].mxu0 %v711
  %v895 = vpop.f32.mrb[0].mxu0
  %v896 = vadd.f32 %v739, %v895
  %v897 = vpop.f32.mrb[0].mxu0
  %v898 = vpop.f32.mrb[0].mxu0
  %v899 = vadd.f32 %v739, %v898
  %v900 = vpop.f32.mrb[0].mxu0
  %901 = vmatprep.mubr.bf16.mxu0 0
  %902 = vmatmul.mubr.bf16.gmra.mrb[0].mxu0 %v712
  %v903 = vpop.f32.mrb[0].mxu0
  %v904 = vadd.f32 %v739, %v903
  %v905 = vpop.f32.mrb[0].mxu0
  %v906 = vpop.f32.mrb[0].mxu0
  %v907 = vadd.f32 %v739, %v906
  %v908 = vpop.f32.mrb[0].mxu0
  %909 = vmatprep.mubr.bf16.mxu0 0
  %910 = vmatmul.mubr.bf16.gmra.mrb[0].mxu0 %v713
  %v911 = vpop.f32.mrb[0].mxu0
  %v912 = vadd.f32 %v739, %v911
  %v913 = vpop.f32.mrb[0].mxu0
  %v914 = vpop.f32.mrb[0].mxu0
  %v915 = vadd.f32 %v739, %v914
  %v916 = vpop.f32.mrb[0].mxu0
  %917 = vmatprep.mubr.bf16.mxu0 0
  %918 = vmatmul.mubr.bf16.gmra.mrb[0].mxu0 %v714
  %v919 = vpop.f32.mrb[0].mxu0
  %v920 = vadd.f32 %v739, %v919
  %v921 = vpop.f32.mrb[0].mxu0
  %v922 = vpop.f32.mrb[0].mxu0
  %v923 = vadd.f32 %v739, %v922
  %v924 = vpop.f32.mrb[0].mxu0
  %925 = vmatprep.mubr.bf16.mxu0 0
  %926 = vmatmul.mubr.bf16.gmra.mrb[0].mxu0 %v715
  %v927 = vpop.f32.mrb[0].mxu0
  %v928 = vadd.f32 %v739, %v927
  %v929 = vpop.f32.mrb[0].mxu0
  %v930 = vpop.f32.mrb[0].mxu0
  %v931 = vadd.f32 %v739, %v930
  %v932 = vpop.f32.mrb[0].mxu0
  %933 = vmatprep.mubr.bf16.mxu0 0
  %934 = vmatmul.mubr.bf16.gmra.mrb[0].mxu0 %v716
  %v935 = vpop.f32.mrb[0].mxu0
  %v936 = vadd.f32 %v739, %v935
  %v937 = vpop.f32.mrb[0].mxu0
  %v938 = vpop.f32.mrb[0].mxu0
  %v939 = vadd.f32 %v739, %v938
  %v940 = vpop.f32.mrb[0].mxu0
  %941 = vmatprep.mubr.bf16.mxu0 0
  %942 = vmatmul.mubr.bf16.gmra.mrb[0].mxu0 %v717
  %v943 = vpop.f32.mrb[0].mxu0
  %v944 = vadd.f32 %v739, %v943
  %v945 = vpop.f32.mrb[0].mxu0
  %v946 = vpop.f32.mrb[0].mxu0
  %v947 = vadd.f32 %v739, %v946
  %v948 = vpop.f32.mrb[0].mxu0
  %949 = vdwg.mxu0
  %v950 = vmax.f32 %v824, 0.0
  %v951 = vmax.f32 %v827, 0.0
  %v952 = vmax.f32 %v832, 0.0
  %v953 = vmax.f32 %v835, 0.0
  %v954 = vmax.f32 %v840, 0.0
  %v955 = vmax.f32 %v843, 0.0
  %v956 = vmax.f32 %v848, 0.0
  %v957 = vmax.f32 %v851, 0.0
  %v958 = vmax.f32 %v856, 0.0
  %v959 = vmax.f32 %v859, 0.0
  %v960 = vmax.f32 %v864, 0.0
  %v961 = vmax.f32 %v867, 0.0
  %v962 = vmax.f32 %v872, 0.0
  %v963 = vmax.f32 %v875, 0.0
  %v964 = vmax.f32 %v880, 0.0
  %v965 = vmax.f32 %v883, 0.0
  %v966 = vmax.f32 %v888, 0.0
  %v967 = vmax.f32 %v891, 0.0
  %v968 = vmax.f32 %v896, 0.0
  %v969 = vmax.f32 %v899, 0.0
  %v970 = vmax.f32 %v904, 0.0
  %v971 = vmax.f32 %v907, 0.0
  %v972 = vmax.f32 %v912, 0.0
  %v973 = vmax.f32 %v915, 0.0
  %v974 = vmax.f32 %v920, 0.0
  %v975 = vmax.f32 %v923, 0.0
  %v976 = vmax.f32 %v928, 0.0
  %v977 = vmax.f32 %v931, 0.0
  %v978 = vmax.f32 %v936, 0.0
  %v979 = vmax.f32 %v939, 0.0
  %v980 = vmax.f32 %v944, 0.0
  %v981 = vmax.f32 %v947, 0.0
  %v982 = vld [vmem:[%s1] sm:$0xff]
  %v983 = vld [vmem:[%s1 + $0x8] sm:$0xff]
  %v984 = vld [vmem:[%s1 + $0x10] sm:$0xff]
  %v985 = vld [vmem:[%s1 + $0x18] sm:$0xff]
  %v986 = vlaneseq
  %v987 = vshrl.u32 %v986, 7
  %v988 = vsub.s32 0, %v987
  %v989 = vrot.slane %v982, %v988
  %991 = vbcast.lane.b32.xlu0 %v989, 256
  %v992 = vpop.permute.xlu0 %991
  %v993 = vlaneseq
  %v994 = vshrl.u32 %v993, 7
  %v995 = vsub.s32 1, %v994
  %v996 = vrot.slane %v982, %v995
  %998 = vbcast.lane.b32.xlu0 %v996, 256
  %v999 = vpop.permute.xlu0 %998
  %v1000 = vlaneseq
  %v1001 = vshrl.u32 %v1000, 7
  %v1002 = vsub.s32 2, %v1001
  %v1003 = vrot.slane %v982, %v1002
  %1005 = vbcast.lane.b32.xlu0 %v1003, 256
  %v1006 = vpop.permute.xlu0 %1005
  %v1007 = vlaneseq
  %v1008 = vshrl.u32 %v1007, 7
  %v1009 = vsub.s32 3, %v1008
  %v1010 = vrot.slane %v982, %v1009
  %1012 = vbcast.lane.b32.xlu0 %v1010, 256
  %v1013 = vpop.permute.xlu0 %1012
  %v1014 = vlaneseq
  %v1015 = vshrl.u32 %v1014, 7
  %v1016 = vsub.s32 4, %v1015
  %v1017 = vrot.slane %v982, %v1016
  %1019 = vbcast.lane.b32.xlu0 %v1017, 256
  %v1020 = vpop.permute.xlu0 %1019
  %v1021 = vlaneseq
  %v1022 = vshrl.u32 %v1021, 7
  %v1023 = vsub.s32 5, %v1022
  %v1024 = vrot.slane %v982, %v1023
  %1026 = vbcast.lane.b32.xlu0 %v1024, 256
  %v1027 = vpop.permute.xlu0 %1026
  %v1028 = vlaneseq
  %v1029 = vshrl.u32 %v1028, 7
  %v1030 = vsub.s32 6, %v1029
  %v1031 = vrot.slane %v982, %v1030
  %1033 = vbcast.lane.b32.xlu0 %v1031, 256
  %v1034 = vpop.permute.xlu0 %1033
  %v1035 = vlaneseq
  %v1036 = vshrl.u32 %v1035, 7
  %v1037 = vsub.s32 7, %v1036
  %v1038 = vrot.slane %v982, %v1037
  %1040 = vbcast.lane.b32.xlu0 %v1038, 256
  %v1041 = vpop.permute.xlu0 %1040
  %v1042 = vlaneseq
  %v1043 = vshrl.u32 %v1042, 7
  %v1044 = vsub.s32 0, %v1043
  %v1045 = vrot.slane %v983, %v1044
  %1047 = vbcast.lane.b32.xlu0 %v1045, 256
  %v1048 = vpop.permute.xlu0 %1047
  %v1049 = vlaneseq
  %v1050 = vshrl.u32 %v1049, 7
  %v1051 = vsub.s32 1, %v1050
  %v1052 = vrot.slane %v983, %v1051
  %1054 = vbcast.lane.b32.xlu0 %v1052, 256
  %v1055 = vpop.permute.xlu0 %1054
  %v1056 = vlaneseq
  %v1057 = vshrl.u32 %v1056, 7
  %v1058 = vsub.s32 2, %v1057
  %v1059 = vrot.slane %v983, %v1058
  %1061 = vbcast.lane.b32.xlu0 %v1059, 256
  %v1062 = vpop.permute.xlu0 %1061
  %v1063 = vlaneseq
  %v1064 = vshrl.u32 %v1063, 7
  %v1065 = vsub.s32 3, %v1064
  %v1066 = vrot.slane %v983, %v1065
  %1068 = vbcast.lane.b32.xlu0 %v1066, 256
  %v1069 = vpop.permute.xlu0 %1068
  %v1070 = vlaneseq
  %v1071 = vshrl.u32 %v1070, 7
  %v1072 = vsub.s32 4, %v1071
  %v1073 = vrot.slane %v983, %v1072
  %1075 = vbcast.lane.b32.xlu0 %v1073, 256
  %v1076 = vpop.permute.xlu0 %1075
  %v1077 = vlaneseq
  %v1078 = vshrl.u32 %v1077, 7
  %v1079 = vsub.s32 5, %v1078
  %v1080 = vrot.slane %v983, %v1079
  %1082 = vbcast.lane.b32.xlu0 %v1080, 256
  %v1083 = vpop.permute.xlu0 %1082
  %v1084 = vlaneseq
  %v1085 = vshrl.u32 %v1084, 7
  %v1086 = vsub.s32 6, %v1085
  %v1087 = vrot.slane %v983, %v1086
  %1089 = vbcast.lane.b32.xlu0 %v1087, 256
  %v1090 = vpop.permute.xlu0 %1089
  %v1091 = vlaneseq
  %v1092 = vshrl.u32 %v1091, 7
  %v1093 = vsub.s32 7, %v1092
  %v1094 = vrot.slane %v983, %v1093
  %1096 = vbcast.lane.b32.xlu0 %v1094, 256
  %v1097 = vpop.permute.xlu0 %1096
  %v1098 = vlaneseq
  %v1099 = vshrl.u32 %v1098, 7
  %v1100 = vsub.s32 0, %v1099
  %v1101 = vrot.slane %v984, %v1100
  %1103 = vbcast.lane.b32.xlu0 %v1101, 256
  %v1104 = vpop.permute.xlu0 %1103
  %v1105 = vlaneseq
  %v1106 = vshrl.u32 %v1105, 7
  %v1107 = vsub.s32 1, %v1106
  %v1108 = vrot.slane %v984, %v1107
  %1110 = vbcast.lane.b32.xlu0 %v1108, 256
  %v1111 = vpop.permute.xlu0 %1110
  %v1112 = vlaneseq
  %v1113 = vshrl.u32 %v1112, 7
  %v1114 = vsub.s32 2, %v1113
  %v1115 = vrot.slane %v984, %v1114
  %1117 = vbcast.lane.b32.xlu0 %v1115, 256
  %v1118 = vpop.permute.xlu0 %1117
  %v1119 = vlaneseq
  %v1120 = vshrl.u32 %v1119, 7
  %v1121 = vsub.s32 3, %v1120
  %v1122 = vrot.slane %v984, %v1121
  %1124 = vbcast.lane.b32.xlu0 %v1122, 256
  %v1125 = vpop.permute.xlu0 %1124
  %v1126 = vlaneseq
  %v1127 = vshrl.u32 %v1126, 7
  %v1128 = vsub.s32 4, %v1127
  %v1129 = vrot.slane %v984, %v1128
  %1131 = vbcast.lane.b32.xlu0 %v1129, 256
  %v1132 = vpop.permute.xlu0 %1131
  %v1133 = vlaneseq
  %v1134 = vshrl.u32 %v1133, 7
  %v1135 = vsub.s32 5, %v1134
  %v1136 = vrot.slane %v984, %v1135
  %1138 = vbcast.lane.b32.xlu0 %v1136, 256
  %v1139 = vpop.permute.xlu0 %1138
  %v1140 = vlaneseq
  %v1141 = vshrl.u32 %v1140, 7
  %v1142 = vsub.s32 6, %v1141
  %v1143 = vrot.slane %v984, %v1142
  %1145 = vbcast.lane.b32.xlu0 %v1143, 256
  %v1146 = vpop.permute.xlu0 %1145
  %v1147 = vlaneseq
  %v1148 = vshrl.u32 %v1147, 7
  %v1149 = vsub.s32 7, %v1148
  %v1150 = vrot.slane %v984, %v1149
  %1152 = vbcast.lane.b32.xlu0 %v1150, 256
  %v1153 = vpop.permute.xlu0 %1152
  %v1154 = vlaneseq
  %v1155 = vshrl.u32 %v1154, 7
  %v1156 = vsub.s32 0, %v1155
  %v1157 = vrot.slane %v985, %v1156
  %1159 = vbcast.lane.b32.xlu0 %v1157, 256
  %v1160 = vpop.permute.xlu0 %1159
  %v1161 = vlaneseq
  %v1162 = vshrl.u32 %v1161, 7
  %v1163 = vsub.s32 1, %v1162
  %v1164 = vrot.slane %v985, %v1163
  %1166 = vbcast.lane.b32.xlu0 %v1164, 256
  %v1167 = vpop.permute.xlu0 %1166
  %v1168 = vlaneseq
  %v1169 = vshrl.u32 %v1168, 7
  %v1170 = vsub.s32 2, %v1169
  %v1171 = vrot.slane %v985, %v1170
  %1173 = vbcast.lane.b32.xlu0 %v1171, 256
  %v1174 = vpop.permute.xlu0 %1173
  %v1175 = vlaneseq
  %v1176 = vshrl.u32 %v1175, 7
  %v1177 = vsub.s32 3, %v1176
  %v1178 = vrot.slane %v985, %v1177
  %1180 = vbcast.lane.b32.xlu0 %v1178, 256
  %v1181 = vpop.permute.xlu0 %1180
  %v1182 = vlaneseq
  %v1183 = vshrl.u32 %v1182, 7
  %v1184 = vsub.s32 4, %v1183
  %v1185 = vrot.slane %v985, %v1184
  %1187 = vbcast.lane.b32.xlu0 %v1185, 256
  %v1188 = vpop.permute.xlu0 %1187
  %v1189 = vlaneseq
  %v1190 = vshrl.u32 %v1189, 7
  %v1191 = vsub.s32 5, %v1190
  %v1192 = vrot.slane %v985, %v1191
  %1194 = vbcast.lane.b32.xlu0 %v1192, 256
  %v1195 = vpop.permute.xlu0 %1194
  %v1196 = vlaneseq
  %v1197 = vshrl.u32 %v1196, 7
  %v1198 = vsub.s32 6, %v1197
  %v1199 = vrot.slane %v985, %v1198
  %1201 = vbcast.lane.b32.xlu0 %v1199, 256
  %v1202 = vpop.permute.xlu0 %1201
  %v1203 = vlaneseq
  %v1204 = vshrl.u32 %v1203, 7
  %v1205 = vsub.s32 7, %v1204
  %v1206 = vrot.slane %v985, %v1205
  %1208 = vbcast.lane.b32.xlu0 %v1206, 256
  %v1209 = vpop.permute.xlu0 %1208
  %vm1210 = vcmp.gt.f32.partialorder %v992, 0.0
  %vm1211 = vcmp.gt.f32.partialorder %v999, 0.0
  %vm1212 = vcmp.gt.f32.partialorder %v1006, 0.0
  %vm1213 = vcmp.gt.f32.partialorder %v1013, 0.0
  %vm1214 = vcmp.gt.f32.partialorder %v1020, 0.0
  %vm1215 = vcmp.gt.f32.partialorder %v1027, 0.0
  %vm1216 = vcmp.gt.f32.partialorder %v1034, 0.0
  %vm1217 = vcmp.gt.f32.partialorder %v1041, 0.0
  %vm1218 = vcmp.gt.f32.partialorder %v1048, 0.0
  %vm1219 = vcmp.gt.f32.partialorder %v1055, 0.0
  %vm1220 = vcmp.gt.f32.partialorder %v1062, 0.0
  %vm1221 = vcmp.gt.f32.partialorder %v1069, 0.0
  %vm1222 = vcmp.gt.f32.partialorder %v1076, 0.0
  %vm1223 = vcmp.gt.f32.partialorder %v1083, 0.0
  %vm1224 = vcmp.gt.f32.partialorder %v1090, 0.0
  %vm1225 = vcmp.gt.f32.partialorder %v1097, 0.0
  %vm1226 = vcmp.gt.f32.partialorder %v1104, 0.0
  %vm1227 = vcmp.gt.f32.partialorder %v1111, 0.0
  %vm1228 = vcmp.gt.f32.partialorder %v1118, 0.0
  %vm1229 = vcmp.gt.f32.partialorder %v1125, 0.0
  %vm1230 = vcmp.gt.f32.partialorder %v1132, 0.0
  %vm1231 = vcmp.gt.f32.partialorder %v1139, 0.0
  %vm1232 = vcmp.gt.f32.partialorder %v1146, 0.0
  %vm1233 = vcmp.gt.f32.partialorder %v1153, 0.0
  %vm1234 = vcmp.gt.f32.partialorder %v1160, 0.0
  %vm1235 = vcmp.gt.f32.partialorder %v1167, 0.0
  %vm1236 = vcmp.gt.f32.partialorder %v1174, 0.0
  %vm1237 = vcmp.gt.f32.partialorder %v1181, 0.0
  %vm1238 = vcmp.gt.f32.partialorder %v1188, 0.0
  %vm1239 = vcmp.gt.f32.partialorder %v1195, 0.0
  %vm1240 = vcmp.gt.f32.partialorder %v1202, 0.0
  %vm1241 = vcmp.gt.f32.partialorder %v1209, 0.0
  %v1242 = vsel %vm1210, 1, 0
  %v1243 = vsel %vm1211, 1, 0
  %v1244 = vsel %vm1212, 1, 0
  %v1245 = vsel %vm1213, 1, 0
  %v1246 = vsel %vm1214, 1, 0
  %v1247 = vsel %vm1215, 1, 0
  %v1248 = vsel %vm1216, 1, 0
  %v1249 = vsel %vm1217, 1, 0
  %v1250 = vsel %vm1218, 1, 0
  %v1251 = vsel %vm1219, 1, 0
  %v1252 = vsel %vm1220, 1, 0
  %v1253 = vsel %vm1221, 1, 0
  %v1254 = vsel %vm1222, 1, 0
  %v1255 = vsel %vm1223, 1, 0
  %v1256 = vsel %vm1224, 1, 0
  %v1257 = vsel %vm1225, 1, 0
  %v1258 = vsel %vm1226, 1, 0
  %v1259 = vsel %vm1227, 1, 0
  %v1260 = vsel %vm1228, 1, 0
  %v1261 = vsel %vm1229, 1, 0
  %v1262 = vsel %vm1230, 1, 0
  %v1263 = vsel %vm1231, 1, 0
  %v1264 = vsel %vm1232, 1, 0
  %v1265 = vsel %vm1233, 1, 0
  %v1266 = vsel %vm1234, 1, 0
  %v1267 = vsel %vm1235, 1, 0
  %v1268 = vsel %vm1236, 1, 0
  %v1269 = vsel %vm1237, 1, 0
  %v1270 = vsel %vm1238, 1, 0
  %v1271 = vsel %vm1239, 1, 0
  %v1272 = vsel %vm1240, 1, 0
  %v1273 = vsel %vm1241, 1, 0
  %vm1274 = vcmp.eq.s32.totalorder %v1242, 1
  %vm1275 = vcmp.eq.s32.totalorder %v1243, 1
  %vm1276 = vcmp.eq.s32.totalorder %v1244, 1
  %vm1277 = vcmp.eq.s32.totalorder %v1245, 1
  %vm1278 = vcmp.eq.s32.totalorder %v1246, 1
  %vm1279 = vcmp.eq.s32.totalorder %v1247, 1
  %vm1280 = vcmp.eq.s32.totalorder %v1248, 1
  %vm1281 = vcmp.eq.s32.totalorder %v1249, 1
  %vm1282 = vcmp.eq.s32.totalorder %v1250, 1
  %vm1283 = vcmp.eq.s32.totalorder %v1251, 1
  %vm1284 = vcmp.eq.s32.totalorder %v1252, 1
  %vm1285 = vcmp.eq.s32.totalorder %v1253, 1
  %vm1286 = vcmp.eq.s32.totalorder %v1254, 1
  %vm1287 = vcmp.eq.s32.totalorder %v1255, 1
  %vm1288 = vcmp.eq.s32.totalorder %v1256, 1
  %vm1289 = vcmp.eq.s32.totalorder %v1257, 1
  %vm1290 = vcmp.eq.s32.totalorder %v1258, 1
  %vm1291 = vcmp.eq.s32.totalorder %v1259, 1
  %vm1292 = vcmp.eq.s32.totalorder %v1260, 1
  %vm1293 = vcmp.eq.s32.totalorder %v1261, 1
  %vm1294 = vcmp.eq.s32.totalorder %v1262, 1
  %vm1295 = vcmp.eq.s32.totalorder %v1263, 1
  %vm1296 = vcmp.eq.s32.totalorder %v1264, 1
  %vm1297 = vcmp.eq.s32.totalorder %v1265, 1
  %vm1298 = vcmp.eq.s32.totalorder %v1266, 1
  %vm1299 = vcmp.eq.s32.totalorder %v1267, 1
  %vm1300 = vcmp.eq.s32.totalorder %v1268, 1
  %vm1301 = vcmp.eq.s32.totalorder %v1269, 1
  %vm1302 = vcmp.eq.s32.totalorder %v1270, 1
  %vm1303 = vcmp.eq.s32.totalorder %v1271, 1
  %vm1304 = vcmp.eq.s32.totalorder %v1272, 1
  %vm1305 = vcmp.eq.s32.totalorder %v1273, 1
  %v1306 = vsel %vm1274, %v950, -1e+30
  %v1307 = vsel %vm1275, %v951, -1e+30
  %v1308 = vsel %vm1276, %v952, -1e+30
  %v1309 = vsel %vm1277, %v953, -1e+30
  %v1310 = vsel %vm1278, %v954, -1e+30
  %v1311 = vsel %vm1279, %v955, -1e+30
  %v1312 = vsel %vm1280, %v956, -1e+30
  %v1313 = vsel %vm1281, %v957, -1e+30
  %v1314 = vsel %vm1282, %v958, -1e+30
  %v1315 = vsel %vm1283, %v959, -1e+30
  %v1316 = vsel %vm1284, %v960, -1e+30
  %v1317 = vsel %vm1285, %v961, -1e+30
  %v1318 = vsel %vm1286, %v962, -1e+30
  %v1319 = vsel %vm1287, %v963, -1e+30
  %v1320 = vsel %vm1288, %v964, -1e+30
  %v1321 = vsel %vm1289, %v965, -1e+30
  %v1322 = vsel %vm1290, %v966, -1e+30
  %v1323 = vsel %vm1291, %v967, -1e+30
  %v1324 = vsel %vm1292, %v968, -1e+30
  %v1325 = vsel %vm1293, %v969, -1e+30
  %v1326 = vsel %vm1294, %v970, -1e+30
  %v1327 = vsel %vm1295, %v971, -1e+30
  %v1328 = vsel %vm1296, %v972, -1e+30
  %v1329 = vsel %vm1297, %v973, -1e+30
  %v1330 = vsel %vm1298, %v974, -1e+30
  %v1331 = vsel %vm1299, %v975, -1e+30
  %v1332 = vsel %vm1300, %v976, -1e+30
  %v1333 = vsel %vm1301, %v977, -1e+30
  %v1334 = vsel %vm1302, %v978, -1e+30
  %v1335 = vsel %vm1303, %v979, -1e+30
  %v1336 = vsel %vm1304, %v980, -1e+30
  %v1337 = vsel %vm1305, %v981, -1e+30
  %v1338 = vrot.slane %v1306, 4
  %v1339 = vmax.f32 %v1306, %v1338
  %v1340 = vrot.slane %v1339, 2
  %v1341 = vmax.f32 %v1339, %v1340
  %v1342 = vrot.slane %v1341, 1
  %v1343 = vmax.f32 %v1341, %v1342
  %v1344 = vrot.slane %v1307, 4
  %v1345 = vmax.f32 %v1307, %v1344
  %v1346 = vrot.slane %v1345, 2
  %v1347 = vmax.f32 %v1345, %v1346
  %v1348 = vrot.slane %v1347, 1
  %v1349 = vmax.f32 %v1347, %v1348
  %v1350 = vrot.slane %v1308, 4
  %v1351 = vmax.f32 %v1308, %v1350
  %v1352 = vrot.slane %v1351, 2
  %v1353 = vmax.f32 %v1351, %v1352
  %v1354 = vrot.slane %v1353, 1
  %v1355 = vmax.f32 %v1353, %v1354
  %v1356 = vrot.slane %v1309, 4
  %v1357 = vmax.f32 %v1309, %v1356
  %v1358 = vrot.slane %v1357, 2
  %v1359 = vmax.f32 %v1357, %v1358
  %v1360 = vrot.slane %v1359, 1
  %v1361 = vmax.f32 %v1359, %v1360
  %v1362 = vrot.slane %v1310, 4
  %v1363 = vmax.f32 %v1310, %v1362
  %v1364 = vrot.slane %v1363, 2
  %v1365 = vmax.f32 %v1363, %v1364
  %v1366 = vrot.slane %v1365, 1
  %v1367 = vmax.f32 %v1365, %v1366
  %v1368 = vrot.slane %v1311, 4
  %v1369 = vmax.f32 %v1311, %v1368
  %v1370 = vrot.slane %v1369, 2
  %v1371 = vmax.f32 %v1369, %v1370
  %v1372 = vrot.slane %v1371, 1
  %v1373 = vmax.f32 %v1371, %v1372
  %v1374 = vrot.slane %v1312, 4
  %v1375 = vmax.f32 %v1312, %v1374
  %v1376 = vrot.slane %v1375, 2
  %v1377 = vmax.f32 %v1375, %v1376
  %v1378 = vrot.slane %v1377, 1
  %v1379 = vmax.f32 %v1377, %v1378
  %v1380 = vrot.slane %v1313, 4
  %v1381 = vmax.f32 %v1313, %v1380
  %v1382 = vrot.slane %v1381, 2
  %v1383 = vmax.f32 %v1381, %v1382
  %v1384 = vrot.slane %v1383, 1
  %v1385 = vmax.f32 %v1383, %v1384
  %v1386 = vrot.slane %v1314, 4
  %v1387 = vmax.f32 %v1314, %v1386
  %v1388 = vrot.slane %v1387, 2
  %v1389 = vmax.f32 %v1387, %v1388
  %v1390 = vrot.slane %v1389, 1
  %v1391 = vmax.f32 %v1389, %v1390
  %v1392 = vrot.slane %v1315, 4
  %v1393 = vmax.f32 %v1315, %v1392
  %v1394 = vrot.slane %v1393, 2
  %v1395 = vmax.f32 %v1393, %v1394
  %v1396 = vrot.slane %v1395, 1
  %v1397 = vmax.f32 %v1395, %v1396
  %v1398 = vrot.slane %v1316, 4
  %v1399 = vmax.f32 %v1316, %v1398
  %v1400 = vrot.slane %v1399, 2
  %v1401 = vmax.f32 %v1399, %v1400
  %v1402 = vrot.slane %v1401, 1
  %v1403 = vmax.f32 %v1401, %v1402
  %v1404 = vrot.slane %v1317, 4
  %v1405 = vmax.f32 %v1317, %v1404
  %v1406 = vrot.slane %v1405, 2
  %v1407 = vmax.f32 %v1405, %v1406
  %v1408 = vrot.slane %v1407, 1
  %v1409 = vmax.f32 %v1407, %v1408
  %v1410 = vrot.slane %v1318, 4
  %v1411 = vmax.f32 %v1318, %v1410
  %v1412 = vrot.slane %v1411, 2
  %v1413 = vmax.f32 %v1411, %v1412
  %v1414 = vrot.slane %v1413, 1
  %v1415 = vmax.f32 %v1413, %v1414
  %v1416 = vrot.slane %v1319, 4
  %v1417 = vmax.f32 %v1319, %v1416
  %v1418 = vrot.slane %v1417, 2
  %v1419 = vmax.f32 %v1417, %v1418
  %v1420 = vrot.slane %v1419, 1
  %v1421 = vmax.f32 %v1419, %v1420
  %v1422 = vrot.slane %v1320, 4
  %v1423 = vmax.f32 %v1320, %v1422
  %v1424 = vrot.slane %v1423, 2
  %v1425 = vmax.f32 %v1423, %v1424
  %v1426 = vrot.slane %v1425, 1
  %v1427 = vmax.f32 %v1425, %v1426
  %v1428 = vrot.slane %v1321, 4
  %v1429 = vmax.f32 %v1321, %v1428
  %v1430 = vrot.slane %v1429, 2
  %v1431 = vmax.f32 %v1429, %v1430
  %v1432 = vrot.slane %v1431, 1
  %v1433 = vmax.f32 %v1431, %v1432
  %v1434 = vrot.slane %v1322, 4
  %v1435 = vmax.f32 %v1322, %v1434
  %v1436 = vrot.slane %v1435, 2
  %v1437 = vmax.f32 %v1435, %v1436
  %v1438 = vrot.slane %v1437, 1
  %v1439 = vmax.f32 %v1437, %v1438
  %v1440 = vrot.slane %v1323, 4
  %v1441 = vmax.f32 %v1323, %v1440
  %v1442 = vrot.slane %v1441, 2
  %v1443 = vmax.f32 %v1441, %v1442
  %v1444 = vrot.slane %v1443, 1
  %v1445 = vmax.f32 %v1443, %v1444
  %v1446 = vrot.slane %v1324, 4
  %v1447 = vmax.f32 %v1324, %v1446
  %v1448 = vrot.slane %v1447, 2
  %v1449 = vmax.f32 %v1447, %v1448
  %v1450 = vrot.slane %v1449, 1
  %v1451 = vmax.f32 %v1449, %v1450
  %v1452 = vrot.slane %v1325, 4
  %v1453 = vmax.f32 %v1325, %v1452
  %v1454 = vrot.slane %v1453, 2
  %v1455 = vmax.f32 %v1453, %v1454
  %v1456 = vrot.slane %v1455, 1
  %v1457 = vmax.f32 %v1455, %v1456
  %v1458 = vrot.slane %v1326, 4
  %v1459 = vmax.f32 %v1326, %v1458
  %v1460 = vrot.slane %v1459, 2
  %v1461 = vmax.f32 %v1459, %v1460
  %v1462 = vrot.slane %v1461, 1
  %v1463 = vmax.f32 %v1461, %v1462
  %v1464 = vrot.slane %v1327, 4
  %v1465 = vmax.f32 %v1327, %v1464
  %v1466 = vrot.slane %v1465, 2
  %v1467 = vmax.f32 %v1465, %v1466
  %v1468 = vrot.slane %v1467, 1
  %v1469 = vmax.f32 %v1467, %v1468
  %v1470 = vrot.slane %v1328, 4
  %v1471 = vmax.f32 %v1328, %v1470
  %v1472 = vrot.slane %v1471, 2
  %v1473 = vmax.f32 %v1471, %v1472
  %v1474 = vrot.slane %v1473, 1
  %v1475 = vmax.f32 %v1473, %v1474
  %v1476 = vrot.slane %v1329, 4
  %v1477 = vmax.f32 %v1329, %v1476
  %v1478 = vrot.slane %v1477, 2
  %v1479 = vmax.f32 %v1477, %v1478
  %v1480 = vrot.slane %v1479, 1
  %v1481 = vmax.f32 %v1479, %v1480
  %v1482 = vrot.slane %v1330, 4
  %v1483 = vmax.f32 %v1330, %v1482
  %v1484 = vrot.slane %v1483, 2
  %v1485 = vmax.f32 %v1483, %v1484
  %v1486 = vrot.slane %v1485, 1
  %v1487 = vmax.f32 %v1485, %v1486
  %v1488 = vrot.slane %v1331, 4
  %v1489 = vmax.f32 %v1331, %v1488
  %v1490 = vrot.slane %v1489, 2
  %v1491 = vmax.f32 %v1489, %v1490
  %v1492 = vrot.slane %v1491, 1
  %v1493 = vmax.f32 %v1491, %v1492
  %v1494 = vrot.slane %v1332, 4
  %v1495 = vmax.f32 %v1332, %v1494
  %v1496 = vrot.slane %v1495, 2
  %v1497 = vmax.f32 %v1495, %v1496
  %v1498 = vrot.slane %v1497, 1
  %v1499 = vmax.f32 %v1497, %v1498
  %v1500 = vrot.slane %v1333, 4
  %v1501 = vmax.f32 %v1333, %v1500
  %v1502 = vrot.slane %v1501, 2
  %v1503 = vmax.f32 %v1501, %v1502
  %v1504 = vrot.slane %v1503, 1
  %v1505 = vmax.f32 %v1503, %v1504
  %v1506 = vrot.slane %v1334, 4
  %v1507 = vmax.f32 %v1334, %v1506
  %v1508 = vrot.slane %v1507, 2
  %v1509 = vmax.f32 %v1507, %v1508
  %v1510 = vrot.slane %v1509, 1
  %v1511 = vmax.f32 %v1509, %v1510
  %v1512 = vrot.slane %v1335, 4
  %v1513 = vmax.f32 %v1335, %v1512
  %v1514 = vrot.slane %v1513, 2
  %v1515 = vmax.f32 %v1513, %v1514
  %v1516 = vrot.slane %v1515, 1
  %v1517 = vmax.f32 %v1515, %v1516
  %v1518 = vrot.slane %v1336, 4
  %v1519 = vmax.f32 %v1336, %v1518
  %v1520 = vrot.slane %v1519, 2
  %v1521 = vmax.f32 %v1519, %v1520
  %v1522 = vrot.slane %v1521, 1
  %v1523 = vmax.f32 %v1521, %v1522
  %v1524 = vrot.slane %v1337, 4
  %v1525 = vmax.f32 %v1337, %v1524
  %v1526 = vrot.slane %v1525, 2
  %v1527 = vmax.f32 %v1525, %v1526
  %v1528 = vrot.slane %v1527, 1
  %v1529 = vmax.f32 %v1527, %v1528
  %vm1562 = vcmask 1041409
  %v1563 = vsel %vm1562, %v1349, %v1343
  %vm1564 = vcmask 1042434
  %v1565 = vsel %vm1564, %v1355, %v1563
  %vm1566 = vcmask 1043459
  %v1567 = vsel %vm1566, %v1361, %v1565
  %vm1568 = vcmask 1044484
  %v1569 = vsel %vm1568, %v1367, %v1567
  %vm1570 = vcmask 1045509
  %v1571 = vsel %vm1570, %v1373, %v1569
  %vm1572 = vcmask 1046534
  %v1573 = vsel %vm1572, %v1379, %v1571
  %vm1574 = vcmask 1047559
  %v1575 = vsel %vm1574, %v1385, %v1573
  %v1576 = vsel %vm1562, %v1397, %v1391
  %v1577 = vsel %vm1564, %v1403, %v1576
  %v1578 = vsel %vm1566, %v1409, %v1577
  %v1579 = vsel %vm1568, %v1415, %v1578
  %v1580 = vsel %vm1570, %v1421, %v1579
  %v1581 = vsel %vm1572, %v1427, %v1580
  %v1582 = vsel %vm1574, %v1433, %v1581
  %v1583 = vsel %vm1562, %v1445, %v1439
  %v1584 = vsel %vm1564, %v1451, %v1583
  %v1585 = vsel %vm1566, %v1457, %v1584
  %v1586 = vsel %vm1568, %v1463, %v1585
  %v1587 = vsel %vm1570, %v1469, %v1586
  %v1588 = vsel %vm1572, %v1475, %v1587
  %v1589 = vsel %vm1574, %v1481, %v1588
  %v1590 = vsel %vm1562, %v1493, %v1487
  %v1591 = vsel %vm1564, %v1499, %v1590
  %v1592 = vsel %vm1566, %v1505, %v1591
  %v1593 = vsel %vm1568, %v1511, %v1592
  %v1594 = vsel %vm1570, %v1517, %v1593
  %v1595 = vsel %vm1572, %v1523, %v1594
  %v1596 = vsel %vm1574, %v1529, %v1595
  %1601 = vst [vmem:[%s8] sm:$0xff] %v1575
  %1602 = vst [vmem:[%s8 + $0x8] sm:$0xff] %v1582
  %1603 = vst [vmem:[%s8 + $0x10] sm:$0xff] %v1589
  %1604 = vst [vmem:[%s8 + $0x18] sm:$0xff] %v1596
  // Predicated region
  $region34: #{_lambda_.6} parent=0 // pred_check
    _
  $region35: #{_lambda_.6} parent=0 // pred_check_branch
    %1606 = sbr.rel (0) target = $region37
  $region36: #{_lambda_.6} parent=0 // pred_region
    _
  $region37: #{_lambda_.6} parent=0 // pred_fallthru
    _
  // Predicated region
  $region38: #{_lambda_.6} parent=0 // pred_check
    _
  $region39: #{_lambda_.6} parent=0 // pred_check_branch
    %1608 = sbr.rel (0) target = $region41
  $region40: #{_lambda_.6} parent=0 // pred_region
    _
  $region41: #{_lambda_.6} parent=0 // pred_fallthru
    _

// kernel: _lambda_.7
$region0: #{_lambda_.7}
  #allocation0 [shape = 'u32[]', space=smem, size = 0x4, offset = 0x4, fixed_abs, tag = 'smem constant byte address 0x4 - core index']
  #allocation1 [shape = 'u32[144,128]{1,0:T(1,128)}', space=vmem, size = 0x12000, scoped, tag = 'internal scratch']
  %s0 = inlined_call_operand.vmem [shape: bf16[128,128], index: 0, kind: input, shape index: {}]
  %s1 = inlined_call_operand.vmem [shape: f32[16,8], index: 1, kind: input, shape index: {}]
  %s2 = inlined_call_operand.vmem [shape: bf16[128,128], index: 2, kind: input, shape index: {}]
  %s3 = inlined_call_operand.vmem [shape: f32[1,128], index: 3, kind: input, shape index: {}]
  %s4 = inlined_call_operand.vmem [shape: bf16[128,128], index: 4, kind: input, shape index: {}]
  %s5 = inlined_call_operand.vmem [shape: f32[1,128], index: 5, kind: input, shape index: {}]
  %s6 = inlined_call_operand.vmem [shape: bf16[128,128], index: 6, kind: input, shape index: {}]
  %s7 = inlined_call_operand.vmem [shape: f32[1,128], index: 7, kind: input, shape index: {}]
  %s8 = inlined_call_operand.vmem [shape: f32[16,128], index: 8, kind: output, shape index: {}]
  %s9 = sld [smem:[#allocation0]]
  $region42: #{_lambda_.7} parent=0
    _
  %s11 = ssub.s32 1, %s9
  %s12 = scalar_select 0, %s11, %s9
  // Predicated region
  $region2: #{_lambda_.7} parent=0 // pred_check
    _
  $region3: #{_lambda_.7} parent=0 // pred_check_branch
    %14 = sbr.rel (0) target = $region5
  $region4: #{_lambda_.7} parent=0 // pred_region
    _
  $region5: #{_lambda_.7} parent=0 // pred_fallthru
    _
  // Predicated region
  $region6: #{_lambda_.7} parent=0 // pred_check
    _
  $region7: #{_lambda_.7} parent=0 // pred_check_branch
    %16 = sbr.rel (0) target = $region9
  $region8: #{_lambda_.7} parent=0 // pred_region
    _
  $region9: #{_lambda_.7} parent=0 // pred_fallthru
    _
  // Predicated region
  $region10: #{_lambda_.7} parent=0 // pred_check
    _
  $region11: #{_lambda_.7} parent=0 // pred_check_branch
    %18 = sbr.rel (0) target = $region13
  $region12: #{_lambda_.7} parent=0 // pred_region
    _
  $region13: #{_lambda_.7} parent=0 // pred_fallthru
    _
  // Predicated region
  $region14: #{_lambda_.7} parent=0 // pred_check
    _
  $region15: #{_lambda_.7} parent=0 // pred_check_branch
    %20 = sbr.rel (0) target = $region17
  $region16: #{_lambda_.7} parent=0 // pred_region
    _
  $region17: #{_lambda_.7} parent=0 // pred_fallthru
    _
  // Predicated region
  $region18: #{_lambda_.7} parent=0 // pred_check
    _
  $region19: #{_lambda_.7} parent=0 // pred_check_branch
    %22 = sbr.rel (0) target = $region21
  $region20: #{_lambda_.7} parent=0 // pred_region
    _
  $region21: #{_lambda_.7} parent=0 // pred_fallthru
    _
  // Predicated region
  $region22: #{_lambda_.7} parent=0 // pred_check
    _
  $region23: #{_lambda_.7} parent=0 // pred_check_branch
    %24 = sbr.rel (0) target = $region25
  $region24: #{_lambda_.7} parent=0 // pred_region
    _
  $region25: #{_lambda_.7} parent=0 // pred_fallthru
    _
  // Predicated region
  $region26: #{_lambda_.7} parent=0 // pred_check
    _
  $region27: #{_lambda_.7} parent=0 // pred_check_branch
    %26 = sbr.rel (0) target = $region29
  $region28: #{_lambda_.7} parent=0 // pred_region
    _
  $region29: #{_lambda_.7} parent=0 // pred_fallthru
    _
  // Predicated region
  $region30: #{_lambda_.7} parent=0 // pred_check
    _
  $region31: #{_lambda_.7} parent=0 // pred_check_branch
    %28 = sbr.rel (0) target = $region33
  $region32: #{_lambda_.7} parent=0 // pred_region
    _
  $region33: #{_lambda_.7} parent=0 // pred_fallthru
    _
  %v30 = vld [vmem:[%s0] sm:$0xf]
  %v31 = vld [vmem:[%s0 + $0x4] sm:$0xf]
  %v32 = vld [vmem:[%s0 + $0x8] sm:$0xf]
  %v33 = vld [vmem:[%s0 + $0xc] sm:$0xf]
  %v34 = vld [vmem:[%s0 + $0x10] sm:$0xf]
  %v35 = vld [vmem:[%s0 + $0x14] sm:$0xf]
  %v36 = vld [vmem:[%s0 + $0x18] sm:$0xf]
  %v37 = vld [vmem:[%s0 + $0x1c] sm:$0xf]
  %v38 = vld [vmem:[%s0 + $0x20] sm:$0xf]
  %v39 = vld [vmem:[%s0 + $0x24] sm:$0xf]
  %v40 = vld [vmem:[%s0 + $0x28] sm:$0xf]
  %v41 = vld [vmem:[%s0 + $0x2c] sm:$0xf]
  %v42 = vld [vmem:[%s0 + $0x30] sm:$0xf]
  %v43 = vld [vmem:[%s0 + $0x34] sm:$0xf]
  %v44 = vld [vmem:[%s0 + $0x38] sm:$0xf]
  %v45 = vld [vmem:[%s0 + $0x3c] sm:$0xf]
  %v46 = vld [vmem:[%s2] sm:$0xf]
  %v47 = vld [vmem:[%s2 + $0x4] sm:$0xf]
  %v48 = vld [vmem:[%s2 + $0x8] sm:$0xf]
  %v49 = vld [vmem:[%s2 + $0xc] sm:$0xf]
  %v50 = vld [vmem:[%s2 + $0x10] sm:$0xf]
  %v51 = vld [vmem:[%s2 + $0x14] sm:$0xf]
  %v52 = vld [vmem:[%s2 + $0x18] sm:$0xf]
  %v53 = vld [vmem:[%s2 + $0x1c] sm:$0xf]
  %v54 = vld [vmem:[%s2 + $0x20] sm:$0xf]
  %v55 = vld [vmem:[%s2 + $0x24] sm:$0xf]
  %v56 = vld [vmem:[%s2 + $0x28] sm:$0xf]
  %v57 = vld [vmem:[%s2 + $0x2c] sm:$0xf]
  %v58 = vld [vmem:[%s2 + $0x30] sm:$0xf]
  %v59 = vld [vmem:[%s2 + $0x34] sm:$0xf]
  %v60 = vld [vmem:[%s2 + $0x38] sm:$0xf]
  %v61 = vld [vmem:[%s2 + $0x3c] sm:$0xf]
  %v62 = vld [vmem:[%s3] sm:$0x1]
  %v64 = vlaneseq
  %v65 = vshrl.u32 %v64, 7
  %v66 = vsub.s32 0, %v65
  %v67 = vrot.slane %v62, %v66
  %v85 = vunpack.c.l.b16 %v30
  %v86 = vunpack.c.l.b16 %v31
  %v87 = vunpack.c.l.b16 %v32
  %v88 = vunpack.c.l.b16 %v33
  %v89 = vunpack.c.l.b16 %v34
  %v90 = vunpack.c.l.b16 %v35
  %v91 = vunpack.c.l.b16 %v36
  %v92 = vunpack.c.l.b16 %v37
  %v93 = vunpack.c.l.b16 %v38
  %v94 = vunpack.c.l.b16 %v39
  %v95 = vunpack.c.l.b16 %v40
  %v96 = vunpack.c.l.b16 %v41
  %v97 = vunpack.c.l.b16 %v42
  %v98 = vunpack.c.l.b16 %v43
  %v99 = vunpack.c.l.b16 %v44
  %v100 = vunpack.c.l.b16 %v45
  %v101 = vpack.c.b16 %v86, %v85
  %v102 = vpack.c.b16 %v88, %v87
  %v103 = vpack.c.b16 %v90, %v89
  %v104 = vpack.c.b16 %v92, %v91
  %v105 = vpack.c.b16 %v94, %v93
  %v106 = vpack.c.b16 %v96, %v95
  %v107 = vpack.c.b16 %v98, %v97
  %v108 = vpack.c.b16 %v100, %v99
  %v133 = vunpack.c.l.b16 %v46
  %v134 = vunpack.c.l.b16 %v47
  %v135 = vunpack.c.l.b16 %v48
  %v136 = vunpack.c.l.b16 %v49
  %v137 = vunpack.c.l.b16 %v50
  %v138 = vunpack.c.l.b16 %v51
  %v139 = vunpack.c.l.b16 %v52
  %v140 = vunpack.c.l.b16 %v53
  %v141 = vunpack.c.l.b16 %v54
  %v142 = vunpack.c.l.b16 %v55
  %v143 = vunpack.c.l.b16 %v56
  %v144 = vunpack.c.l.b16 %v57
  %v145 = vunpack.c.l.b16 %v58
  %v146 = vunpack.c.l.b16 %v59
  %v147 = vunpack.c.l.b16 %v60
  %v148 = vunpack.c.l.b16 %v61
  %v149 = vpack.c.b16 %v134, %v133
  %v150 = vpack.c.b16 %v136, %v135
  %v151 = vpack.c.b16 %v138, %v137
  %v152 = vpack.c.b16 %v140, %v139
  %v153 = vpack.c.b16 %v142, %v141
  %v154 = vpack.c.b16 %v144, %v143
  %v155 = vpack.c.b16 %v146, %v145
  %v156 = vpack.c.b16 %v148, %v147
  %165 = vmatprep.subr.bf16.mxu0 0
  %166 = vmatpush1.bf16.msra.mxu0 %v149
  %167 = vmatprep.subr.bf16.mxu0 0
  %168 = vmatpush1.bf16.msra.mxu0 %v150
  %169 = vmatprep.subr.bf16.mxu0 0
  %170 = vmatpush1.bf16.msra.mxu0 %v151
  %171 = vmatprep.subr.bf16.mxu0 0
  %172 = vmatpush1.bf16.msra.mxu0 %v152
  %173 = vmatprep.subr.bf16.mxu0 0
  %174 = vmatpush1.bf16.msra.mxu0 %v153
  %175 = vmatprep.subr.bf16.mxu0 0
  %176 = vmatpush1.bf16.msra.mxu0 %v154
  %177 = vmatprep.subr.bf16.mxu0 0
  %178 = vmatpush1.bf16.msra.mxu0 %v155
  %179 = vmatprep.subr.bf16.mxu0 0
  %180 = vmatpush1.bf16.msra.mxu0 %v156
  %181 = vmatprep.subr.bf16.mxu0 0
  %182 = vmatpush1.bf16.msra.mxu0 0
  %183 = vmatprep.subr.bf16.mxu0 0
  %184 = vmatpush1.bf16.msra.mxu0 0
  %185 = vmatprep.subr.bf16.mxu0 0
  %186 = vmatpush1.bf16.msra.mxu0 0
  %187 = vmatprep.subr.bf16.mxu0 0
  %188 = vmatpush1.bf16.msra.mxu0 0
  %189 = vmatprep.subr.bf16.mxu0 0
  %190 = vmatpush1.bf16.msra.mxu0 0
  %191 = vmatprep.subr.bf16.mxu0 0
  %192 = vmatpush1.bf16.msra.mxu0 0
  %193 = vmatprep.subr.bf16.mxu0 0
  %194 = vmatpush1.bf16.msra.mxu0 0
  %195 = vmatprep.subr.bf16.mxu0 0
  %196 = vmatpush1.bf16.msra.mxu0 0
  %197 = vmatprep.mubr.bf16.mxu0 0
  %198 = vmatmul.mubr.bf16.gmra.mrb[0].mxu0 %v101
  %v199 = vpop.f32.mrb[0].mxu0
  %v200 = vadd.f32 %v67, %v199
  %v201 = vpop.f32.mrb[0].mxu0
  %v202 = vpop.f32.mrb[0].mxu0
  %v203 = vadd.f32 %v67, %v202
  %v204 = vpop.f32.mrb[0].mxu0
  %205 = vmatprep.mubr.bf16.mxu0 0
  %206 = vmatmul.mubr.bf16.gmra.mrb[0].mxu0 %v102
  %v207 = vpop.f32.mrb[0].mxu0
  %v208 = vadd.f32 %v67, %v207
  %v209 = vpop.f32.mrb[0].mxu0
  %v210 = vpop.f32.mrb[0].mxu0
  %v211 = vadd.f32 %v67, %v210
  %v212 = vpop.f32.mrb[0].mxu0
  %213 = vmatprep.mubr.bf16.mxu0 0
  %214 = vmatmul.mubr.bf16.gmra.mrb[0].mxu0 %v103
  %v215 = vpop.f32.mrb[0].mxu0
  %v216 = vadd.f32 %v67, %v215
  %v217 = vpop.f32.mrb[0].mxu0
  %v218 = vpop.f32.mrb[0].mxu0
  %v219 = vadd.f32 %v67, %v218
  %v220 = vpop.f32.mrb[0].mxu0
  %221 = vmatprep.mubr.bf16.mxu0 0
  %222 = vmatmul.mubr.bf16.gmra.mrb[0].mxu0 %v104
  %v223 = vpop.f32.mrb[0].mxu0
  %v224 = vadd.f32 %v67, %v223
  %v225 = vpop.f32.mrb[0].mxu0
  %v226 = vpop.f32.mrb[0].mxu0
  %v227 = vadd.f32 %v67, %v226
  %v228 = vpop.f32.mrb[0].mxu0
  %229 = vmatprep.mubr.bf16.mxu0 0
  %230 = vmatmul.mubr.bf16.gmra.mrb[0].mxu0 %v105
  %v231 = vpop.f32.mrb[0].mxu0
  %v232 = vadd.f32 %v67, %v231
  %v233 = vpop.f32.mrb[0].mxu0
  %v234 = vpop.f32.mrb[0].mxu0
  %v235 = vadd.f32 %v67, %v234
  %v236 = vpop.f32.mrb[0].mxu0
  %237 = vmatprep.mubr.bf16.mxu0 0
  %238 = vmatmul.mubr.bf16.gmra.mrb[0].mxu0 %v106
  %v239 = vpop.f32.mrb[0].mxu0
  %v240 = vadd.f32 %v67, %v239
  %v241 = vpop.f32.mrb[0].mxu0
  %v242 = vpop.f32.mrb[0].mxu0
  %v243 = vadd.f32 %v67, %v242
  %v244 = vpop.f32.mrb[0].mxu0
  %245 = vmatprep.mubr.bf16.mxu0 0
  %246 = vmatmul.mubr.bf16.gmra.mrb[0].mxu0 %v107
  %v247 = vpop.f32.mrb[0].mxu0
  %v248 = vadd.f32 %v67, %v247
  %v249 = vpop.f32.mrb[0].mxu0
  %v250 = vpop.f32.mrb[0].mxu0
  %v251 = vadd.f32 %v67, %v250
  %v252 = vpop.f32.mrb[0].mxu0
  %253 = vmatprep.mubr.bf16.mxu0 0
  %254 = vmatmul.mubr.bf16.gmra.mrb[0].mxu0 %v108
  %v255 = vpop.f32.mrb[0].mxu0
  %v256 = vadd.f32 %v67, %v255
  %v257 = vpop.f32.mrb[0].mxu0
  %v258 = vpop.f32.mrb[0].mxu0
  %v259 = vadd.f32 %v67, %v258
  %v260 = vpop.f32.mrb[0].mxu0
  %261 = vdwg.mxu0
  %v262 = vmax.f32 %v200, 0.0
  %v263 = vmax.f32 %v203, 0.0
  %v264 = vmax.f32 %v208, 0.0
  %v265 = vmax.f32 %v211, 0.0
  %v266 = vmax.f32 %v216, 0.0
  %v267 = vmax.f32 %v219, 0.0
  %v268 = vmax.f32 %v224, 0.0
  %v269 = vmax.f32 %v227, 0.0
  %v270 = vmax.f32 %v232, 0.0
  %v271 = vmax.f32 %v235, 0.0
  %v272 = vmax.f32 %v240, 0.0
  %v273 = vmax.f32 %v243, 0.0
  %v274 = vmax.f32 %v248, 0.0
  %v275 = vmax.f32 %v251, 0.0
  %v276 = vmax.f32 %v256, 0.0
  %v277 = vmax.f32 %v259, 0.0
  %v278 = vpack.c.bf16 %v263, %v262
  %v279 = vpack.c.bf16 %v265, %v264
  %v280 = vpack.c.bf16 %v267, %v266
  %v281 = vpack.c.bf16 %v269, %v268
  %v282 = vpack.c.bf16 %v271, %v270
  %v283 = vpack.c.bf16 %v273, %v272
  %v284 = vpack.c.bf16 %v275, %v274
  %v285 = vpack.c.bf16 %v277, %v276
  %v286 = vld [vmem:[%s4] sm:$0xf]
  %v287 = vld [vmem:[%s4 + $0x4] sm:$0xf]
  %v288 = vld [vmem:[%s4 + $0x8] sm:$0xf]
  %v289 = vld [vmem:[%s4 + $0xc] sm:$0xf]
  %v290 = vld [vmem:[%s4 + $0x10] sm:$0xf]
  %v291 = vld [vmem:[%s4 + $0x14] sm:$0xf]
  %v292 = vld [vmem:[%s4 + $0x18] sm:$0xf]
  %v293 = vld [vmem:[%s4 + $0x1c] sm:$0xf]
  %v294 = vld [vmem:[%s4 + $0x20] sm:$0xf]
  %v295 = vld [vmem:[%s4 + $0x24] sm:$0xf]
  %v296 = vld [vmem:[%s4 + $0x28] sm:$0xf]
  %v297 = vld [vmem:[%s4 + $0x2c] sm:$0xf]
  %v298 = vld [vmem:[%s4 + $0x30] sm:$0xf]
  %v299 = vld [vmem:[%s4 + $0x34] sm:$0xf]
  %v300 = vld [vmem:[%s4 + $0x38] sm:$0xf]
  %v301 = vld [vmem:[%s4 + $0x3c] sm:$0xf]
  %v302 = vld [vmem:[%s5] sm:$0x1]
  %v304 = vlaneseq
  %v305 = vshrl.u32 %v304, 7
  %v306 = vsub.s32 0, %v305
  %v307 = vrot.slane %v302, %v306
  %v325 = vunpack.c.l.b16 %v286
  %v326 = vunpack.c.l.b16 %v287
  %v327 = vunpack.c.l.b16 %v288
  %v328 = vunpack.c.l.b16 %v289
  %v329 = vunpack.c.l.b16 %v290
  %v330 = vunpack.c.l.b16 %v291
  %v331 = vunpack.c.l.b16 %v292
  %v332 = vunpack.c.l.b16 %v293
  %v333 = vunpack.c.l.b16 %v294
  %v334 = vunpack.c.l.b16 %v295
  %v335 = vunpack.c.l.b16 %v296
  %v336 = vunpack.c.l.b16 %v297
  %v337 = vunpack.c.l.b16 %v298
  %v338 = vunpack.c.l.b16 %v299
  %v339 = vunpack.c.l.b16 %v300
  %v340 = vunpack.c.l.b16 %v301
  %v341 = vpack.c.b16 %v326, %v325
  %v342 = vpack.c.b16 %v328, %v327
  %v343 = vpack.c.b16 %v330, %v329
  %v344 = vpack.c.b16 %v332, %v331
  %v345 = vpack.c.b16 %v334, %v333
  %v346 = vpack.c.b16 %v336, %v335
  %v347 = vpack.c.b16 %v338, %v337
  %v348 = vpack.c.b16 %v340, %v339
  %357 = vmatprep.subr.bf16.mxu0 0
  %358 = vmatpush1.bf16.msra.mxu0 %v341
  %359 = vmatprep.subr.bf16.mxu0 0
  %360 = vmatpush1.bf16.msra.mxu0 %v342
  %361 = vmatprep.subr.bf16.mxu0 0
  %362 = vmatpush1.bf16.msra.mxu0 %v343
  %363 = vmatprep.subr.bf16.mxu0 0
  %364 = vmatpush1.bf16.msra.mxu0 %v344
  %365 = vmatprep.subr.bf16.mxu0 0
  %366 = vmatpush1.bf16.msra.mxu0 %v345
  %367 = vmatprep.subr.bf16.mxu0 0
  %368 = vmatpush1.bf16.msra.mxu0 %v346
  %369 = vmatprep.subr.bf16.mxu0 0
  %370 = vmatpush1.bf16.msra.mxu0 %v347
  %371 = vmatprep.subr.bf16.mxu0 0
  %372 = vmatpush1.bf16.msra.mxu0 %v348
  %373 = vmatprep.subr.bf16.mxu0 0
  %374 = vmatpush1.bf16.msra.mxu0 0
  %375 = vmatprep.subr.bf16.mxu0 0
  %376 = vmatpush1.bf16.msra.mxu0 0
  %377 = vmatprep.subr.bf16.mxu0 0
  %378 = vmatpush1.bf16.msra.mxu0 0
  %379 = vmatprep.subr.bf16.mxu0 0
  %380 = vmatpush1.bf16.msra.mxu0 0
  %381 = vmatprep.subr.bf16.mxu0 0
  %382 = vmatpush1.bf16.msra.mxu0 0
  %383 = vmatprep.subr.bf16.mxu0 0
  %384 = vmatpush1.bf16.msra.mxu0 0
  %385 = vmatprep.subr.bf16.mxu0 0
  %386 = vmatpush1.bf16.msra.mxu0 0
  %387 = vmatprep.subr.bf16.mxu0 0
  %388 = vmatpush1.bf16.msra.mxu0 0
  %389 = vmatprep.mubr.bf16.mxu0 0
  %390 = vmatmul.mubr.bf16.gmra.mrb[0].mxu0 %v278
  %v391 = vpop.f32.mrb[0].mxu0
  %v392 = vadd.f32 %v307, %v391
  %v393 = vpop.f32.mrb[0].mxu0
  %v394 = vpop.f32.mrb[0].mxu0
  %v395 = vadd.f32 %v307, %v394
  %v396 = vpop.f32.mrb[0].mxu0
  %397 = vmatprep.mubr.bf16.mxu0 0
  %398 = vmatmul.mubr.bf16.gmra.mrb[0].mxu0 %v279
  %v399 = vpop.f32.mrb[0].mxu0
  %v400 = vadd.f32 %v307, %v399
  %v401 = vpop.f32.mrb[0].mxu0
  %v402 = vpop.f32.mrb[0].mxu0
  %v403 = vadd.f32 %v307, %v402
  %v404 = vpop.f32.mrb[0].mxu0
  %405 = vmatprep.mubr.bf16.mxu0 0
  %406 = vmatmul.mubr.bf16.gmra.mrb[0].mxu0 %v280
  %v407 = vpop.f32.mrb[0].mxu0
  %v408 = vadd.f32 %v307, %v407
  %v409 = vpop.f32.mrb[0].mxu0
  %v410 = vpop.f32.mrb[0].mxu0
  %v411 = vadd.f32 %v307, %v410
  %v412 = vpop.f32.mrb[0].mxu0
  %413 = vmatprep.mubr.bf16.mxu0 0
  %414 = vmatmul.mubr.bf16.gmra.mrb[0].mxu0 %v281
  %v415 = vpop.f32.mrb[0].mxu0
  %v416 = vadd.f32 %v307, %v415
  %v417 = vpop.f32.mrb[0].mxu0
  %v418 = vpop.f32.mrb[0].mxu0
  %v419 = vadd.f32 %v307, %v418
  %v420 = vpop.f32.mrb[0].mxu0
  %421 = vmatprep.mubr.bf16.mxu0 0
  %422 = vmatmul.mubr.bf16.gmra.mrb[0].mxu0 %v282
  %v423 = vpop.f32.mrb[0].mxu0
  %v424 = vadd.f32 %v307, %v423
  %v425 = vpop.f32.mrb[0].mxu0
  %v426 = vpop.f32.mrb[0].mxu0
  %v427 = vadd.f32 %v307, %v426
  %v428 = vpop.f32.mrb[0].mxu0
  %429 = vmatprep.mubr.bf16.mxu0 0
  %430 = vmatmul.mubr.bf16.gmra.mrb[0].mxu0 %v283
  %v431 = vpop.f32.mrb[0].mxu0
  %v432 = vadd.f32 %v307, %v431
  %v433 = vpop.f32.mrb[0].mxu0
  %v434 = vpop.f32.mrb[0].mxu0
  %v435 = vadd.f32 %v307, %v434
  %v436 = vpop.f32.mrb[0].mxu0
  %437 = vmatprep.mubr.bf16.mxu0 0
  %438 = vmatmul.mubr.bf16.gmra.mrb[0].mxu0 %v284
  %v439 = vpop.f32.mrb[0].mxu0
  %v440 = vadd.f32 %v307, %v439
  %v441 = vpop.f32.mrb[0].mxu0
  %v442 = vpop.f32.mrb[0].mxu0
  %v443 = vadd.f32 %v307, %v442
  %v444 = vpop.f32.mrb[0].mxu0
  %445 = vmatprep.mubr.bf16.mxu0 0
  %446 = vmatmul.mubr.bf16.gmra.mrb[0].mxu0 %v285
  %v447 = vpop.f32.mrb[0].mxu0
  %v448 = vadd.f32 %v307, %v447
  %v449 = vpop.f32.mrb[0].mxu0
  %v450 = vpop.f32.mrb[0].mxu0
  %v451 = vadd.f32 %v307, %v450
  %v452 = vpop.f32.mrb[0].mxu0
  %453 = vdwg.mxu0
  %v454 = vmax.f32 %v392, 0.0
  %v455 = vmax.f32 %v395, 0.0
  %v456 = vmax.f32 %v400, 0.0
  %v457 = vmax.f32 %v403, 0.0
  %v458 = vmax.f32 %v408, 0.0
  %v459 = vmax.f32 %v411, 0.0
  %v460 = vmax.f32 %v416, 0.0
  %v461 = vmax.f32 %v419, 0.0
  %v462 = vmax.f32 %v424, 0.0
  %v463 = vmax.f32 %v427, 0.0
  %v464 = vmax.f32 %v432, 0.0
  %v465 = vmax.f32 %v435, 0.0
  %v466 = vmax.f32 %v440, 0.0
  %v467 = vmax.f32 %v443, 0.0
  %v468 = vmax.f32 %v448, 0.0
  %v469 = vmax.f32 %v451, 0.0
  %v470 = vpack.c.bf16 %v455, %v454
  %v471 = vpack.c.bf16 %v457, %v456
  %v472 = vpack.c.bf16 %v459, %v458
  %v473 = vpack.c.bf16 %v461, %v460
  %v474 = vpack.c.bf16 %v463, %v462
  %v475 = vpack.c.bf16 %v465, %v464
  %v476 = vpack.c.bf16 %v467, %v466
  %v477 = vpack.c.bf16 %v469, %v468
  %v478 = vld [vmem:[%s6] sm:$0xf]
  %v479 = vld [vmem:[%s6 + $0x4] sm:$0xf]
  %v480 = vld [vmem:[%s6 + $0x8] sm:$0xf]
  %v481 = vld [vmem:[%s6 + $0xc] sm:$0xf]
  %v482 = vld [vmem:[%s6 + $0x10] sm:$0xf]
  %v483 = vld [vmem:[%s6 + $0x14] sm:$0xf]
  %v484 = vld [vmem:[%s6 + $0x18] sm:$0xf]
  %v485 = vld [vmem:[%s6 + $0x1c] sm:$0xf]
  %v486 = vld [vmem:[%s6 + $0x20] sm:$0xf]
  %v487 = vld [vmem:[%s6 + $0x24] sm:$0xf]
  %v488 = vld [vmem:[%s6 + $0x28] sm:$0xf]
  %v489 = vld [vmem:[%s6 + $0x2c] sm:$0xf]
  %v490 = vld [vmem:[%s6 + $0x30] sm:$0xf]
  %v491 = vld [vmem:[%s6 + $0x34] sm:$0xf]
  %v492 = vld [vmem:[%s6 + $0x38] sm:$0xf]
  %v493 = vld [vmem:[%s6 + $0x3c] sm:$0xf]
  %v494 = vld [vmem:[%s7] sm:$0x1]
  %v496 = vlaneseq
  %v497 = vshrl.u32 %v496, 7
  %v498 = vsub.s32 0, %v497
  %v499 = vrot.slane %v494, %v498
  %v517 = vunpack.c.l.b16 %v478
  %v518 = vunpack.c.l.b16 %v479
  %v519 = vunpack.c.l.b16 %v480
  %v520 = vunpack.c.l.b16 %v481
  %v521 = vunpack.c.l.b16 %v482
  %v522 = vunpack.c.l.b16 %v483
  %v523 = vunpack.c.l.b16 %v484
  %v524 = vunpack.c.l.b16 %v485
  %v525 = vunpack.c.l.b16 %v486
  %v526 = vunpack.c.l.b16 %v487
  %v527 = vunpack.c.l.b16 %v488
  %v528 = vunpack.c.l.b16 %v489
  %v529 = vunpack.c.l.b16 %v490
  %v530 = vunpack.c.l.b16 %v491
  %v531 = vunpack.c.l.b16 %v492
  %v532 = vunpack.c.l.b16 %v493
  %v533 = vpack.c.b16 %v518, %v517
  %v534 = vpack.c.b16 %v520, %v519
  %v535 = vpack.c.b16 %v522, %v521
  %v536 = vpack.c.b16 %v524, %v523
  %v537 = vpack.c.b16 %v526, %v525
  %v538 = vpack.c.b16 %v528, %v527
  %v539 = vpack.c.b16 %v530, %v529
  %v540 = vpack.c.b16 %v532, %v531
  %549 = vmatprep.subr.bf16.mxu0 0
  %550 = vmatpush1.bf16.msra.mxu0 %v533
  %551 = vmatprep.subr.bf16.mxu0 0
  %552 = vmatpush1.bf16.msra.mxu0 %v534
  %553 = vmatprep.subr.bf16.mxu0 0
  %554 = vmatpush1.bf16.msra.mxu0 %v535
  %555 = vmatprep.subr.bf16.mxu0 0
  %556 = vmatpush1.bf16.msra.mxu0 %v536
  %557 = vmatprep.subr.bf16.mxu0 0
  %558 = vmatpush1.bf16.msra.mxu0 %v537
  %559 = vmatprep.subr.bf16.mxu0 0
  %560 = vmatpush1.bf16.msra.mxu0 %v538
  %561 = vmatprep.subr.bf16.mxu0 0
  %562 = vmatpush1.bf16.msra.mxu0 %v539
  %563 = vmatprep.subr.bf16.mxu0 0
  %564 = vmatpush1.bf16.msra.mxu0 %v540
  %565 = vmatprep.subr.bf16.mxu0 0
  %566 = vmatpush1.bf16.msra.mxu0 0
  %567 = vmatprep.subr.bf16.mxu0 0
  %568 = vmatpush1.bf16.msra.mxu0 0
  %569 = vmatprep.subr.bf16.mxu0 0
  %570 = vmatpush1.bf16.msra.mxu0 0
  %571 = vmatprep.subr.bf16.mxu0 0
  %572 = vmatpush1.bf16.msra.mxu0 0
  %573 = vmatprep.subr.bf16.mxu0 0
  %574 = vmatpush1.bf16.msra.mxu0 0
  %575 = vmatprep.subr.bf16.mxu0 0
  %576 = vmatpush1.bf16.msra.mxu0 0
  %577 = vmatprep.subr.bf16.mxu0 0
  %578 = vmatpush1.bf16.msra.mxu0 0
  %579 = vmatprep.subr.bf16.mxu0 0
  %580 = vmatpush1.bf16.msra.mxu0 0
  %581 = vmatprep.mubr.bf16.mxu0 0
  %582 = vmatmul.mubr.bf16.gmra.mrb[0].mxu0 %v470
  %v583 = vpop.f32.mrb[0].mxu0
  %v584 = vadd.f32 %v499, %v583
  %v585 = vpop.f32.mrb[0].mxu0
  %v586 = vpop.f32.mrb[0].mxu0
  %v587 = vadd.f32 %v499, %v586
  %v588 = vpop.f32.mrb[0].mxu0
  %589 = vmatprep.mubr.bf16.mxu0 0
  %590 = vmatmul.mubr.bf16.gmra.mrb[0].mxu0 %v471
  %v591 = vpop.f32.mrb[0].mxu0
  %v592 = vadd.f32 %v499, %v591
  %v593 = vpop.f32.mrb[0].mxu0
  %v594 = vpop.f32.mrb[0].mxu0
  %v595 = vadd.f32 %v499, %v594
  %v596 = vpop.f32.mrb[0].mxu0
  %597 = vmatprep.mubr.bf16.mxu0 0
  %598 = vmatmul.mubr.bf16.gmra.mrb[0].mxu0 %v472
  %v599 = vpop.f32.mrb[0].mxu0
  %v600 = vadd.f32 %v499, %v599
  %v601 = vpop.f32.mrb[0].mxu0
  %v602 = vpop.f32.mrb[0].mxu0
  %v603 = vadd.f32 %v499, %v602
  %v604 = vpop.f32.mrb[0].mxu0
  %605 = vmatprep.mubr.bf16.mxu0 0
  %606 = vmatmul.mubr.bf16.gmra.mrb[0].mxu0 %v473
  %v607 = vpop.f32.mrb[0].mxu0
  %v608 = vadd.f32 %v499, %v607
  %v609 = vpop.f32.mrb[0].mxu0
  %v610 = vpop.f32.mrb[0].mxu0
  %v611 = vadd.f32 %v499, %v610
  %v612 = vpop.f32.mrb[0].mxu0
  %613 = vmatprep.mubr.bf16.mxu0 0
  %614 = vmatmul.mubr.bf16.gmra.mrb[0].mxu0 %v474
  %v615 = vpop.f32.mrb[0].mxu0
  %v616 = vadd.f32 %v499, %v615
  %v617 = vpop.f32.mrb[0].mxu0
  %v618 = vpop.f32.mrb[0].mxu0
  %v619 = vadd.f32 %v499, %v618
  %v620 = vpop.f32.mrb[0].mxu0
  %621 = vmatprep.mubr.bf16.mxu0 0
  %622 = vmatmul.mubr.bf16.gmra.mrb[0].mxu0 %v475
  %v623 = vpop.f32.mrb[0].mxu0
  %v624 = vadd.f32 %v499, %v623
  %v625 = vpop.f32.mrb[0].mxu0
  %v626 = vpop.f32.mrb[0].mxu0
  %v627 = vadd.f32 %v499, %v626
  %v628 = vpop.f32.mrb[0].mxu0
  %629 = vmatprep.mubr.bf16.mxu0 0
  %630 = vmatmul.mubr.bf16.gmra.mrb[0].mxu0 %v476
  %v631 = vpop.f32.mrb[0].mxu0
  %v632 = vadd.f32 %v499, %v631
  %v633 = vpop.f32.mrb[0].mxu0
  %v634 = vpop.f32.mrb[0].mxu0
  %v635 = vadd.f32 %v499, %v634
  %v636 = vpop.f32.mrb[0].mxu0
  %637 = vmatprep.mubr.bf16.mxu0 0
  %638 = vmatmul.mubr.bf16.gmra.mrb[0].mxu0 %v477
  %v639 = vpop.f32.mrb[0].mxu0
  %v640 = vadd.f32 %v499, %v639
  %v641 = vpop.f32.mrb[0].mxu0
  %v642 = vpop.f32.mrb[0].mxu0
  %v643 = vadd.f32 %v499, %v642
  %v644 = vpop.f32.mrb[0].mxu0
  %645 = vdwg.mxu0
  %v646 = vmax.f32 %v584, 0.0
  %v647 = vmax.f32 %v587, 0.0
  %v648 = vmax.f32 %v592, 0.0
  %v649 = vmax.f32 %v595, 0.0
  %v650 = vmax.f32 %v600, 0.0
  %v651 = vmax.f32 %v603, 0.0
  %v652 = vmax.f32 %v608, 0.0
  %v653 = vmax.f32 %v611, 0.0
  %v654 = vmax.f32 %v616, 0.0
  %v655 = vmax.f32 %v619, 0.0
  %v656 = vmax.f32 %v624, 0.0
  %v657 = vmax.f32 %v627, 0.0
  %v658 = vmax.f32 %v632, 0.0
  %v659 = vmax.f32 %v635, 0.0
  %v660 = vmax.f32 %v640, 0.0
  %v661 = vmax.f32 %v643, 0.0
  %v662 = vld [vmem:[%s1] sm:$0xff]
  %v663 = vld [vmem:[%s1 + $0x8] sm:$0xff]
  %v664 = vlaneseq
  %v665 = vshrl.u32 %v664, 7
  %v666 = vsub.s32 0, %v665
  %v667 = vrot.slane %v662, %v666
  %669 = vbcast.lane.b32.xlu0 %v667, 256
  %v670 = vpop.permute.xlu0 %669
  %v671 = vlaneseq
  %v672 = vshrl.u32 %v671, 7
  %v673 = vsub.s32 1, %v672
  %v674 = vrot.slane %v662, %v673
  %676 = vbcast.lane.b32.xlu0 %v674, 256
  %v677 = vpop.permute.xlu0 %676
  %v678 = vlaneseq
  %v679 = vshrl.u32 %v678, 7
  %v680 = vsub.s32 2, %v679
  %v681 = vrot.slane %v662, %v680
  %683 = vbcast.lane.b32.xlu0 %v681, 256
  %v684 = vpop.permute.xlu0 %683
  %v685 = vlaneseq
  %v686 = vshrl.u32 %v685, 7
  %v687 = vsub.s32 3, %v686
  %v688 = vrot.slane %v662, %v687
  %690 = vbcast.lane.b32.xlu0 %v688, 256
  %v691 = vpop.permute.xlu0 %690
  %v692 = vlaneseq
  %v693 = vshrl.u32 %v692, 7
  %v694 = vsub.s32 4, %v693
  %v695 = vrot.slane %v662, %v694
  %697 = vbcast.lane.b32.xlu0 %v695, 256
  %v698 = vpop.permute.xlu0 %697
  %v699 = vlaneseq
  %v700 = vshrl.u32 %v699, 7
  %v701 = vsub.s32 5, %v700
  %v702 = vrot.slane %v662, %v701
  %704 = vbcast.lane.b32.xlu0 %v702, 256
  %v705 = vpop.permute.xlu0 %704
  %v706 = vlaneseq
  %v707 = vshrl.u32 %v706, 7
  %v708 = vsub.s32 6, %v707
  %v709 = vrot.slane %v662, %v708
  %711 = vbcast.lane.b32.xlu0 %v709, 256
  %v712 = vpop.permute.xlu0 %711
  %v713 = vlaneseq
  %v714 = vshrl.u32 %v713, 7
  %v715 = vsub.s32 7, %v714
  %v716 = vrot.slane %v662, %v715
  %718 = vbcast.lane.b32.xlu0 %v716, 256
  %v719 = vpop.permute.xlu0 %718
  %v720 = vlaneseq
  %v721 = vshrl.u32 %v720, 7
  %v722 = vsub.s32 0, %v721
  %v723 = vrot.slane %v663, %v722
  %725 = vbcast.lane.b32.xlu0 %v723, 256
  %v726 = vpop.permute.xlu0 %725
  %v727 = vlaneseq
  %v728 = vshrl.u32 %v727, 7
  %v729 = vsub.s32 1, %v728
  %v730 = vrot.slane %v663, %v729
  %732 = vbcast.lane.b32.xlu0 %v730, 256
  %v733 = vpop.permute.xlu0 %732
  %v734 = vlaneseq
  %v735 = vshrl.u32 %v734, 7
  %v736 = vsub.s32 2, %v735
  %v737 = vrot.slane %v663, %v736
  %739 = vbcast.lane.b32.xlu0 %v737, 256
  %v740 = vpop.permute.xlu0 %739
  %v741 = vlaneseq
  %v742 = vshrl.u32 %v741, 7
  %v743 = vsub.s32 3, %v742
  %v744 = vrot.slane %v663, %v743
  %746 = vbcast.lane.b32.xlu0 %v744, 256
  %v747 = vpop.permute.xlu0 %746
  %v748 = vlaneseq
  %v749 = vshrl.u32 %v748, 7
  %v750 = vsub.s32 4, %v749
  %v751 = vrot.slane %v663, %v750
  %753 = vbcast.lane.b32.xlu0 %v751, 256
  %v754 = vpop.permute.xlu0 %753
  %v755 = vlaneseq
  %v756 = vshrl.u32 %v755, 7
  %v757 = vsub.s32 5, %v756
  %v758 = vrot.slane %v663, %v757
  %760 = vbcast.lane.b32.xlu0 %v758, 256
  %v761 = vpop.permute.xlu0 %760
  %v762 = vlaneseq
  %v763 = vshrl.u32 %v762, 7
  %v764 = vsub.s32 6, %v763
  %v765 = vrot.slane %v663, %v764
  %767 = vbcast.lane.b32.xlu0 %v765, 256
  %v768 = vpop.permute.xlu0 %767
  %v769 = vlaneseq
  %v770 = vshrl.u32 %v769, 7
  %v771 = vsub.s32 7, %v770
  %v772 = vrot.slane %v663, %v771
  %774 = vbcast.lane.b32.xlu0 %v772, 256
  %v775 = vpop.permute.xlu0 %774
  %vm776 = vcmp.gt.f32.partialorder %v670, 0.0
  %vm777 = vcmp.gt.f32.partialorder %v677, 0.0
  %vm778 = vcmp.gt.f32.partialorder %v684, 0.0
  %vm779 = vcmp.gt.f32.partialorder %v691, 0.0
  %vm780 = vcmp.gt.f32.partialorder %v698, 0.0
  %vm781 = vcmp.gt.f32.partialorder %v705, 0.0
  %vm782 = vcmp.gt.f32.partialorder %v712, 0.0
  %vm783 = vcmp.gt.f32.partialorder %v719, 0.0
  %vm784 = vcmp.gt.f32.partialorder %v726, 0.0
  %vm785 = vcmp.gt.f32.partialorder %v733, 0.0
  %vm786 = vcmp.gt.f32.partialorder %v740, 0.0
  %vm787 = vcmp.gt.f32.partialorder %v747, 0.0
  %vm788 = vcmp.gt.f32.partialorder %v754, 0.0
  %vm789 = vcmp.gt.f32.partialorder %v761, 0.0
  %vm790 = vcmp.gt.f32.partialorder %v768, 0.0
  %vm791 = vcmp.gt.f32.partialorder %v775, 0.0
  %v792 = vsel %vm776, 1, 0
  %v793 = vsel %vm777, 1, 0
  %v794 = vsel %vm778, 1, 0
  %v795 = vsel %vm779, 1, 0
  %v796 = vsel %vm780, 1, 0
  %v797 = vsel %vm781, 1, 0
  %v798 = vsel %vm782, 1, 0
  %v799 = vsel %vm783, 1, 0
  %v800 = vsel %vm784, 1, 0
  %v801 = vsel %vm785, 1, 0
  %v802 = vsel %vm786, 1, 0
  %v803 = vsel %vm787, 1, 0
  %v804 = vsel %vm788, 1, 0
  %v805 = vsel %vm789, 1, 0
  %v806 = vsel %vm790, 1, 0
  %v807 = vsel %vm791, 1, 0
  %vm808 = vcmp.eq.s32.totalorder %v792, 1
  %vm809 = vcmp.eq.s32.totalorder %v793, 1
  %vm810 = vcmp.eq.s32.totalorder %v794, 1
  %vm811 = vcmp.eq.s32.totalorder %v795, 1
  %vm812 = vcmp.eq.s32.totalorder %v796, 1
  %vm813 = vcmp.eq.s32.totalorder %v797, 1
  %vm814 = vcmp.eq.s32.totalorder %v798, 1
  %vm815 = vcmp.eq.s32.totalorder %v799, 1
  %vm816 = vcmp.eq.s32.totalorder %v800, 1
  %vm817 = vcmp.eq.s32.totalorder %v801, 1
  %vm818 = vcmp.eq.s32.totalorder %v802, 1
  %vm819 = vcmp.eq.s32.totalorder %v803, 1
  %vm820 = vcmp.eq.s32.totalorder %v804, 1
  %vm821 = vcmp.eq.s32.totalorder %v805, 1
  %vm822 = vcmp.eq.s32.totalorder %v806, 1
  %vm823 = vcmp.eq.s32.totalorder %v807, 1
  %v824 = vsel %vm808, %v646, -1e+30
  %v825 = vsel %vm809, %v647, -1e+30
  %v826 = vsel %vm810, %v648, -1e+30
  %v827 = vsel %vm811, %v649, -1e+30
  %v828 = vsel %vm812, %v650, -1e+30
  %v829 = vsel %vm813, %v651, -1e+30
  %v830 = vsel %vm814, %v652, -1e+30
  %v831 = vsel %vm815, %v653, -1e+30
  %v832 = vsel %vm816, %v654, -1e+30
  %v833 = vsel %vm817, %v655, -1e+30
  %v834 = vsel %vm818, %v656, -1e+30
  %v835 = vsel %vm819, %v657, -1e+30
  %v836 = vsel %vm820, %v658, -1e+30
  %v837 = vsel %vm821, %v659, -1e+30
  %v838 = vsel %vm822, %v660, -1e+30
  %v839 = vsel %vm823, %v661, -1e+30
  %v840 = vrot.slane %v824, 4
  %v841 = vmax.f32 %v824, %v840
  %v842 = vrot.slane %v841, 2
  %v843 = vmax.f32 %v841, %v842
  %v844 = vrot.slane %v843, 1
  %v845 = vmax.f32 %v843, %v844
  %v846 = vrot.slane %v825, 4
  %v847 = vmax.f32 %v825, %v846
  %v848 = vrot.slane %v847, 2
  %v849 = vmax.f32 %v847, %v848
  %v850 = vrot.slane %v849, 1
  %v851 = vmax.f32 %v849, %v850
  %v852 = vrot.slane %v826, 4
  %v853 = vmax.f32 %v826, %v852
  %v854 = vrot.slane %v853, 2
  %v855 = vmax.f32 %v853, %v854
  %v856 = vrot.slane %v855, 1
  %v857 = vmax.f32 %v855, %v856
  %v858 = vrot.slane %v827, 4
  %v859 = vmax.f32 %v827, %v858
  %v860 = vrot.slane %v859, 2
  %v861 = vmax.f32 %v859, %v860
  %v862 = vrot.slane %v861, 1
  %v863 = vmax.f32 %v861, %v862
  %v864 = vrot.slane %v828, 4
  %v865 = vmax.f32 %v828, %v864
  %v866 = vrot.slane %v865, 2
  %v867 = vmax.f32 %v865, %v866
  %v868 = vrot.slane %v867, 1
  %v869 = vmax.f32 %v867, %v868
  %v870 = vrot.slane %v829, 4
  %v871 = vmax.f32 %v829, %v870
  %v872 = vrot.slane %v871, 2
  %v873 = vmax.f32 %v871, %v872
  %v874 = vrot.slane %v873, 1
  %v875 = vmax.f32 %v873, %v874
  %v876 = vrot.slane %v830, 4
  %v877 = vmax.f32 %v830, %v876
  %v878 = vrot.slane %v877, 2
  %v879 = vmax.f32 %v877, %v878
  %v880 = vrot.slane %v879, 1
  %v881 = vmax.f32 %v879, %v880
  %v882 = vrot.slane %v831, 4
  %v883 = vmax.f32 %v831, %v882
  %v884 = vrot.slane %v883, 2
  %v885 = vmax.f32 %v883, %v884
  %v886 = vrot.slane %v885, 1
  %v887 = vmax.f32 %v885, %v886
  %v888 = vrot.slane %v832, 4
  %v889 = vmax.f32 %v832, %v888
  %v890 = vrot.slane %v889, 2
  %v891 = vmax.f32 %v889, %v890
  %v892 = vrot.slane %v891, 1
  %v893 = vmax.f32 %v891, %v892
  %v894 = vrot.slane %v833, 4
  %v895 = vmax.f32 %v833, %v894
  %v896 = vrot.slane %v895, 2
  %v897 = vmax.f32 %v895, %v896
  %v898 = vrot.slane %v897, 1
  %v899 = vmax.f32 %v897, %v898
  %v900 = vrot.slane %v834, 4
  %v901 = vmax.f32 %v834, %v900
  %v902 = vrot.slane %v901, 2
  %v903 = vmax.f32 %v901, %v902
  %v904 = vrot.slane %v903, 1
  %v905 = vmax.f32 %v903, %v904
  %v906 = vrot.slane %v835, 4
  %v907 = vmax.f32 %v835, %v906
  %v908 = vrot.slane %v907, 2
  %v909 = vmax.f32 %v907, %v908
  %v910 = vrot.slane %v909, 1
  %v911 = vmax.f32 %v909, %v910
  %v912 = vrot.slane %v836, 4
  %v913 = vmax.f32 %v836, %v912
  %v914 = vrot.slane %v913, 2
  %v915 = vmax.f32 %v913, %v914
  %v916 = vrot.slane %v915, 1
  %v917 = vmax.f32 %v915, %v916
  %v918 = vrot.slane %v837, 4
  %v919 = vmax.f32 %v837, %v918
  %v920 = vrot.slane %v919, 2
  %v921 = vmax.f32 %v919, %v920
  %v922 = vrot.slane %v921, 1
  %v923 = vmax.f32 %v921, %v922
  %v924 = vrot.slane %v838, 4
  %v925 = vmax.f32 %v838, %v924
  %v926 = vrot.slane %v925, 2
  %v927 = vmax.f32 %v925, %v926
  %v928 = vrot.slane %v927, 1
  %v929 = vmax.f32 %v927, %v928
  %v930 = vrot.slane %v839, 4
  %v931 = vmax.f32 %v839, %v930
  %v932 = vrot.slane %v931, 2
  %v933 = vmax.f32 %v931, %v932
  %v934 = vrot.slane %v933, 1
  %v935 = vmax.f32 %v933, %v934
  %vm952 = vcmask 1041409
  %v953 = vsel %vm952, %v851, %v845
  %vm954 = vcmask 1042434
  %v955 = vsel %vm954, %v857, %v953
  %vm956 = vcmask 1043459
  %v957 = vsel %vm956, %v863, %v955
  %vm958 = vcmask 1044484
  %v959 = vsel %vm958, %v869, %v957
  %vm960 = vcmask 1045509
  %v961 = vsel %vm960, %v875, %v959
  %vm962 = vcmask 1046534
  %v963 = vsel %vm962, %v881, %v961
  %vm964 = vcmask 1047559
  %v965 = vsel %vm964, %v887, %v963
  %v966 = vsel %vm952, %v899, %v893
  %v967 = vsel %vm954, %v905, %v966
  %v968 = vsel %vm956, %v911, %v967
  %v969 = vsel %vm958, %v917, %v968
  %v970 = vsel %vm960, %v923, %v969
  %v971 = vsel %vm962, %v929, %v970
  %v972 = vsel %vm964, %v935, %v971
  %975 = vst [vmem:[%s8] sm:$0xff] %v965
  %976 = vst [vmem:[%s8 + $0x8] sm:$0xff] %v972
  // Predicated region
  $region34: #{_lambda_.7} parent=0 // pred_check
    _
  $region35: #{_lambda_.7} parent=0 // pred_check_branch
    %978 = sbr.rel (0) target = $region37
  $region36: #{_lambda_.7} parent=0 // pred_region
    _
  $region37: #{_lambda_.7} parent=0 // pred_fallthru
    _
  // Predicated region
  $region38: #{_lambda_.7} parent=0 // pred_check
    _
  $region39: #{_lambda_.7} parent=0 // pred_check_branch
    %980 = sbr.rel (0) target = $region41
  $region40: #{_lambda_.7} parent=0 // pred_region
    _
  $region41: #{_lambda_.7} parent=0 // pred_fallthru
    _

// kernel: _lambda_.10
$region0: #{_lambda_.10}
  #allocation0 [shape = 'u32[]', space=smem, size = 0x4, offset = 0x4, fixed_abs, tag = 'smem constant byte address 0x4 - core index']
  #allocation1 [shape = 'u32[144,128]{1,0:T(1,128)}', space=vmem, size = 0x12000, scoped, tag = 'internal scratch']
  %s0 = inlined_call_operand.vmem [shape: bf16[8,128], index: 0, kind: input, shape index: {}]
  %s1 = inlined_call_operand.vmem [shape: bf16[128,128], index: 1, kind: input, shape index: {}]
  %s2 = inlined_call_operand.vmem [shape: f32[1,128], index: 2, kind: input, shape index: {}]
  %s3 = inlined_call_operand.vmem [shape: bf16[128,256], index: 3, kind: input, shape index: {}]
  %s4 = inlined_call_operand.vmem [shape: f32[1,256], index: 4, kind: input, shape index: {}]
  %s5 = inlined_call_operand.vmem [shape: f32[8,256], index: 5, kind: output, shape index: {}]
  %s6 = sld [smem:[#allocation0]]
  $region30: #{_lambda_.10} parent=0
    _
  %s8 = ssub.s32 1, %s6
  %s9 = scalar_select 0, %s8, %s6
  // Predicated region
  $region2: #{_lambda_.10} parent=0 // pred_check
    _
  $region3: #{_lambda_.10} parent=0 // pred_check_branch
    %11 = sbr.rel (0) target = $region5
  $region4: #{_lambda_.10} parent=0 // pred_region
    _
  $region5: #{_lambda_.10} parent=0 // pred_fallthru
    _
  // Predicated region
  $region6: #{_lambda_.10} parent=0 // pred_check
    _
  $region7: #{_lambda_.10} parent=0 // pred_check_branch
    %13 = sbr.rel (0) target = $region9
  $region8: #{_lambda_.10} parent=0 // pred_region
    _
  $region9: #{_lambda_.10} parent=0 // pred_fallthru
    _
  // Predicated region
  $region10: #{_lambda_.10} parent=0 // pred_check
    _
  $region11: #{_lambda_.10} parent=0 // pred_check_branch
    %15 = sbr.rel (0) target = $region13
  $region12: #{_lambda_.10} parent=0 // pred_region
    _
  $region13: #{_lambda_.10} parent=0 // pred_fallthru
    _
  // Predicated region
  $region14: #{_lambda_.10} parent=0 // pred_check
    _
  $region15: #{_lambda_.10} parent=0 // pred_check_branch
    %17 = sbr.rel (0) target = $region17
  $region16: #{_lambda_.10} parent=0 // pred_region
    _
  $region17: #{_lambda_.10} parent=0 // pred_fallthru
    _
  // Predicated region
  $region18: #{_lambda_.10} parent=0 // pred_check
    _
  $region19: #{_lambda_.10} parent=0 // pred_check_branch
    %19 = sbr.rel (0) target = $region21
  $region20: #{_lambda_.10} parent=0 // pred_region
    _
  $region21: #{_lambda_.10} parent=0 // pred_fallthru
    _
  %v21 = vld [vmem:[%s0] sm:$0xf]
  %v22 = vld [vmem:[%s1] sm:$0xf]
  %v23 = vld [vmem:[%s1 + $0x4] sm:$0xf]
  %v24 = vld [vmem:[%s1 + $0x8] sm:$0xf]
  %v25 = vld [vmem:[%s1 + $0xc] sm:$0xf]
  %v26 = vld [vmem:[%s1 + $0x10] sm:$0xf]
  %v27 = vld [vmem:[%s1 + $0x14] sm:$0xf]
  %v28 = vld [vmem:[%s1 + $0x18] sm:$0xf]
  %v29 = vld [vmem:[%s1 + $0x1c] sm:$0xf]
  %v30 = vld [vmem:[%s1 + $0x20] sm:$0xf]
  %v31 = vld [vmem:[%s1 + $0x24] sm:$0xf]
  %v32 = vld [vmem:[%s1 + $0x28] sm:$0xf]
  %v33 = vld [vmem:[%s1 + $0x2c] sm:$0xf]
  %v34 = vld [vmem:[%s1 + $0x30] sm:$0xf]
  %v35 = vld [vmem:[%s1 + $0x34] sm:$0xf]
  %v36 = vld [vmem:[%s1 + $0x38] sm:$0xf]
  %v37 = vld [vmem:[%s1 + $0x3c] sm:$0xf]
  %v38 = vld [vmem:[%s2] sm:$0x1]
  %v40 = vlaneseq
  %v41 = vshrl.u32 %v40, 7
  %v42 = vsub.s32 0, %v41
  %v43 = vrot.slane %v38, %v42
  %v61 = vunpack.c.l.b16 %v22
  %v62 = vunpack.c.l.b16 %v23
  %v63 = vunpack.c.l.b16 %v24
  %v64 = vunpack.c.l.b16 %v25
  %v65 = vunpack.c.l.b16 %v26
  %v66 = vunpack.c.l.b16 %v27
  %v67 = vunpack.c.l.b16 %v28
  %v68 = vunpack.c.l.b16 %v29
  %v69 = vunpack.c.l.b16 %v30
  %v70 = vunpack.c.l.b16 %v31
  %v71 = vunpack.c.l.b16 %v32
  %v72 = vunpack.c.l.b16 %v33
  %v73 = vunpack.c.l.b16 %v34
  %v74 = vunpack.c.l.b16 %v35
  %v75 = vunpack.c.l.b16 %v36
  %v76 = vunpack.c.l.b16 %v37
  %v77 = vpack.c.b16 %v62, %v61
  %v78 = vpack.c.b16 %v64, %v63
  %v79 = vpack.c.b16 %v66, %v65
  %v80 = vpack.c.b16 %v68, %v67
  %v81 = vpack.c.b16 %v70, %v69
  %v82 = vpack.c.b16 %v72, %v71
  %v83 = vpack.c.b16 %v74, %v73
  %v84 = vpack.c.b16 %v76, %v75
  %93 = vmatprep.subr.bf16.mxu0 0
  %94 = vmatpush1.bf16.msra.mxu0 %v77
  %95 = vmatprep.subr.bf16.mxu0 0
  %96 = vmatpush1.bf16.msra.mxu0 %v78
  %97 = vmatprep.subr.bf16.mxu0 0
  %98 = vmatpush1.bf16.msra.mxu0 %v79
  %99 = vmatprep.subr.bf16.mxu0 0
  %100 = vmatpush1.bf16.msra.mxu0 %v80
  %101 = vmatprep.subr.bf16.mxu0 0
  %102 = vmatpush1.bf16.msra.mxu0 %v81
  %103 = vmatprep.subr.bf16.mxu0 0
  %104 = vmatpush1.bf16.msra.mxu0 %v82
  %105 = vmatprep.subr.bf16.mxu0 0
  %106 = vmatpush1.bf16.msra.mxu0 %v83
  %107 = vmatprep.subr.bf16.mxu0 0
  %108 = vmatpush1.bf16.msra.mxu0 %v84
  %109 = vmatprep.subr.bf16.mxu0 0
  %110 = vmatpush1.bf16.msra.mxu0 0
  %111 = vmatprep.subr.bf16.mxu0 0
  %112 = vmatpush1.bf16.msra.mxu0 0
  %113 = vmatprep.subr.bf16.mxu0 0
  %114 = vmatpush1.bf16.msra.mxu0 0
  %115 = vmatprep.subr.bf16.mxu0 0
  %116 = vmatpush1.bf16.msra.mxu0 0
  %117 = vmatprep.subr.bf16.mxu0 0
  %118 = vmatpush1.bf16.msra.mxu0 0
  %119 = vmatprep.subr.bf16.mxu0 0
  %120 = vmatpush1.bf16.msra.mxu0 0
  %121 = vmatprep.subr.bf16.mxu0 0
  %122 = vmatpush1.bf16.msra.mxu0 0
  %123 = vmatprep.subr.bf16.mxu0 0
  %124 = vmatpush1.bf16.msra.mxu0 0
  %125 = vmatprep.mubr.bf16.mxu0 0
  %126 = vmatmul.mubr.bf16.gmra.mrb[0].mxu0 %v21
  %v127 = vpop.f32.mrb[0].mxu0
  %v128 = vadd.f32 %v43, %v127
  %v129 = vpop.f32.mrb[0].mxu0
  %v130 = vpop.f32.mrb[0].mxu0
  %v131 = vpop.f32.mrb[0].mxu0
  %132 = vdwg.mxu0
  %v133 = vmax.f32 %v128, 0.0
  %v134 = vpack.c.bf16 %v133, %v133
  %v135 = vld [vmem:[%s3] sm:$0xff]
  %v136 = vld [vmem:[%s3 + $0x8] sm:$0xff]
  %v137 = vld [vmem:[%s3 + $0x10] sm:$0xff]
  %v138 = vld [vmem:[%s3 + $0x18] sm:$0xff]
  %v139 = vld [vmem:[%s3 + $0x20] sm:$0xff]
  %v140 = vld [vmem:[%s3 + $0x28] sm:$0xff]
  %v141 = vld [vmem:[%s3 + $0x30] sm:$0xff]
  %v142 = vld [vmem:[%s3 + $0x38] sm:$0xff]
  %v143 = vld [vmem:[%s3 + $0x40] sm:$0xff]
  %v144 = vld [vmem:[%s3 + $0x48] sm:$0xff]
  %v145 = vld [vmem:[%s3 + $0x50] sm:$0xff]
  %v146 = vld [vmem:[%s3 + $0x58] sm:$0xff]
  %v147 = vld [vmem:[%s3 + $0x60] sm:$0xff]
  %v148 = vld [vmem:[%s3 + $0x68] sm:$0xff]
  %v149 = vld [vmem:[%s3 + $0x70] sm:$0xff]
  %v150 = vld [vmem:[%s3 + $0x78] sm:$0xff]
  %v151 = vld [vmem:[%s4] sm:$0x3]
  %v153 = vlaneseq
  %v154 = vshrl.u32 %v153, 7
  %v155 = vsub.s32 0, %v154
  %v156 = vrot.slane %v151, %v155
  %v157 = vlaneseq
  %v158 = vshrl.u32 %v157, 7
  %v159 = vsub.s32 1, %v158
  %v160 = vrot.slane %v151, %v159
  %v179 = vunpack.c.l.b16 %v135
  %v180 = vunpack.c.h.b16 %v135
  %v181 = vunpack.c.l.b16 %v136
  %v182 = vunpack.c.h.b16 %v136
  %v183 = vunpack.c.l.b16 %v137
  %v184 = vunpack.c.h.b16 %v137
  %v185 = vunpack.c.l.b16 %v138
  %v186 = vunpack.c.h.b16 %v138
  %v187 = vunpack.c.l.b16 %v139
  %v188 = vunpack.c.h.b16 %v139
  %v189 = vunpack.c.l.b16 %v140
  %v190 = vunpack.c.h.b16 %v140
  %v191 = vunpack.c.l.b16 %v141
  %v192 = vunpack.c.h.b16 %v141
  %v193 = vunpack.c.l.b16 %v142
  %v194 = vunpack.c.h.b16 %v142
  %v195 = vunpack.c.l.b16 %v143
  %v196 = vunpack.c.h.b16 %v143
  %v197 = vunpack.c.l.b16 %v144
  %v198 = vunpack.c.h.b16 %v144
  %v199 = vunpack.c.l.b16 %v145
  %v200 = vunpack.c.h.b16 %v145
  %v201 = vunpack.c.l.b16 %v146
  %v202 = vunpack.c.h.b16 %v146
  %v203 = vunpack.c.l.b16 %v147
  %v204 = vunpack.c.h.b16 %v147
  %v205 = vunpack.c.l.b16 %v148
  %v206 = vunpack.c.h.b16 %v148
  %v207 = vunpack.c.l.b16 %v149
  %v208 = vunpack.c.h.b16 %v149
  %v209 = vunpack.c.l.b16 %v150
  %v210 = vunpack.c.h.b16 %v150
  %v211 = vpack.c.b16 %v181, %v179
  %v212 = vpack.c.b16 %v182, %v180
  %v213 = vpack.c.b16 %v185, %v183
  %v214 = vpack.c.b16 %v186, %v184
  %v215 = vpack.c.b16 %v189, %v187
  %v216 = vpack.c.b16 %v190, %v188
  %v217 = vpack.c.b16 %v193, %v191
  %v218 = vpack.c.b16 %v194, %v192
  %v219 = vpack.c.b16 %v197, %v195
  %v220 = vpack.c.b16 %v198, %v196
  %v221 = vpack.c.b16 %v201, %v199
  %v222 = vpack.c.b16 %v202, %v200
  %v223 = vpack.c.b16 %v205, %v203
  %v224 = vpack.c.b16 %v206, %v204
  %v225 = vpack.c.b16 %v209, %v207
  %v226 = vpack.c.b16 %v210, %v208
  %243 = vmatprep.subr.bf16.mxu0 %v212
  %244 = vmatpush1.bf16.msra.mxu0 %v211
  %245 = vmatprep.subr.bf16.mxu0 %v214
  %246 = vmatpush1.bf16.msra.mxu0 %v213
  %247 = vmatprep.subr.bf16.mxu0 %v216
  %248 = vmatpush1.bf16.msra.mxu0 %v215
  %249 = vmatprep.subr.bf16.mxu0 %v218
  %250 = vmatpush1.bf16.msra.mxu0 %v217
  %251 = vmatprep.subr.bf16.mxu0 %v220
  %252 = vmatpush1.bf16.msra.mxu0 %v219
  %253 = vmatprep.subr.bf16.mxu0 %v222
  %254 = vmatpush1.bf16.msra.mxu0 %v221
  %255 = vmatprep.subr.bf16.mxu0 %v224
  %256 = vmatpush1.bf16.msra.mxu0 %v223
  %257 = vmatprep.subr.bf16.mxu0 %v226
  %258 = vmatpush1.bf16.msra.mxu0 %v225
  %259 = vmatprep.subr.bf16.mxu0 0
  %260 = vmatpush1.bf16.msra.mxu0 0
  %261 = vmatprep.subr.bf16.mxu0 0
  %262 = vmatpush1.bf16.msra.mxu0 0
  %263 = vmatprep.subr.bf16.mxu0 0
  %264 = vmatpush1.bf16.msra.mxu0 0
  %265 = vmatprep.subr.bf16.mxu0 0
  %266 = vmatpush1.bf16.msra.mxu0 0
  %267 = vmatprep.subr.bf16.mxu0 0
  %268 = vmatpush1.bf16.msra.mxu0 0
  %269 = vmatprep.subr.bf16.mxu0 0
  %270 = vmatpush1.bf16.msra.mxu0 0
  %271 = vmatprep.subr.bf16.mxu0 0
  %272 = vmatpush1.bf16.msra.mxu0 0
  %273 = vmatprep.subr.bf16.mxu0 0
  %274 = vmatpush1.bf16.msra.mxu0 0
  %275 = vmatprep.mubr.bf16.mxu0 0
  %276 = vmatmul.mubr.bf16.gmra.mrb[0].mxu0 %v134
  %v277 = vpop.f32.mrb[0].mxu0
  %v278 = vadd.f32 %v156, %v277
  %v279 = vpop.f32.mrb[0].mxu0
  %v280 = vadd.f32 %v160, %v279
  %v281 = vpop.f32.mrb[0].mxu0
  %v282 = vpop.f32.mrb[0].mxu0
  %283 = vdwg.mxu0
  %v284 = vmax.f32 %v278, 0.0
  %v285 = vmax.f32 %v280, 0.0
  %286 = vst [vmem:[%s5] sm:$0xff] %v284
  %287 = vst [vmem:[%s5 + $0x8] sm:$0xff] %v285
  // Predicated region
  $region22: #{_lambda_.10} parent=0 // pred_check
    _
  $region23: #{_lambda_.10} parent=0 // pred_check_branch
    %289 = sbr.rel (0) target = $region25
  $region24: #{_lambda_.10} parent=0 // pred_region
    _
  $region25: #{_lambda_.10} parent=0 // pred_fallthru
    _
  // Predicated region
  $region26: #{_lambda_.10} parent=0 // pred_check
    _
  $region27: #{_lambda_.10} parent=0 // pred_check_branch
    %291 = sbr.rel (0) target = $region29
  $region28: #{_lambda_.10} parent=0 // pred_region
    _
  $region29: #{_lambda_.10} parent=0 // pred_fallthru
    _

// kernel: _lambda_.8
$region0: #{_lambda_.8}
  #allocation0 [shape = 'u32[]', space=smem, size = 0x4, offset = 0x4, fixed_abs, tag = 'smem constant byte address 0x4 - core index']
  #allocation1 [shape = 'u32[144,128]{1,0:T(1,128)}', space=vmem, size = 0x12000, scoped, tag = 'internal scratch']
  %s0 = inlined_call_operand.vmem [shape: bf16[64,128], index: 0, kind: input, shape index: {}]
  %s1 = inlined_call_operand.vmem [shape: f32[8,8], index: 1, kind: input, shape index: {}]
  %s2 = inlined_call_operand.vmem [shape: bf16[128,128], index: 2, kind: input, shape index: {}]
  %s3 = inlined_call_operand.vmem [shape: f32[1,128], index: 3, kind: input, shape index: {}]
  %s4 = inlined_call_operand.vmem [shape: bf16[128,128], index: 4, kind: input, shape index: {}]
  %s5 = inlined_call_operand.vmem [shape: f32[1,128], index: 5, kind: input, shape index: {}]
  %s6 = inlined_call_operand.vmem [shape: bf16[128,256], index: 6, kind: input, shape index: {}]
  %s7 = inlined_call_operand.vmem [shape: f32[1,256], index: 7, kind: input, shape index: {}]
  %s8 = inlined_call_operand.vmem [shape: f32[8,256], index: 8, kind: output, shape index: {}]
  %s9 = sld [smem:[#allocation0]]
  $region42: #{_lambda_.8} parent=0
    _
  %s11 = ssub.s32 1, %s9
  %s12 = scalar_select 0, %s11, %s9
  // Predicated region
  $region2: #{_lambda_.8} parent=0 // pred_check
    _
  $region3: #{_lambda_.8} parent=0 // pred_check_branch
    %14 = sbr.rel (0) target = $region5
  $region4: #{_lambda_.8} parent=0 // pred_region
    _
  $region5: #{_lambda_.8} parent=0 // pred_fallthru
    _
  // Predicated region
  $region6: #{_lambda_.8} parent=0 // pred_check
    _
  $region7: #{_lambda_.8} parent=0 // pred_check_branch
    %16 = sbr.rel (0) target = $region9
  $region8: #{_lambda_.8} parent=0 // pred_region
    _
  $region9: #{_lambda_.8} parent=0 // pred_fallthru
    _
  // Predicated region
  $region10: #{_lambda_.8} parent=0 // pred_check
    _
  $region11: #{_lambda_.8} parent=0 // pred_check_branch
    %18 = sbr.rel (0) target = $region13
  $region12: #{_lambda_.8} parent=0 // pred_region
    _
  $region13: #{_lambda_.8} parent=0 // pred_fallthru
    _
  // Predicated region
  $region14: #{_lambda_.8} parent=0 // pred_check
    _
  $region15: #{_lambda_.8} parent=0 // pred_check_branch
    %20 = sbr.rel (0) target = $region17
  $region16: #{_lambda_.8} parent=0 // pred_region
    _
  $region17: #{_lambda_.8} parent=0 // pred_fallthru
    _
  // Predicated region
  $region18: #{_lambda_.8} parent=0 // pred_check
    _
  $region19: #{_lambda_.8} parent=0 // pred_check_branch
    %22 = sbr.rel (0) target = $region21
  $region20: #{_lambda_.8} parent=0 // pred_region
    _
  $region21: #{_lambda_.8} parent=0 // pred_fallthru
    _
  // Predicated region
  $region22: #{_lambda_.8} parent=0 // pred_check
    _
  $region23: #{_lambda_.8} parent=0 // pred_check_branch
    %24 = sbr.rel (0) target = $region25
  $region24: #{_lambda_.8} parent=0 // pred_region
    _
  $region25: #{_lambda_.8} parent=0 // pred_fallthru
    _
  // Predicated region
  $region26: #{_lambda_.8} parent=0 // pred_check
    _
  $region27: #{_lambda_.8} parent=0 // pred_check_branch
    %26 = sbr.rel (0) target = $region29
  $region28: #{_lambda_.8} parent=0 // pred_region
    _
  $region29: #{_lambda_.8} parent=0 // pred_fallthru
    _
  // Predicated region
  $region30: #{_lambda_.8} parent=0 // pred_check
    _
  $region31: #{_lambda_.8} parent=0 // pred_check_branch
    %28 = sbr.rel (0) target = $region33
  $region32: #{_lambda_.8} parent=0 // pred_region
    _
  $region33: #{_lambda_.8} parent=0 // pred_fallthru
    _
  %v30 = vld [vmem:[%s0] sm:$0xf]
  %v31 = vld [vmem:[%s0 + $0x4] sm:$0xf]
  %v32 = vld [vmem:[%s0 + $0x8] sm:$0xf]
  %v33 = vld [vmem:[%s0 + $0xc] sm:$0xf]
  %v34 = vld [vmem:[%s0 + $0x10] sm:$0xf]
  %v35 = vld [vmem:[%s0 + $0x14] sm:$0xf]
  %v36 = vld [vmem:[%s0 + $0x18] sm:$0xf]
  %v37 = vld [vmem:[%s0 + $0x1c] sm:$0xf]
  %v38 = vld [vmem:[%s2] sm:$0xf]
  %v39 = vld [vmem:[%s2 + $0x4] sm:$0xf]
  %v40 = vld [vmem:[%s2 + $0x8] sm:$0xf]
  %v41 = vld [vmem:[%s2 + $0xc] sm:$0xf]
  %v42 = vld [vmem:[%s2 + $0x10] sm:$0xf]
  %v43 = vld [vmem:[%s2 + $0x14] sm:$0xf]
  %v44 = vld [vmem:[%s2 + $0x18] sm:$0xf]
  %v45 = vld [vmem:[%s2 + $0x1c] sm:$0xf]
  %v46 = vld [vmem:[%s2 + $0x20] sm:$0xf]
  %v47 = vld [vmem:[%s2 + $0x24] sm:$0xf]
  %v48 = vld [vmem:[%s2 + $0x28] sm:$0xf]
  %v49 = vld [vmem:[%s2 + $0x2c] sm:$0xf]
  %v50 = vld [vmem:[%s2 + $0x30] sm:$0xf]
  %v51 = vld [vmem:[%s2 + $0x34] sm:$0xf]
  %v52 = vld [vmem:[%s2 + $0x38] sm:$0xf]
  %v53 = vld [vmem:[%s2 + $0x3c] sm:$0xf]
  %v54 = vld [vmem:[%s3] sm:$0x1]
  %v56 = vlaneseq
  %v57 = vshrl.u32 %v56, 7
  %v58 = vsub.s32 0, %v57
  %v59 = vrot.slane %v54, %v58
  %v69 = vunpack.c.l.b16 %v30
  %v70 = vunpack.c.l.b16 %v31
  %v71 = vunpack.c.l.b16 %v32
  %v72 = vunpack.c.l.b16 %v33
  %v73 = vunpack.c.l.b16 %v34
  %v74 = vunpack.c.l.b16 %v35
  %v75 = vunpack.c.l.b16 %v36
  %v76 = vunpack.c.l.b16 %v37
  %v77 = vpack.c.b16 %v70, %v69
  %v78 = vpack.c.b16 %v72, %v71
  %v79 = vpack.c.b16 %v74, %v73
  %v80 = vpack.c.b16 %v76, %v75
  %v101 = vunpack.c.l.b16 %v38
  %v102 = vunpack.c.l.b16 %v39
  %v103 = vunpack.c.l.b16 %v40
  %v104 = vunpack.c.l.b16 %v41
  %v105 = vunpack.c.l.b16 %v42
  %v106 = vunpack.c.l.b16 %v43
  %v107 = vunpack.c.l.b16 %v44
  %v108 = vunpack.c.l.b16 %v45
  %v109 = vunpack.c.l.b16 %v46
  %v110 = vunpack.c.l.b16 %v47
  %v111 = vunpack.c.l.b16 %v48
  %v112 = vunpack.c.l.b16 %v49
  %v113 = vunpack.c.l.b16 %v50
  %v114 = vunpack.c.l.b16 %v51
  %v115 = vunpack.c.l.b16 %v52
  %v116 = vunpack.c.l.b16 %v53
  %v117 = vpack.c.b16 %v102, %v101
  %v118 = vpack.c.b16 %v104, %v103
  %v119 = vpack.c.b16 %v106, %v105
  %v120 = vpack.c.b16 %v108, %v107
  %v121 = vpack.c.b16 %v110, %v109
  %v122 = vpack.c.b16 %v112, %v111
  %v123 = vpack.c.b16 %v114, %v113
  %v124 = vpack.c.b16 %v116, %v115
  %133 = vmatprep.subr.bf16.mxu0 0
  %134 = vmatpush1.bf16.msra.mxu0 %v117
  %135 = vmatprep.subr.bf16.mxu0 0
  %136 = vmatpush1.bf16.msra.mxu0 %v118
  %137 = vmatprep.subr.bf16.mxu0 0
  %138 = vmatpush1.bf16.msra.mxu0 %v119
  %139 = vmatprep.subr.bf16.mxu0 0
  %140 = vmatpush1.bf16.msra.mxu0 %v120
  %141 = vmatprep.subr.bf16.mxu0 0
  %142 = vmatpush1.bf16.msra.mxu0 %v121
  %143 = vmatprep.subr.bf16.mxu0 0
  %144 = vmatpush1.bf16.msra.mxu0 %v122
  %145 = vmatprep.subr.bf16.mxu0 0
  %146 = vmatpush1.bf16.msra.mxu0 %v123
  %147 = vmatprep.subr.bf16.mxu0 0
  %148 = vmatpush1.bf16.msra.mxu0 %v124
  %149 = vmatprep.subr.bf16.mxu0 0
  %150 = vmatpush1.bf16.msra.mxu0 0
  %151 = vmatprep.subr.bf16.mxu0 0
  %152 = vmatpush1.bf16.msra.mxu0 0
  %153 = vmatprep.subr.bf16.mxu0 0
  %154 = vmatpush1.bf16.msra.mxu0 0
  %155 = vmatprep.subr.bf16.mxu0 0
  %156 = vmatpush1.bf16.msra.mxu0 0
  %157 = vmatprep.subr.bf16.mxu0 0
  %158 = vmatpush1.bf16.msra.mxu0 0
  %159 = vmatprep.subr.bf16.mxu0 0
  %160 = vmatpush1.bf16.msra.mxu0 0
  %161 = vmatprep.subr.bf16.mxu0 0
  %162 = vmatpush1.bf16.msra.mxu0 0
  %163 = vmatprep.subr.bf16.mxu0 0
  %164 = vmatpush1.bf16.msra.mxu0 0
  %165 = vmatprep.mubr.bf16.mxu0 0
  %166 = vmatmul.mubr.bf16.gmra.mrb[0].mxu0 %v77
  %v167 = vpop.f32.mrb[0].mxu0
  %v168 = vadd.f32 %v59, %v167
  %v169 = vpop.f32.mrb[0].mxu0
  %v170 = vpop.f32.mrb[0].mxu0
  %v171 = vadd.f32 %v59, %v170
  %v172 = vpop.f32.mrb[0].mxu0
  %173 = vmatprep.mubr.bf16.mxu0 0
  %174 = vmatmul.mubr.bf16.gmra.mrb[0].mxu0 %v78
  %v175 = vpop.f32.mrb[0].mxu0
  %v176 = vadd.f32 %v59, %v175
  %v177 = vpop.f32.mrb[0].mxu0
  %v178 = vpop.f32.mrb[0].mxu0
  %v179 = vadd.f32 %v59, %v178
  %v180 = vpop.f32.mrb[0].mxu0
  %181 = vmatprep.mubr.bf16.mxu0 0
  %182 = vmatmul.mubr.bf16.gmra.mrb[0].mxu0 %v79
  %v183 = vpop.f32.mrb[0].mxu0
  %v184 = vadd.f32 %v59, %v183
  %v185 = vpop.f32.mrb[0].mxu0
  %v186 = vpop.f32.mrb[0].mxu0
  %v187 = vadd.f32 %v59, %v186
  %v188 = vpop.f32.mrb[0].mxu0
  %189 = vmatprep.mubr.bf16.mxu0 0
  %190 = vmatmul.mubr.bf16.gmra.mrb[0].mxu0 %v80
  %v191 = vpop.f32.mrb[0].mxu0
  %v192 = vadd.f32 %v59, %v191
  %v193 = vpop.f32.mrb[0].mxu0
  %v194 = vpop.f32.mrb[0].mxu0
  %v195 = vadd.f32 %v59, %v194
  %v196 = vpop.f32.mrb[0].mxu0
  %197 = vdwg.mxu0
  %v198 = vmax.f32 %v168, 0.0
  %v199 = vmax.f32 %v171, 0.0
  %v200 = vmax.f32 %v176, 0.0
  %v201 = vmax.f32 %v179, 0.0
  %v202 = vmax.f32 %v184, 0.0
  %v203 = vmax.f32 %v187, 0.0
  %v204 = vmax.f32 %v192, 0.0
  %v205 = vmax.f32 %v195, 0.0
  %v206 = vpack.c.bf16 %v199, %v198
  %v207 = vpack.c.bf16 %v201, %v200
  %v208 = vpack.c.bf16 %v203, %v202
  %v209 = vpack.c.bf16 %v205, %v204
  %v210 = vld [vmem:[%s4] sm:$0xf]
  %v211 = vld [vmem:[%s4 + $0x4] sm:$0xf]
  %v212 = vld [vmem:[%s4 + $0x8] sm:$0xf]
  %v213 = vld [vmem:[%s4 + $0xc] sm:$0xf]
  %v214 = vld [vmem:[%s4 + $0x10] sm:$0xf]
  %v215 = vld [vmem:[%s4 + $0x14] sm:$0xf]
  %v216 = vld [vmem:[%s4 + $0x18] sm:$0xf]
  %v217 = vld [vmem:[%s4 + $0x1c] sm:$0xf]
  %v218 = vld [vmem:[%s4 + $0x20] sm:$0xf]
  %v219 = vld [vmem:[%s4 + $0x24] sm:$0xf]
  %v220 = vld [vmem:[%s4 + $0x28] sm:$0xf]
  %v221 = vld [vmem:[%s4 + $0x2c] sm:$0xf]
  %v222 = vld [vmem:[%s4 + $0x30] sm:$0xf]
  %v223 = vld [vmem:[%s4 + $0x34] sm:$0xf]
  %v224 = vld [vmem:[%s4 + $0x38] sm:$0xf]
  %v225 = vld [vmem:[%s4 + $0x3c] sm:$0xf]
  %v226 = vld [vmem:[%s5] sm:$0x1]
  %v228 = vlaneseq
  %v229 = vshrl.u32 %v228, 7
  %v230 = vsub.s32 0, %v229
  %v231 = vrot.slane %v226, %v230
  %v249 = vunpack.c.l.b16 %v210
  %v250 = vunpack.c.l.b16 %v211
  %v251 = vunpack.c.l.b16 %v212
  %v252 = vunpack.c.l.b16 %v213
  %v253 = vunpack.c.l.b16 %v214
  %v254 = vunpack.c.l.b16 %v215
  %v255 = vunpack.c.l.b16 %v216
  %v256 = vunpack.c.l.b16 %v217
  %v257 = vunpack.c.l.b16 %v218
  %v258 = vunpack.c.l.b16 %v219
  %v259 = vunpack.c.l.b16 %v220
  %v260 = vunpack.c.l.b16 %v221
  %v261 = vunpack.c.l.b16 %v222
  %v262 = vunpack.c.l.b16 %v223
  %v263 = vunpack.c.l.b16 %v224
  %v264 = vunpack.c.l.b16 %v225
  %v265 = vpack.c.b16 %v250, %v249
  %v266 = vpack.c.b16 %v252, %v251
  %v267 = vpack.c.b16 %v254, %v253
  %v268 = vpack.c.b16 %v256, %v255
  %v269 = vpack.c.b16 %v258, %v257
  %v270 = vpack.c.b16 %v260, %v259
  %v271 = vpack.c.b16 %v262, %v261
  %v272 = vpack.c.b16 %v264, %v263
  %281 = vmatprep.subr.bf16.mxu0 0
  %282 = vmatpush1.bf16.msra.mxu0 %v265
  %283 = vmatprep.subr.bf16.mxu0 0
  %284 = vmatpush1.bf16.msra.mxu0 %v266
  %285 = vmatprep.subr.bf16.mxu0 0
  %286 = vmatpush1.bf16.msra.mxu0 %v267
  %287 = vmatprep.subr.bf16.mxu0 0
  %288 = vmatpush1.bf16.msra.mxu0 %v268
  %289 = vmatprep.subr.bf16.mxu0 0
  %290 = vmatpush1.bf16.msra.mxu0 %v269
  %291 = vmatprep.subr.bf16.mxu0 0
  %292 = vmatpush1.bf16.msra.mxu0 %v270
  %293 = vmatprep.subr.bf16.mxu0 0
  %294 = vmatpush1.bf16.msra.mxu0 %v271
  %295 = vmatprep.subr.bf16.mxu0 0
  %296 = vmatpush1.bf16.msra.mxu0 %v272
  %297 = vmatprep.subr.bf16.mxu0 0
  %298 = vmatpush1.bf16.msra.mxu0 0
  %299 = vmatprep.subr.bf16.mxu0 0
  %300 = vmatpush1.bf16.msra.mxu0 0
  %301 = vmatprep.subr.bf16.mxu0 0
  %302 = vmatpush1.bf16.msra.mxu0 0
  %303 = vmatprep.subr.bf16.mxu0 0
  %304 = vmatpush1.bf16.msra.mxu0 0
  %305 = vmatprep.subr.bf16.mxu0 0
  %306 = vmatpush1.bf16.msra.mxu0 0
  %307 = vmatprep.subr.bf16.mxu0 0
  %308 = vmatpush1.bf16.msra.mxu0 0
  %309 = vmatprep.subr.bf16.mxu0 0
  %310 = vmatpush1.bf16.msra.mxu0 0
  %311 = vmatprep.subr.bf16.mxu0 0
  %312 = vmatpush1.bf16.msra.mxu0 0
  %313 = vmatprep.mubr.bf16.mxu0 0
  %314 = vmatmul.mubr.bf16.gmra.mrb[0].mxu0 %v206
  %v315 = vpop.f32.mrb[0].mxu0
  %v316 = vadd.f32 %v231, %v315
  %v317 = vpop.f32.mrb[0].mxu0
  %v318 = vpop.f32.mrb[0].mxu0
  %v319 = vadd.f32 %v231, %v318
  %v320 = vpop.f32.mrb[0].mxu0
  %321 = vmatprep.mubr.bf16.mxu0 0
  %322 = vmatmul.mubr.bf16.gmra.mrb[0].mxu0 %v207
  %v323 = vpop.f32.mrb[0].mxu0
  %v324 = vadd.f32 %v231, %v323
  %v325 = vpop.f32.mrb[0].mxu0
  %v326 = vpop.f32.mrb[0].mxu0
  %v327 = vadd.f32 %v231, %v326
  %v328 = vpop.f32.mrb[0].mxu0
  %329 = vmatprep.mubr.bf16.mxu0 0
  %330 = vmatmul.mubr.bf16.gmra.mrb[0].mxu0 %v208
  %v331 = vpop.f32.mrb[0].mxu0
  %v332 = vadd.f32 %v231, %v331
  %v333 = vpop.f32.mrb[0].mxu0
  %v334 = vpop.f32.mrb[0].mxu0
  %v335 = vadd.f32 %v231, %v334
  %v336 = vpop.f32.mrb[0].mxu0
  %337 = vmatprep.mubr.bf16.mxu0 0
  %338 = vmatmul.mubr.bf16.gmra.mrb[0].mxu0 %v209
  %v339 = vpop.f32.mrb[0].mxu0
  %v340 = vadd.f32 %v231, %v339
  %v341 = vpop.f32.mrb[0].mxu0
  %v342 = vpop.f32.mrb[0].mxu0
  %v343 = vadd.f32 %v231, %v342
  %v344 = vpop.f32.mrb[0].mxu0
  %345 = vdwg.mxu0
  %v346 = vmax.f32 %v316, 0.0
  %v347 = vmax.f32 %v319, 0.0
  %v348 = vmax.f32 %v324, 0.0
  %v349 = vmax.f32 %v327, 0.0
  %v350 = vmax.f32 %v332, 0.0
  %v351 = vmax.f32 %v335, 0.0
  %v352 = vmax.f32 %v340, 0.0
  %v353 = vmax.f32 %v343, 0.0
  %v354 = vpack.c.bf16 %v347, %v346
  %v355 = vpack.c.bf16 %v349, %v348
  %v356 = vpack.c.bf16 %v351, %v350
  %v357 = vpack.c.bf16 %v353, %v352
  %v358 = vld [vmem:[%s6] sm:$0xff]
  %v359 = vld [vmem:[%s6 + $0x8] sm:$0xff]
  %v360 = vld [vmem:[%s6 + $0x10] sm:$0xff]
  %v361 = vld [vmem:[%s6 + $0x18] sm:$0xff]
  %v362 = vld [vmem:[%s6 + $0x20] sm:$0xff]
  %v363 = vld [vmem:[%s6 + $0x28] sm:$0xff]
  %v364 = vld [vmem:[%s6 + $0x30] sm:$0xff]
  %v365 = vld [vmem:[%s6 + $0x38] sm:$0xff]
  %v366 = vld [vmem:[%s6 + $0x40] sm:$0xff]
  %v367 = vld [vmem:[%s6 + $0x48] sm:$0xff]
  %v368 = vld [vmem:[%s6 + $0x50] sm:$0xff]
  %v369 = vld [vmem:[%s6 + $0x58] sm:$0xff]
  %v370 = vld [vmem:[%s6 + $0x60] sm:$0xff]
  %v371 = vld [vmem:[%s6 + $0x68] sm:$0xff]
  %v372 = vld [vmem:[%s6 + $0x70] sm:$0xff]
  %v373 = vld [vmem:[%s6 + $0x78] sm:$0xff]
  %v374 = vld [vmem:[%s7] sm:$0x3]
  %v376 = vlaneseq
  %v377 = vshrl.u32 %v376, 7
  %v378 = vsub.s32 0, %v377
  %v379 = vrot.slane %v374, %v378
  %v380 = vlaneseq
  %v381 = vshrl.u32 %v380, 7
  %v382 = vsub.s32 1, %v381
  %v383 = vrot.slane %v374, %v382
  %v402 = vunpack.c.l.b16 %v358
  %v403 = vunpack.c.h.b16 %v358
  %v404 = vunpack.c.l.b16 %v359
  %v405 = vunpack.c.h.b16 %v359
  %v406 = vunpack.c.l.b16 %v360
  %v407 = vunpack.c.h.b16 %v360
  %v408 = vunpack.c.l.b16 %v361
  %v409 = vunpack.c.h.b16 %v361
  %v410 = vunpack.c.l.b16 %v362
  %v411 = vunpack.c.h.b16 %v362
  %v412 = vunpack.c.l.b16 %v363
  %v413 = vunpack.c.h.b16 %v363
  %v414 = vunpack.c.l.b16 %v364
  %v415 = vunpack.c.h.b16 %v364
  %v416 = vunpack.c.l.b16 %v365
  %v417 = vunpack.c.h.b16 %v365
  %v418 = vunpack.c.l.b16 %v366
  %v419 = vunpack.c.h.b16 %v366
  %v420 = vunpack.c.l.b16 %v367
  %v421 = vunpack.c.h.b16 %v367
  %v422 = vunpack.c.l.b16 %v368
  %v423 = vunpack.c.h.b16 %v368
  %v424 = vunpack.c.l.b16 %v369
  %v425 = vunpack.c.h.b16 %v369
  %v426 = vunpack.c.l.b16 %v370
  %v427 = vunpack.c.h.b16 %v370
  %v428 = vunpack.c.l.b16 %v371
  %v429 = vunpack.c.h.b16 %v371
  %v430 = vunpack.c.l.b16 %v372
  %v431 = vunpack.c.h.b16 %v372
  %v432 = vunpack.c.l.b16 %v373
  %v433 = vunpack.c.h.b16 %v373
  %v434 = vpack.c.b16 %v404, %v402
  %v435 = vpack.c.b16 %v405, %v403
  %v436 = vpack.c.b16 %v408, %v406
  %v437 = vpack.c.b16 %v409, %v407
  %v438 = vpack.c.b16 %v412, %v410
  %v439 = vpack.c.b16 %v413, %v411
  %v440 = vpack.c.b16 %v416, %v414
  %v441 = vpack.c.b16 %v417, %v415
  %v442 = vpack.c.b16 %v420, %v418
  %v443 = vpack.c.b16 %v421, %v419
  %v444 = vpack.c.b16 %v424, %v422
  %v445 = vpack.c.b16 %v425, %v423
  %v446 = vpack.c.b16 %v428, %v426
  %v447 = vpack.c.b16 %v429, %v427
  %v448 = vpack.c.b16 %v432, %v430
  %v449 = vpack.c.b16 %v433, %v431
  %466 = vmatprep.subr.bf16.mxu0 %v435
  %467 = vmatpush1.bf16.msra.mxu0 %v434
  %468 = vmatprep.subr.bf16.mxu0 %v437
  %469 = vmatpush1.bf16.msra.mxu0 %v436
  %470 = vmatprep.subr.bf16.mxu0 %v439
  %471 = vmatpush1.bf16.msra.mxu0 %v438
  %472 = vmatprep.subr.bf16.mxu0 %v441
  %473 = vmatpush1.bf16.msra.mxu0 %v440
  %474 = vmatprep.subr.bf16.mxu0 %v443
  %475 = vmatpush1.bf16.msra.mxu0 %v442
  %476 = vmatprep.subr.bf16.mxu0 %v445
  %477 = vmatpush1.bf16.msra.mxu0 %v444
  %478 = vmatprep.subr.bf16.mxu0 %v447
  %479 = vmatpush1.bf16.msra.mxu0 %v446
  %480 = vmatprep.subr.bf16.mxu0 %v449
  %481 = vmatpush1.bf16.msra.mxu0 %v448
  %482 = vmatprep.subr.bf16.mxu0 0
  %483 = vmatpush1.bf16.msra.mxu0 0
  %484 = vmatprep.subr.bf16.mxu0 0
  %485 = vmatpush1.bf16.msra.mxu0 0
  %486 = vmatprep.subr.bf16.mxu0 0
  %487 = vmatpush1.bf16.msra.mxu0 0
  %488 = vmatprep.subr.bf16.mxu0 0
  %489 = vmatpush1.bf16.msra.mxu0 0
  %490 = vmatprep.subr.bf16.mxu0 0
  %491 = vmatpush1.bf16.msra.mxu0 0
  %492 = vmatprep.subr.bf16.mxu0 0
  %493 = vmatpush1.bf16.msra.mxu0 0
  %494 = vmatprep.subr.bf16.mxu0 0
  %495 = vmatpush1.bf16.msra.mxu0 0
  %496 = vmatprep.subr.bf16.mxu0 0
  %497 = vmatpush1.bf16.msra.mxu0 0
  %498 = vmatprep.mubr.bf16.mxu0 0
  %499 = vmatmul.mubr.bf16.gmra.mrb[0].mxu0 %v354
  %v500 = vpop.f32.mrb[0].mxu0
  %v501 = vadd.f32 %v379, %v500
  %v502 = vpop.f32.mrb[0].mxu0
  %v503 = vadd.f32 %v383, %v502
  %v504 = vpop.f32.mrb[0].mxu0
  %v505 = vadd.f32 %v379, %v504
  %v506 = vpop.f32.mrb[0].mxu0
  %v507 = vadd.f32 %v383, %v506
  %508 = vmatprep.mubr.bf16.mxu0 0
  %509 = vmatmul.mubr.bf16.gmra.mrb[0].mxu0 %v355
  %v510 = vpop.f32.mrb[0].mxu0
  %v511 = vadd.f32 %v379, %v510
  %v512 = vpop.f32.mrb[0].mxu0
  %v513 = vadd.f32 %v383, %v512
  %v514 = vpop.f32.mrb[0].mxu0
  %v515 = vadd.f32 %v379, %v514
  %v516 = vpop.f32.mrb[0].mxu0
  %v517 = vadd.f32 %v383, %v516
  %518 = vmatprep.mubr.bf16.mxu0 0
  %519 = vmatmul.mubr.bf16.gmra.mrb[0].mxu0 %v356
  %v520 = vpop.f32.mrb[0].mxu0
  %v521 = vadd.f32 %v379, %v520
  %v522 = vpop.f32.mrb[0].mxu0
  %v523 = vadd.f32 %v383, %v522
  %v524 = vpop.f32.mrb[0].mxu0
  %v525 = vadd.f32 %v379, %v524
  %v526 = vpop.f32.mrb[0].mxu0
  %v527 = vadd.f32 %v383, %v526
  %528 = vmatprep.mubr.bf16.mxu0 0
  %529 = vmatmul.mubr.bf16.gmra.mrb[0].mxu0 %v357
  %v530 = vpop.f32.mrb[0].mxu0
  %v531 = vadd.f32 %v379, %v530
  %v532 = vpop.f32.mrb[0].mxu0
  %v533 = vadd.f32 %v383, %v532
  %v534 = vpop.f32.mrb[0].mxu0
  %v535 = vadd.f32 %v379, %v534
  %v536 = vpop.f32.mrb[0].mxu0
  %v537 = vadd.f32 %v383, %v536
  %538 = vdwg.mxu0
  %v539 = vmax.f32 %v501, 0.0
  %v540 = vmax.f32 %v503, 0.0
  %v541 = vmax.f32 %v505, 0.0
  %v542 = vmax.f32 %v507, 0.0
  %v543 = vmax.f32 %v511, 0.0
  %v544 = vmax.f32 %v513, 0.0
  %v545 = vmax.f32 %v515, 0.0
  %v546 = vmax.f32 %v517, 0.0
  %v547 = vmax.f32 %v521, 0.0
  %v548 = vmax.f32 %v523, 0.0
  %v549 = vmax.f32 %v525, 0.0
  %v550 = vmax.f32 %v527, 0.0
  %v551 = vmax.f32 %v531, 0.0
  %v552 = vmax.f32 %v533, 0.0
  %v553 = vmax.f32 %v535, 0.0
  %v554 = vmax.f32 %v537, 0.0
  %v555 = vld [vmem:[%s1] sm:$0xff]
  %v556 = vlaneseq
  %v557 = vshrl.u32 %v556, 7
  %v558 = vsub.s32 0, %v557
  %v559 = vrot.slane %v555, %v558
  %561 = vbcast.lane.b32.xlu0 %v559, 256
  %v562 = vpop.permute.xlu0 %561
  %v563 = vlaneseq
  %v564 = vshrl.u32 %v563, 7
  %v565 = vsub.s32 1, %v564
  %v566 = vrot.slane %v555, %v565
  %568 = vbcast.lane.b32.xlu0 %v566, 256
  %v569 = vpop.permute.xlu0 %568
  %v570 = vlaneseq
  %v571 = vshrl.u32 %v570, 7
  %v572 = vsub.s32 2, %v571
  %v573 = vrot.slane %v555, %v572
  %575 = vbcast.lane.b32.xlu0 %v573, 256
  %v576 = vpop.permute.xlu0 %575
  %v577 = vlaneseq
  %v578 = vshrl.u32 %v577, 7
  %v579 = vsub.s32 3, %v578
  %v580 = vrot.slane %v555, %v579
  %582 = vbcast.lane.b32.xlu0 %v580, 256
  %v583 = vpop.permute.xlu0 %582
  %v584 = vlaneseq
  %v585 = vshrl.u32 %v584, 7
  %v586 = vsub.s32 4, %v585
  %v587 = vrot.slane %v555, %v586
  %589 = vbcast.lane.b32.xlu0 %v587, 256
  %v590 = vpop.permute.xlu0 %589
  %v591 = vlaneseq
  %v592 = vshrl.u32 %v591, 7
  %v593 = vsub.s32 5, %v592
  %v594 = vrot.slane %v555, %v593
  %596 = vbcast.lane.b32.xlu0 %v594, 256
  %v597 = vpop.permute.xlu0 %596
  %v598 = vlaneseq
  %v599 = vshrl.u32 %v598, 7
  %v600 = vsub.s32 6, %v599
  %v601 = vrot.slane %v555, %v600
  %603 = vbcast.lane.b32.xlu0 %v601, 256
  %v604 = vpop.permute.xlu0 %603
  %v605 = vlaneseq
  %v606 = vshrl.u32 %v605, 7
  %v607 = vsub.s32 7, %v606
  %v608 = vrot.slane %v555, %v607
  %610 = vbcast.lane.b32.xlu0 %v608, 256
  %v611 = vpop.permute.xlu0 %610
  %vm612 = vcmp.gt.f32.partialorder %v562, 0.0
  %vm613 = vcmp.gt.f32.partialorder %v569, 0.0
  %vm614 = vcmp.gt.f32.partialorder %v576, 0.0
  %vm615 = vcmp.gt.f32.partialorder %v583, 0.0
  %vm616 = vcmp.gt.f32.partialorder %v590, 0.0
  %vm617 = vcmp.gt.f32.partialorder %v597, 0.0
  %vm618 = vcmp.gt.f32.partialorder %v604, 0.0
  %vm619 = vcmp.gt.f32.partialorder %v611, 0.0
  %v620 = vsel %vm612, 1, 0
  %v621 = vsel %vm613, 1, 0
  %v622 = vsel %vm614, 1, 0
  %v623 = vsel %vm615, 1, 0
  %v624 = vsel %vm616, 1, 0
  %v625 = vsel %vm617, 1, 0
  %v626 = vsel %vm618, 1, 0
  %v627 = vsel %vm619, 1, 0
  %vm628 = vcmp.eq.s32.totalorder %v620, 1
  %vm629 = vcmp.eq.s32.totalorder %v621, 1
  %vm630 = vcmp.eq.s32.totalorder %v622, 1
  %vm631 = vcmp.eq.s32.totalorder %v623, 1
  %vm632 = vcmp.eq.s32.totalorder %v624, 1
  %vm633 = vcmp.eq.s32.totalorder %v625, 1
  %vm634 = vcmp.eq.s32.totalorder %v626, 1
  %vm635 = vcmp.eq.s32.totalorder %v627, 1
  %v636 = vsel %vm628, %v539, -1e+30
  %v637 = vsel %vm628, %v540, -1e+30
  %v638 = vsel %vm629, %v541, -1e+30
  %v639 = vsel %vm629, %v542, -1e+30
  %v640 = vsel %vm630, %v543, -1e+30
  %v641 = vsel %vm630, %v544, -1e+30
  %v642 = vsel %vm631, %v545, -1e+30
  %v643 = vsel %vm631, %v546, -1e+30
  %v644 = vsel %vm632, %v547, -1e+30
  %v645 = vsel %vm632, %v548, -1e+30
  %v646 = vsel %vm633, %v549, -1e+30
  %v647 = vsel %vm633, %v550, -1e+30
  %v648 = vsel %vm634, %v551, -1e+30
  %v649 = vsel %vm634, %v552, -1e+30
  %v650 = vsel %vm635, %v553, -1e+30
  %v651 = vsel %vm635, %v554, -1e+30
  %v652 = vrot.slane %v636, 4
  %v653 = vmax.f32 %v636, %v652
  %v654 = vrot.slane %v653, 2
  %v655 = vmax.f32 %v653, %v654
  %v656 = vrot.slane %v655, 1
  %v657 = vmax.f32 %v655, %v656
  %v658 = vrot.slane %v637, 4
  %v659 = vmax.f32 %v637, %v658
  %v660 = vrot.slane %v659, 2
  %v661 = vmax.f32 %v659, %v660
  %v662 = vrot.slane %v661, 1
  %v663 = vmax.f32 %v661, %v662
  %v664 = vrot.slane %v638, 4
  %v665 = vmax.f32 %v638, %v664
  %v666 = vrot.slane %v665, 2
  %v667 = vmax.f32 %v665, %v666
  %v668 = vrot.slane %v667, 1
  %v669 = vmax.f32 %v667, %v668
  %v670 = vrot.slane %v639, 4
  %v671 = vmax.f32 %v639, %v670
  %v672 = vrot.slane %v671, 2
  %v673 = vmax.f32 %v671, %v672
  %v674 = vrot.slane %v673, 1
  %v675 = vmax.f32 %v673, %v674
  %v676 = vrot.slane %v640, 4
  %v677 = vmax.f32 %v640, %v676
  %v678 = vrot.slane %v677, 2
  %v679 = vmax.f32 %v677, %v678
  %v680 = vrot.slane %v679, 1
  %v681 = vmax.f32 %v679, %v680
  %v682 = vrot.slane %v641, 4
  %v683 = vmax.f32 %v641, %v682
  %v684 = vrot.slane %v683, 2
  %v685 = vmax.f32 %v683, %v684
  %v686 = vrot.slane %v685, 1
  %v687 = vmax.f32 %v685, %v686
  %v688 = vrot.slane %v642, 4
  %v689 = vmax.f32 %v642, %v688
  %v690 = vrot.slane %v689, 2
  %v691 = vmax.f32 %v689, %v690
  %v692 = vrot.slane %v691, 1
  %v693 = vmax.f32 %v691, %v692
  %v694 = vrot.slane %v643, 4
  %v695 = vmax.f32 %v643, %v694
  %v696 = vrot.slane %v695, 2
  %v697 = vmax.f32 %v695, %v696
  %v698 = vrot.slane %v697, 1
  %v699 = vmax.f32 %v697, %v698
  %v700 = vrot.slane %v644, 4
  %v701 = vmax.f32 %v644, %v700
  %v702 = vrot.slane %v701, 2
  %v703 = vmax.f32 %v701, %v702
  %v704 = vrot.slane %v703, 1
  %v705 = vmax.f32 %v703, %v704
  %v706 = vrot.slane %v645, 4
  %v707 = vmax.f32 %v645, %v706
  %v708 = vrot.slane %v707, 2
  %v709 = vmax.f32 %v707, %v708
  %v710 = vrot.slane %v709, 1
  %v711 = vmax.f32 %v709, %v710
  %v712 = vrot.slane %v646, 4
  %v713 = vmax.f32 %v646, %v712
  %v714 = vrot.slane %v713, 2
  %v715 = vmax.f32 %v713, %v714
  %v716 = vrot.slane %v715, 1
  %v717 = vmax.f32 %v715, %v716
  %v718 = vrot.slane %v647, 4
  %v719 = vmax.f32 %v647, %v718
  %v720 = vrot.slane %v719, 2
  %v721 = vmax.f32 %v719, %v720
  %v722 = vrot.slane %v721, 1
  %v723 = vmax.f32 %v721, %v722
  %v724 = vrot.slane %v648, 4
  %v725 = vmax.f32 %v648, %v724
  %v726 = vrot.slane %v725, 2
  %v727 = vmax.f32 %v725, %v726
  %v728 = vrot.slane %v727, 1
  %v729 = vmax.f32 %v727, %v728
  %v730 = vrot.slane %v649, 4
  %v731 = vmax.f32 %v649, %v730
  %v732 = vrot.slane %v731, 2
  %v733 = vmax.f32 %v731, %v732
  %v734 = vrot.slane %v733, 1
  %v735 = vmax.f32 %v733, %v734
  %v736 = vrot.slane %v650, 4
  %v737 = vmax.f32 %v650, %v736
  %v738 = vrot.slane %v737, 2
  %v739 = vmax.f32 %v737, %v738
  %v740 = vrot.slane %v739, 1
  %v741 = vmax.f32 %v739, %v740
  %v742 = vrot.slane %v651, 4
  %v743 = vmax.f32 %v651, %v742
  %v744 = vrot.slane %v743, 2
  %v745 = vmax.f32 %v743, %v744
  %v746 = vrot.slane %v745, 1
  %v747 = vmax.f32 %v745, %v746
  %vm764 = vcmask 1041409
  %v765 = vsel %vm764, %v669, %v657
  %vm766 = vcmask 1042434
  %v767 = vsel %vm766, %v681, %v765
  %vm768 = vcmask 1043459
  %v769 = vsel %vm768, %v693, %v767
  %vm770 = vcmask 1044484
  %v771 = vsel %vm770, %v705, %v769
  %vm772 = vcmask 1045509
  %v773 = vsel %vm772, %v717, %v771
  %vm774 = vcmask 1046534
  %v775 = vsel %vm774, %v729, %v773
  %vm776 = vcmask 1047559
  %v777 = vsel %vm776, %v741, %v775
  %v778 = vsel %vm764, %v675, %v663
  %v779 = vsel %vm766, %v687, %v778
  %v780 = vsel %vm768, %v699, %v779
  %v781 = vsel %vm770, %v711, %v780
  %v782 = vsel %vm772, %v723, %v781
  %v783 = vsel %vm774, %v735, %v782
  %v784 = vsel %vm776, %v747, %v783
  %787 = vst [vmem:[%s8] sm:$0xff] %v777
  %788 = vst [vmem:[%s8 + $0x8] sm:$0xff] %v784
  // Predicated region
  $region34: #{_lambda_.8} parent=0 // pred_check
    _
  $region35: #{_lambda_.8} parent=0 // pred_check_branch
    %790 = sbr.rel (0) target = $region37
  $region36: #{_lambda_.8} parent=0 // pred_region
    _
  $region37: #{_lambda_.8} parent=0 // pred_fallthru
    _
  // Predicated region
  $region38: #{_lambda_.8} parent=0 // pred_check
    _
  $region39: #{_lambda_.8} parent=0 // pred_check_branch
    %792 = sbr.rel (0) target = $region41
  $region40: #{_lambda_.8} parent=0 // pred_region
    _
  $region41: #{_lambda_.8} parent=0 // pred_fallthru
    _

// kernel: _lambda_.9
$region0: #{_lambda_.9}
  #allocation0 [shape = 'u32[]', space=smem, size = 0x4, offset = 0x4, fixed_abs, tag = 'smem constant byte address 0x4 - core index']
  #allocation1 [shape = 'u32[144,128]{1,0:T(1,128)}', space=vmem, size = 0x12000, scoped, tag = 'internal scratch']
  %s0 = inlined_call_operand.vmem [shape: bf16[8,256], index: 0, kind: input, shape index: {}]
  %s1 = inlined_call_operand.vmem [shape: bf16[256,128], index: 1, kind: input, shape index: {}]
  %s2 = inlined_call_operand.vmem [shape: f32[1,128], index: 2, kind: input, shape index: {}]
  %s3 = inlined_call_operand.vmem [shape: bf16[128,128], index: 3, kind: input, shape index: {}]
  %s4 = inlined_call_operand.vmem [shape: f32[1,128], index: 4, kind: input, shape index: {}]
  %s5 = inlined_call_operand.vmem [shape: f32[8,128], index: 5, kind: output, shape index: {}]
  %s6 = sld [smem:[#allocation0]]
  $region30: #{_lambda_.9} parent=0
    _
  %s8 = ssub.s32 1, %s6
  %s9 = scalar_select 0, %s8, %s6
  // Predicated region
  $region2: #{_lambda_.9} parent=0 // pred_check
    _
  $region3: #{_lambda_.9} parent=0 // pred_check_branch
    %11 = sbr.rel (0) target = $region5
  $region4: #{_lambda_.9} parent=0 // pred_region
    _
  $region5: #{_lambda_.9} parent=0 // pred_fallthru
    _
  // Predicated region
  $region6: #{_lambda_.9} parent=0 // pred_check
    _
  $region7: #{_lambda_.9} parent=0 // pred_check_branch
    %13 = sbr.rel (0) target = $region9
  $region8: #{_lambda_.9} parent=0 // pred_region
    _
  $region9: #{_lambda_.9} parent=0 // pred_fallthru
    _
  // Predicated region
  $region10: #{_lambda_.9} parent=0 // pred_check
    _
  $region11: #{_lambda_.9} parent=0 // pred_check_branch
    %15 = sbr.rel (0) target = $region13
  $region12: #{_lambda_.9} parent=0 // pred_region
    _
  $region13: #{_lambda_.9} parent=0 // pred_fallthru
    _
  // Predicated region
  $region14: #{_lambda_.9} parent=0 // pred_check
    _
  $region15: #{_lambda_.9} parent=0 // pred_check_branch
    %17 = sbr.rel (0) target = $region17
  $region16: #{_lambda_.9} parent=0 // pred_region
    _
  $region17: #{_lambda_.9} parent=0 // pred_fallthru
    _
  // Predicated region
  $region18: #{_lambda_.9} parent=0 // pred_check
    _
  $region19: #{_lambda_.9} parent=0 // pred_check_branch
    %19 = sbr.rel (0) target = $region21
  $region20: #{_lambda_.9} parent=0 // pred_region
    _
  $region21: #{_lambda_.9} parent=0 // pred_fallthru
    _
  %v21 = vld [vmem:[%s0] sm:$0xff]
  %v22 = vld [vmem:[%s1] sm:$0xf]
  %v23 = vld [vmem:[%s1 + $0x4] sm:$0xf]
  %v24 = vld [vmem:[%s1 + $0x8] sm:$0xf]
  %v25 = vld [vmem:[%s1 + $0xc] sm:$0xf]
  %v26 = vld [vmem:[%s1 + $0x10] sm:$0xf]
  %v27 = vld [vmem:[%s1 + $0x14] sm:$0xf]
  %v28 = vld [vmem:[%s1 + $0x18] sm:$0xf]
  %v29 = vld [vmem:[%s1 + $0x1c] sm:$0xf]
  %v30 = vld [vmem:[%s1 + $0x20] sm:$0xf]
  %v31 = vld [vmem:[%s1 + $0x24] sm:$0xf]
  %v32 = vld [vmem:[%s1 + $0x28] sm:$0xf]
  %v33 = vld [vmem:[%s1 + $0x2c] sm:$0xf]
  %v34 = vld [vmem:[%s1 + $0x30] sm:$0xf]
  %v35 = vld [vmem:[%s1 + $0x34] sm:$0xf]
  %v36 = vld [vmem:[%s1 + $0x38] sm:$0xf]
  %v37 = vld [vmem:[%s1 + $0x3c] sm:$0xf]
  %v38 = vld [vmem:[%s1 + $0x40] sm:$0xf]
  %v39 = vld [vmem:[%s1 + $0x44] sm:$0xf]
  %v40 = vld [vmem:[%s1 + $0x48] sm:$0xf]
  %v41 = vld [vmem:[%s1 + $0x4c] sm:$0xf]
  %v42 = vld [vmem:[%s1 + $0x50] sm:$0xf]
  %v43 = vld [vmem:[%s1 + $0x54] sm:$0xf]
  %v44 = vld [vmem:[%s1 + $0x58] sm:$0xf]
  %v45 = vld [vmem:[%s1 + $0x5c] sm:$0xf]
  %v46 = vld [vmem:[%s1 + $0x60] sm:$0xf]
  %v47 = vld [vmem:[%s1 + $0x64] sm:$0xf]
  %v48 = vld [vmem:[%s1 + $0x68] sm:$0xf]
  %v49 = vld [vmem:[%s1 + $0x6c] sm:$0xf]
  %v50 = vld [vmem:[%s1 + $0x70] sm:$0xf]
  %v51 = vld [vmem:[%s1 + $0x74] sm:$0xf]
  %v52 = vld [vmem:[%s1 + $0x78] sm:$0xf]
  %v53 = vld [vmem:[%s1 + $0x7c] sm:$0xf]
  %v54 = vld [vmem:[%s2] sm:$0x1]
  %v56 = vlaneseq
  %v57 = vshrl.u32 %v56, 7
  %v58 = vsub.s32 0, %v57
  %v59 = vrot.slane %v54, %v58
  %v62 = vunpack.c.l.b16 %v21
  %v63 = vunpack.c.h.b16 %v21
  %v64 = vpack.c.b16 %v62, %v62
  %v65 = vpack.c.b16 %v63, %v63
  %v100 = vunpack.c.l.b16 %v22
  %v101 = vunpack.c.l.b16 %v23
  %v102 = vunpack.c.l.b16 %v24
  %v103 = vunpack.c.l.b16 %v25
  %v104 = vunpack.c.l.b16 %v26
  %v105 = vunpack.c.l.b16 %v27
  %v106 = vunpack.c.l.b16 %v28
  %v107 = vunpack.c.l.b16 %v29
  %v108 = vunpack.c.l.b16 %v30
  %v109 = vunpack.c.l.b16 %v31
  %v110 = vunpack.c.l.b16 %v32
  %v111 = vunpack.c.l.b16 %v33
  %v112 = vunpack.c.l.b16 %v34
  %v113 = vunpack.c.l.b16 %v35
  %v114 = vunpack.c.l.b16 %v36
  %v115 = vunpack.c.l.b16 %v37
  %v116 = vunpack.c.l.b16 %v38
  %v117 = vunpack.c.l.b16 %v39
  %v118 = vunpack.c.l.b16 %v40
  %v119 = vunpack.c.l.b16 %v41
  %v120 = vunpack.c.l.b16 %v42
  %v121 = vunpack.c.l.b16 %v43
  %v122 = vunpack.c.l.b16 %v44
  %v123 = vunpack.c.l.b16 %v45
  %v124 = vunpack.c.l.b16 %v46
  %v125 = vunpack.c.l.b16 %v47
  %v126 = vunpack.c.l.b16 %v48
  %v127 = vunpack.c.l.b16 %v49
  %v128 = vunpack.c.l.b16 %v50
  %v129 = vunpack.c.l.b16 %v51
  %v130 = vunpack.c.l.b16 %v52
  %v131 = vunpack.c.l.b16 %v53
  %v132 = vpack.c.b16 %v101, %v100
  %v133 = vpack.c.b16 %v103, %v102
  %v134 = vpack.c.b16 %v105, %v104
  %v135 = vpack.c.b16 %v107, %v106
  %v136 = vpack.c.b16 %v109, %v108
  %v137 = vpack.c.b16 %v111, %v110
  %v138 = vpack.c.b16 %v113, %v112
  %v139 = vpack.c.b16 %v115, %v114
  %v140 = vpack.c.b16 %v117, %v116
  %v141 = vpack.c.b16 %v119, %v118
  %v142 = vpack.c.b16 %v121, %v120
  %v143 = vpack.c.b16 %v123, %v122
  %v144 = vpack.c.b16 %v125, %v124
  %v145 = vpack.c.b16 %v127, %v126
  %v146 = vpack.c.b16 %v129, %v128
  %v147 = vpack.c.b16 %v131, %v130
  %164 = vmatprep.subr.bf16.mxu0 0
  %165 = vmatpush1.bf16.msra.mxu0 %v132
  %166 = vmatprep.subr.bf16.mxu0 0
  %167 = vmatpush1.bf16.msra.mxu0 %v133
  %168 = vmatprep.subr.bf16.mxu0 0
  %169 = vmatpush1.bf16.msra.mxu0 %v134
  %170 = vmatprep.subr.bf16.mxu0 0
  %171 = vmatpush1.bf16.msra.mxu0 %v135
  %172 = vmatprep.subr.bf16.mxu0 0
  %173 = vmatpush1.bf16.msra.mxu0 %v136
  %174 = vmatprep.subr.bf16.mxu0 0
  %175 = vmatpush1.bf16.msra.mxu0 %v137
  %176 = vmatprep.subr.bf16.mxu0 0
  %177 = vmatpush1.bf16.msra.mxu0 %v138
  %178 = vmatprep.subr.bf16.mxu0 0
  %179 = vmatpush1.bf16.msra.mxu0 %v139
  %180 = vmatprep.subr.bf16.mxu0 0
  %181 = vmatpush1.bf16.msra.mxu0 %v140
  %182 = vmatprep.subr.bf16.mxu0 0
  %183 = vmatpush1.bf16.msra.mxu0 %v141
  %184 = vmatprep.subr.bf16.mxu0 0
  %185 = vmatpush1.bf16.msra.mxu0 %v142
  %186 = vmatprep.subr.bf16.mxu0 0
  %187 = vmatpush1.bf16.msra.mxu0 %v143
  %188 = vmatprep.subr.bf16.mxu0 0
  %189 = vmatpush1.bf16.msra.mxu0 %v144
  %190 = vmatprep.subr.bf16.mxu0 0
  %191 = vmatpush1.bf16.msra.mxu0 %v145
  %192 = vmatprep.subr.bf16.mxu0 0
  %193 = vmatpush1.bf16.msra.mxu0 %v146
  %194 = vmatprep.subr.bf16.mxu0 0
  %195 = vmatpush1.bf16.msra.mxu0 %v147
  %196 = vmatprep.mubr.bf16.mxu0 %v65
  %197 = vmatmul.mubr.bf16.gmra.mrb[0].mxu0 %v64
  %v198 = vpop.f32.mrb[0].mxu0
  %v199 = vadd.f32 %v59, %v198
  %v200 = vpop.f32.mrb[0].mxu0
  %v201 = vpop.f32.mrb[0].mxu0
  %v202 = vpop.f32.mrb[0].mxu0
  %203 = vdwg.mxu0
  %v204 = vmax.f32 %v199, 0.0
  %v205 = vpack.c.bf16 %v204, %v204
  %v206 = vld [vmem:[%s3] sm:$0xf]
  %v207 = vld [vmem:[%s3 + $0x4] sm:$0xf]
  %v208 = vld [vmem:[%s3 + $0x8] sm:$0xf]
  %v209 = vld [vmem:[%s3 + $0xc] sm:$0xf]
  %v210 = vld [vmem:[%s3 + $0x10] sm:$0xf]
  %v211 = vld [vmem:[%s3 + $0x14] sm:$0xf]
  %v212 = vld [vmem:[%s3 + $0x18] sm:$0xf]
  %v213 = vld [vmem:[%s3 + $0x1c] sm:$0xf]
  %v214 = vld [vmem:[%s3 + $0x20] sm:$0xf]
  %v215 = vld [vmem:[%s3 + $0x24] sm:$0xf]
  %v216 = vld [vmem:[%s3 + $0x28] sm:$0xf]
  %v217 = vld [vmem:[%s3 + $0x2c] sm:$0xf]
  %v218 = vld [vmem:[%s3 + $0x30] sm:$0xf]
  %v219 = vld [vmem:[%s3 + $0x34] sm:$0xf]
  %v220 = vld [vmem:[%s3 + $0x38] sm:$0xf]
  %v221 = vld [vmem:[%s3 + $0x3c] sm:$0xf]
  %v222 = vld [vmem:[%s4] sm:$0x1]
  %v224 = vlaneseq
  %v225 = vshrl.u32 %v224, 7
  %v226 = vsub.s32 0, %v225
  %v227 = vrot.slane %v222, %v226
  %v245 = vunpack.c.l.b16 %v206
  %v246 = vunpack.c.l.b16 %v207
  %v247 = vunpack.c.l.b16 %v208
  %v248 = vunpack.c.l.b16 %v209
  %v249 = vunpack.c.l.b16 %v210
  %v250 = vunpack.c.l.b16 %v211
  %v251 = vunpack.c.l.b16 %v212
  %v252 = vunpack.c.l.b16 %v213
  %v253 = vunpack.c.l.b16 %v214
  %v254 = vunpack.c.l.b16 %v215
  %v255 = vunpack.c.l.b16 %v216
  %v256 = vunpack.c.l.b16 %v217
  %v257 = vunpack.c.l.b16 %v218
  %v258 = vunpack.c.l.b16 %v219
  %v259 = vunpack.c.l.b16 %v220
  %v260 = vunpack.c.l.b16 %v221
  %v261 = vpack.c.b16 %v246, %v245
  %v262 = vpack.c.b16 %v248, %v247
  %v263 = vpack.c.b16 %v250, %v249
  %v264 = vpack.c.b16 %v252, %v251
  %v265 = vpack.c.b16 %v254, %v253
  %v266 = vpack.c.b16 %v256, %v255
  %v267 = vpack.c.b16 %v258, %v257
  %v268 = vpack.c.b16 %v260, %v259
  %277 = vmatprep.subr.bf16.mxu0 0
  %278 = vmatpush1.bf16.msra.mxu0 %v261
  %279 = vmatprep.subr.bf16.mxu0 0
  %280 = vmatpush1.bf16.msra.mxu0 %v262
  %281 = vmatprep.subr.bf16.mxu0 0
  %282 = vmatpush1.bf16.msra.mxu0 %v263
  %283 = vmatprep.subr.bf16.mxu0 0
  %284 = vmatpush1.bf16.msra.mxu0 %v264
  %285 = vmatprep.subr.bf16.mxu0 0
  %286 = vmatpush1.bf16.msra.mxu0 %v265
  %287 = vmatprep.subr.bf16.mxu0 0
  %288 = vmatpush1.bf16.msra.mxu0 %v266
  %289 = vmatprep.subr.bf16.mxu0 0
  %290 = vmatpush1.bf16.msra.mxu0 %v267
  %291 = vmatprep.subr.bf16.mxu0 0
  %292 = vmatpush1.bf16.msra.mxu0 %v268
  %293 = vmatprep.subr.bf16.mxu0 0
  %294 = vmatpush1.bf16.msra.mxu0 0
  %295 = vmatprep.subr.bf16.mxu0 0
  %296 = vmatpush1.bf16.msra.mxu0 0
  %297 = vmatprep.subr.bf16.mxu0 0
  %298 = vmatpush1.bf16.msra.mxu0 0
  %299 = vmatprep.subr.bf16.mxu0 0
  %300 = vmatpush1.bf16.msra.mxu0 0
  %301 = vmatprep.subr.bf16.mxu0 0
  %302 = vmatpush1.bf16.msra.mxu0 0
  %303 = vmatprep.subr.bf16.mxu0 0
  %304 = vmatpush1.bf16.msra.mxu0 0
  %305 = vmatprep.subr.bf16.mxu0 0
  %306 = vmatpush1.bf16.msra.mxu0 0
  %307 = vmatprep.subr.bf16.mxu0 0
  %308 = vmatpush1.bf16.msra.mxu0 0
  %309 = vmatprep.mubr.bf16.mxu0 0
  %310 = vmatmul.mubr.bf16.gmra.mrb[0].mxu0 %v205
  %v311 = vpop.f32.mrb[0].mxu0
  %v312 = vadd.f32 %v227, %v311
  %v313 = vpop.f32.mrb[0].mxu0
  %v314 = vpop.f32.mrb[0].mxu0
  %v315 = vpop.f32.mrb[0].mxu0
  %316 = vdwg.mxu0
  %317 = vst [vmem:[%s5] sm:$0xff] %v312
  // Predicated region
  $region22: #{_lambda_.9} parent=0 // pred_check
    _
  $region23: #{_lambda_.9} parent=0 // pred_check_branch
    %319 = sbr.rel (0) target = $region25
  $region24: #{_lambda_.9} parent=0 // pred_region
    _
  $region25: #{_lambda_.9} parent=0 // pred_fallthru
    _
  // Predicated region
  $region26: #{_lambda_.9} parent=0 // pred_check
    _
  $region27: #{_lambda_.9} parent=0 // pred_check_branch
    %321 = sbr.rel (0) target = $region29
  $region28: #{_lambda_.9} parent=0 // pred_region
    _
  $region29: #{_lambda_.9} parent=0 // pred_fallthru
    _

// kernel: _lambda_.11
$region0: #{_lambda_.11}
  #allocation0 [shape = 'u32[]', space=smem, size = 0x4, offset = 0x4, fixed_abs, tag = 'smem constant byte address 0x4 - core index']
  #allocation1 [shape = 'u32[144,128]{1,0:T(1,128)}', space=vmem, size = 0x12000, scoped, tag = 'internal scratch']
  %s0 = inlined_call_operand.vmem [shape: bf16[8,256], index: 0, kind: input, shape index: {}]
  %s1 = inlined_call_operand.vmem [shape: bf16[256,256], index: 1, kind: input, shape index: {}]
  %s2 = inlined_call_operand.vmem [shape: f32[1,256], index: 2, kind: input, shape index: {}]
  %s3 = inlined_call_operand.vmem [shape: f32[8,256], index: 3, kind: output, shape index: {}]
  %s4 = sld [smem:[#allocation0]]
  $region22: #{_lambda_.11} parent=0
    _
  %s6 = ssub.s32 1, %s4
  %s7 = scalar_select 0, %s6, %s4
  // Predicated region
  $region2: #{_lambda_.11} parent=0 // pred_check
    _
  $region3: #{_lambda_.11} parent=0 // pred_check_branch
    %9 = sbr.rel (0) target = $region5
  $region4: #{_lambda_.11} parent=0 // pred_region
    _
  $region5: #{_lambda_.11} parent=0 // pred_fallthru
    _
  // Predicated region
  $region6: #{_lambda_.11} parent=0 // pred_check
    _
  $region7: #{_lambda_.11} parent=0 // pred_check_branch
    %11 = sbr.rel (0) target = $region9
  $region8: #{_lambda_.11} parent=0 // pred_region
    _
  $region9: #{_lambda_.11} parent=0 // pred_fallthru
    _
  // Predicated region
  $region10: #{_lambda_.11} parent=0 // pred_check
    _
  $region11: #{_lambda_.11} parent=0 // pred_check_branch
    %13 = sbr.rel (0) target = $region13
  $region12: #{_lambda_.11} parent=0 // pred_region
    _
  $region13: #{_lambda_.11} parent=0 // pred_fallthru
    _
  %v14 = vld [vmem:[%s0] sm:$0xff]
  %v15 = vld [vmem:[%s1] sm:$0xff]
  %v16 = vld [vmem:[%s1 + $0x8] sm:$0xff]
  %v17 = vld [vmem:[%s1 + $0x10] sm:$0xff]
  %v18 = vld [vmem:[%s1 + $0x18] sm:$0xff]
  %v19 = vld [vmem:[%s1 + $0x20] sm:$0xff]
  %v20 = vld [vmem:[%s1 + $0x28] sm:$0xff]
  %v21 = vld [vmem:[%s1 + $0x30] sm:$0xff]
  %v22 = vld [vmem:[%s1 + $0x38] sm:$0xff]
  %v23 = vld [vmem:[%s1 + $0x40] sm:$0xff]
  %v24 = vld [vmem:[%s1 + $0x48] sm:$0xff]
  %v25 = vld [vmem:[%s1 + $0x50] sm:$0xff]
  %v26 = vld [vmem:[%s1 + $0x58] sm:$0xff]
  %v27 = vld [vmem:[%s1 + $0x60] sm:$0xff]
  %v28 = vld [vmem:[%s1 + $0x68] sm:$0xff]
  %v29 = vld [vmem:[%s1 + $0x70] sm:$0xff]
  %v30 = vld [vmem:[%s1 + $0x78] sm:$0xff]
  %v31 = vld [vmem:[%s1 + $0x80] sm:$0xff]
  %v32 = vld [vmem:[%s1 + $0x88] sm:$0xff]
  %v33 = vld [vmem:[%s1 + $0x90] sm:$0xff]
  %v34 = vld [vmem:[%s1 + $0x98] sm:$0xff]
  %v35 = vld [vmem:[%s1 + $0xa0] sm:$0xff]
  %v36 = vld [vmem:[%s1 + $0xa8] sm:$0xff]
  %v37 = vld [vmem:[%s1 + $0xb0] sm:$0xff]
  %v38 = vld [vmem:[%s1 + $0xb8] sm:$0xff]
  %v39 = vld [vmem:[%s1 + $0xc0] sm:$0xff]
  %v40 = vld [vmem:[%s1 + $0xc8] sm:$0xff]
  %v41 = vld [vmem:[%s1 + $0xd0] sm:$0xff]
  %v42 = vld [vmem:[%s1 + $0xd8] sm:$0xff]
  %v43 = vld [vmem:[%s1 + $0xe0] sm:$0xff]
  %v44 = vld [vmem:[%s1 + $0xe8] sm:$0xff]
  %v45 = vld [vmem:[%s1 + $0xf0] sm:$0xff]
  %v46 = vld [vmem:[%s1 + $0xf8] sm:$0xff]
  %v47 = vld [vmem:[%s2] sm:$0x3]
  %v49 = vlaneseq
  %v50 = vshrl.u32 %v49, 7
  %v51 = vsub.s32 0, %v50
  %v52 = vrot.slane %v47, %v51
  %v53 = vlaneseq
  %v54 = vshrl.u32 %v53, 7
  %v55 = vsub.s32 1, %v54
  %v56 = vrot.slane %v47, %v55
  %v60 = vunpack.c.l.b16 %v14
  %v61 = vunpack.c.h.b16 %v14
  %v62 = vpack.c.b16 %v60, %v60
  %v63 = vpack.c.b16 %v61, %v61
  %v98 = vunpack.c.l.b16 %v15
  %v99 = vunpack.c.h.b16 %v15
  %v100 = vunpack.c.l.b16 %v16
  %v101 = vunpack.c.h.b16 %v16
  %v102 = vunpack.c.l.b16 %v17
  %v103 = vunpack.c.h.b16 %v17
  %v104 = vunpack.c.l.b16 %v18
  %v105 = vunpack.c.h.b16 %v18
  %v106 = vunpack.c.l.b16 %v19
  %v107 = vunpack.c.h.b16 %v19
  %v108 = vunpack.c.l.b16 %v20
  %v109 = vunpack.c.h.b16 %v20
  %v110 = vunpack.c.l.b16 %v21
  %v111 = vunpack.c.h.b16 %v21
  %v112 = vunpack.c.l.b16 %v22
  %v113 = vunpack.c.h.b16 %v22
  %v114 = vunpack.c.l.b16 %v23
  %v115 = vunpack.c.h.b16 %v23
  %v116 = vunpack.c.l.b16 %v24
  %v117 = vunpack.c.h.b16 %v24
  %v118 = vunpack.c.l.b16 %v25
  %v119 = vunpack.c.h.b16 %v25
  %v120 = vunpack.c.l.b16 %v26
  %v121 = vunpack.c.h.b16 %v26
  %v122 = vunpack.c.l.b16 %v27
  %v123 = vunpack.c.h.b16 %v27
  %v124 = vunpack.c.l.b16 %v28
  %v125 = vunpack.c.h.b16 %v28
  %v126 = vunpack.c.l.b16 %v29
  %v127 = vunpack.c.h.b16 %v29
  %v128 = vunpack.c.l.b16 %v30
  %v129 = vunpack.c.h.b16 %v30
  %v130 = vunpack.c.l.b16 %v31
  %v131 = vunpack.c.h.b16 %v31
  %v132 = vunpack.c.l.b16 %v32
  %v133 = vunpack.c.h.b16 %v32
  %v134 = vunpack.c.l.b16 %v33
  %v135 = vunpack.c.h.b16 %v33
  %v136 = vunpack.c.l.b16 %v34
  %v137 = vunpack.c.h.b16 %v34
  %v138 = vunpack.c.l.b16 %v35
  %v139 = vunpack.c.h.b16 %v35
  %v140 = vunpack.c.l.b16 %v36
  %v141 = vunpack.c.h.b16 %v36
  %v142 = vunpack.c.l.b16 %v37
  %v143 = vunpack.c.h.b16 %v37
  %v144 = vunpack.c.l.b16 %v38
  %v145 = vunpack.c.h.b16 %v38
  %v146 = vunpack.c.l.b16 %v39
  %v147 = vunpack.c.h.b16 %v39
  %v148 = vunpack.c.l.b16 %v40
  %v149 = vunpack.c.h.b16 %v40
  %v150 = vunpack.c.l.b16 %v41
  %v151 = vunpack.c.h.b16 %v41
  %v152 = vunpack.c.l.b16 %v42
  %v153 = vunpack.c.h.b16 %v42
  %v154 = vunpack.c.l.b16 %v43
  %v155 = vunpack.c.h.b16 %v43
  %v156 = vunpack.c.l.b16 %v44
  %v157 = vunpack.c.h.b16 %v44
  %v158 = vunpack.c.l.b16 %v45
  %v159 = vunpack.c.h.b16 %v45
  %v160 = vunpack.c.l.b16 %v46
  %v161 = vunpack.c.h.b16 %v46
  %v162 = vpack.c.b16 %v100, %v98
  %v163 = vpack.c.b16 %v101, %v99
  %v164 = vpack.c.b16 %v104, %v102
  %v165 = vpack.c.b16 %v105, %v103
  %v166 = vpack.c.b16 %v108, %v106
  %v167 = vpack.c.b16 %v109, %v107
  %v168 = vpack.c.b16 %v112, %v110
  %v169 = vpack.c.b16 %v113, %v111
  %v170 = vpack.c.b16 %v116, %v114
  %v171 = vpack.c.b16 %v117, %v115
  %v172 = vpack.c.b16 %v120, %v118
  %v173 = vpack.c.b16 %v121, %v119
  %v174 = vpack.c.b16 %v124, %v122
  %v175 = vpack.c.b16 %v125, %v123
  %v176 = vpack.c.b16 %v128, %v126
  %v177 = vpack.c.b16 %v129, %v127
  %v178 = vpack.c.b16 %v132, %v130
  %v179 = vpack.c.b16 %v133, %v131
  %v180 = vpack.c.b16 %v136, %v134
  %v181 = vpack.c.b16 %v137, %v135
  %v182 = vpack.c.b16 %v140, %v138
  %v183 = vpack.c.b16 %v141, %v139
  %v184 = vpack.c.b16 %v144, %v142
  %v185 = vpack.c.b16 %v145, %v143
  %v186 = vpack.c.b16 %v148, %v146
  %v187 = vpack.c.b16 %v149, %v147
  %v188 = vpack.c.b16 %v152, %v150
  %v189 = vpack.c.b16 %v153, %v151
  %v190 = vpack.c.b16 %v156, %v154
  %v191 = vpack.c.b16 %v157, %v155
  %v192 = vpack.c.b16 %v160, %v158
  %v193 = vpack.c.b16 %v161, %v159
  %226 = vmatprep.subr.bf16.mxu0 %v163
  %227 = vmatpush1.bf16.msra.mxu0 %v162
  %228 = vmatprep.subr.bf16.mxu0 %v165
  %229 = vmatpush1.bf16.msra.mxu0 %v164
  %230 = vmatprep.subr.bf16.mxu0 %v167
  %231 = vmatpush1.bf16.msra.mxu0 %v166
  %232 = vmatprep.subr.bf16.mxu0 %v169
  %233 = vmatpush1.bf16.msra.mxu0 %v168
  %234 = vmatprep.subr.bf16.mxu0 %v171
  %235 = vmatpush1.bf16.msra.mxu0 %v170
  %236 = vmatprep.subr.bf16.mxu0 %v173
  %237 = vmatpush1.bf16.msra.mxu0 %v172
  %238 = vmatprep.subr.bf16.mxu0 %v175
  %239 = vmatpush1.bf16.msra.mxu0 %v174
  %240 = vmatprep.subr.bf16.mxu0 %v177
  %241 = vmatpush1.bf16.msra.mxu0 %v176
  %242 = vmatprep.subr.bf16.mxu0 %v179
  %243 = vmatpush1.bf16.msra.mxu0 %v178
  %244 = vmatprep.subr.bf16.mxu0 %v181
  %245 = vmatpush1.bf16.msra.mxu0 %v180
  %246 = vmatprep.subr.bf16.mxu0 %v183
  %247 = vmatpush1.bf16.msra.mxu0 %v182
  %248 = vmatprep.subr.bf16.mxu0 %v185
  %249 = vmatpush1.bf16.msra.mxu0 %v184
  %250 = vmatprep.subr.bf16.mxu0 %v187
  %251 = vmatpush1.bf16.msra.mxu0 %v186
  %252 = vmatprep.subr.bf16.mxu0 %v189
  %253 = vmatpush1.bf16.msra.mxu0 %v188
  %254 = vmatprep.subr.bf16.mxu0 %v191
  %255 = vmatpush1.bf16.msra.mxu0 %v190
  %256 = vmatprep.subr.bf16.mxu0 %v193
  %257 = vmatpush1.bf16.msra.mxu0 %v192
  %258 = vmatprep.mubr.bf16.mxu0 %v63
  %259 = vmatmul.mubr.bf16.gmra.mrb[0].mxu0 %v62
  %v260 = vpop.f32.mrb[0].mxu0
  %v261 = vadd.f32 %v52, %v260
  %v262 = vpop.f32.mrb[0].mxu0
  %v263 = vadd.f32 %v56, %v262
  %v264 = vpop.f32.mrb[0].mxu0
  %v265 = vpop.f32.mrb[0].mxu0
  %266 = vdwg.mxu0
  %267 = vst [vmem:[%s3] sm:$0xff] %v261
  %268 = vst [vmem:[%s3 + $0x8] sm:$0xff] %v263
  // Predicated region
  $region14: #{_lambda_.11} parent=0 // pred_check
    _
  $region15: #{_lambda_.11} parent=0 // pred_check_branch
    %270 = sbr.rel (0) target = $region17
  $region16: #{_lambda_.11} parent=0 // pred_region
    _
  $region17: #{_lambda_.11} parent=0 // pred_fallthru
    _
  // Predicated region
  $region18: #{_lambda_.11} parent=0 // pred_check
    _
  $region19: #{_lambda_.11} parent=0 // pred_check_branch
    %272 = sbr.rel (0) target = $region21
  $region20: #{_lambda_.11} parent=0 // pred_region
    _
  $region21: #{_lambda_.11} parent=0 // pred_fallthru
    _

</llo_original>
